<compile_context>
chip_gen: v7x
topology: tpu7x:2x2x1
jax: 0.10.0
libtpu: 0.0.40
codegen_flags: <defaults>
</compile_context>

<pallas_src>
import math

import jax
import jax.numpy as jnp
from jax.experimental import pallas as pl
from jax.experimental.pallas import tpu as pltpu

# ---- dims (small, TPU-aligned) ---------------------------------------------
P_DIMS = [64, 128, 256]          # [latent, hidden, n_items]
Q_DIMS = P_DIMS[::-1]            # [256, 128, 64]
LATENT = Q_DIMS[-1]              # 64
HIDDEN = Q_DIMS[1]               # 128
N_ITEMS = P_DIMS[-1]             # 256

MAX_TILE_B = 512                 # batch tile target (per review: 512-1024 rows)
MIN_TILE_B = 128                 # don't split below this per tile
BATCH = 1024                     # demo batch: 2 tiles of 512 rows


def _round_up(n, m):
    return ((n + m - 1) // m) * m


def _pick_tiling(B, max_tile=MAX_TILE_B):
    """Choose (tile_b, num_tiles, padded_B).

    Rows per tile are sublane-aligned (multiple of 8), capped at max_tile, and
    we keep num_tiles >= 2 whenever the batch allows so the parallel batch
    axis shards across v7x's two TensorCores."""
    if B >= 2 * MIN_TILE_B:
        tile = min(max_tile, _round_up(pl.cdiv(B, 2), 8))
    else:
        tile = _round_up(max(B, 1), 8)
    num_tiles = pl.cdiv(B, tile)
    return tile, num_tiles, tile * num_tiles


def multivae_kernel(x_ref,
                    w1_ref, b1_ref,      # encoder fc1: (256,128) bf16, (1,128) f32
                    wcat_ref, b2_ref,    # fused [w2 | w2@w3]: (128,256) bf16, (1,128)
                    b23_ref,             # composed decoder fc1 bias: (1,128)
                    w4_ref, b4_ref,      # decoder fc2: (128,256) bf16, (1,256)
                    out_ref, z_ref):
    x = x_ref[...]                                           # (tile_b, 256) f32

    # Normalize(): x / max(||x||, 1e-12) == x * rsqrt(max(||x||^2, 1e-24)).
    # The per-row scale commutes with the matmul, so apply it AFTER x @ w1:
    # the rsqrt/reduce run off the MXU critical path and the multiply is
    # (tile_b,128) instead of (tile_b,256).
    sumsq = jnp.sum(x * x, axis=-1, keepdims=True)
    s = jax.lax.rsqrt(jnp.maximum(sumsq, 1e-24))

    # Dropout (eval mode) -> identity.

    # encoder fc1 + tanh (bf16 MXU operands, f32 accumulate)
    y1 = jnp.dot(x.astype(jnp.bfloat16), w1_ref[...],
                 preferred_element_type=jnp.float32)
    h = jnp.tanh(s * y1 + b1_ref[...])                       # (tile_b, 128)

    # fused encoder fc2 + decoder fc1: one full-width N=256 matmul.
    y2 = jnp.dot(h.astype(jnp.bfloat16), wcat_ref[...],
                 preferred_element_type=jnp.float32)         # (tile_b, 256)

    # z slab (mu | logvar), lane-dense; split happens on the host.
    z = y2[:, :2 * LATENT] + b2_ref[...]
    z_ref[...] = z

    # reparameterize (eval mode) -> mu.  Because wcat's right half is
    # w2[:, :latent] @ w3 and b23 = b2[:, :latent] @ w3 + b3, the slice below
    # equals tanh(mu @ w3 + b3).
    d = jnp.tanh(y2[:, 2 * LATENT:] + b23_ref[...])          # (tile_b, 128)

    # decoder fc2
    out_ref[...] = (jnp.dot(d.astype(jnp.bfloat16), w4_ref[...],
                            preferred_element_type=jnp.float32)
                    + b4_ref[...])                           # (tile_b, 256)


def prepare_params(params):
    """One-time weight prep: compose encoder-fc2/decoder-fc1, cast to bf16."""
    (w1, b1, w2, b2, w3, b3, w4, b4) = params
    # (h @ w2 + b2)[:, :latent] @ w3 + b3 == h @ (w2[:, :latent] @ w3) + (b2[:, :latent] @ w3 + b3)
    w23 = w2[:, :LATENT] @ w3                       # (128, 128)
    b23 = b2[:, :LATENT] @ w3 + b3                  # (1, 128)
    wcat = jnp.concatenate([w2, w23], axis=1)       # (128, 256)
    return (w1.astype(jnp.bfloat16), b1,
            wcat.astype(jnp.bfloat16), b2, b23,
            w4.astype(jnp.bfloat16), b4)


@jax.jit
def multivae_forward(x, prep):
    (w1, b1, wcat, b2, b23, w4, b4) = prep
    B = x.shape[0]
    tile_b, num_tiles, Bp = _pick_tiling(B)

    xp = x if Bp == B else jnp.pad(x, ((0, Bp - B), (0, 0)))

    batch_spec = lambda n: pl.BlockSpec((tile_b, n), lambda i: (i, 0))
    const_spec = lambda shp: pl.BlockSpec(shp, lambda i: (0, 0))

    in_specs = [
        batch_spec(N_ITEMS),
        const_spec(w1.shape), const_spec(b1.shape),
        const_spec(wcat.shape), const_spec(b2.shape),
        const_spec(b23.shape),
        const_spec(w4.shape), const_spec(b4.shape),
    ]
    out_specs = (
        batch_spec(N_ITEMS),        # decoder output, lane-dense (tile_b, 256)
        batch_spec(2 * LATENT),     # z slab, lane-dense (tile_b, 128)
    )
    out_shape = (
        jax.ShapeDtypeStruct((Bp, N_ITEMS), jnp.float32),
        jax.ShapeDtypeStruct((Bp, 2 * LATENT), jnp.float32),
    )

    out, z = pl.pallas_call(
        multivae_kernel,
        out_shape=out_shape,
        grid_spec=pl.GridSpec(grid=(num_tiles,),
                              in_specs=in_specs, out_specs=out_specs),
        compiler_params=pltpu.CompilerParams(
            dimension_semantics=("parallel",)),
    )(xp, w1, b1, wcat, b2, b23, w4, b4)

    if Bp != B:
        out, z = out[:B], z[:B]
    mu, logvar = z[:, :LATENT], z[:, LATENT:]
    return out, mu, logvar


def init_params(key):
    """Xavier-normal weights (like nn.init.xavier_normal_), zero biases.
    Weights are stored transposed: (in, out)."""
    def xavier(k, d_in, d_out):
        std = math.sqrt(2.0 / (d_in + d_out))
        return std * jax.random.normal(k, (d_in, d_out), dtype=jnp.float32)

    k1, k2, k3, k4 = jax.random.split(key, 4)
    # encoder: Linear(q[0]=256 -> q[1]=128), Linear(q[1]=128 -> 2*q[2]=128)
    w1 = xavier(k1, Q_DIMS[0], Q_DIMS[1]); b1 = jnp.zeros((1, Q_DIMS[1]), jnp.float32)
    w2 = xavier(k2, Q_DIMS[1], 2 * Q_DIMS[2]); b2 = jnp.zeros((1, 2 * Q_DIMS[2]), jnp.float32)
    # decoder: Linear(p[0]=64 -> p[1]=128), Linear(p[1]=128 -> p[2]=256)
    w3 = xavier(k3, P_DIMS[0], P_DIMS[1]); b3 = jnp.zeros((1, P_DIMS[1]), jnp.float32)
    w4 = xavier(k4, P_DIMS[1], P_DIMS[2]); b4 = jnp.zeros((1, P_DIMS[2]), jnp.float32)
    return (w1, b1, w2, b2, w3, b3, w4, b4)


def reference_forward(x, params):
    """Pure-JAX f32 reference (eval mode, matches PyTorch semantics)."""
    (w1, b1, w2, b2, w3, b3, w4, b4) = params
    norm = jnp.sqrt(jnp.sum(x * x, axis=-1, keepdims=True))
    xn = x / jnp.maximum(norm, 1e-12)
    h = jnp.tanh(xn @ w1 + b1)
    z = h @ w2 + b2
    mu, logvar = z[:, :LATENT], z[:, LATENT:]
    d = jnp.tanh(mu @ w3 + b3)
    out = d @ w4 + b4
    return out, mu, logvar


if __name__ == "__main__":
    key = jax.random.PRNGKey(0)
    kx, kp = jax.random.split(key)

    # user-item interaction counts (non-negative, like bag-of-items input)
    x = jax.random.uniform(kx, (BATCH, N_ITEMS), dtype=jnp.float32)
    params = init_params(kp)
    prep = prepare_params(params)

    out, mu, logvar = jax.block_until_ready(multivae_forward(x, prep))
    ref_out, ref_mu, ref_logvar = reference_forward(x, params)

    assert out.shape == (BATCH, N_ITEMS) and mu.shape == (BATCH, LATENT)
    assert logvar.shape == (BATCH, LATENT)
    # bf16 MXU operands + fused/re-associated matmuls: compare loosely vs f32.
    assert jnp.allclose(out, ref_out, atol=2e-2, rtol=2e-2)
    assert jnp.allclose(mu, ref_mu, atol=2e-2, rtol=2e-2)
    assert jnp.allclose(logvar, ref_logvar, atol=2e-2, rtol=2e-2)

    print("KERNEL_OK")
</pallas_src>

<mosaic_0001>
module attributes {stable_mosaic.version = 11 : i64} {
  func.func @multivae_kernel(%arg0: i32, %arg1: memref<512x256xf32, #tpu.memory_space<vmem>>, %arg2: memref<256x128xbf16, #tpu.memory_space<vmem>>, %arg3: memref<1x128xf32, #tpu.memory_space<vmem>>, %arg4: memref<128x256xbf16, #tpu.memory_space<vmem>>, %arg5: memref<1x128xf32, #tpu.memory_space<vmem>>, %arg6: memref<1x128xf32, #tpu.memory_space<vmem>>, %arg7: memref<128x256xbf16, #tpu.memory_space<vmem>>, %arg8: memref<1x256xf32, #tpu.memory_space<vmem>>, %arg9: memref<512x256xf32, #tpu.memory_space<vmem>>, %arg10: memref<512x128xf32, #tpu.memory_space<vmem>>) attributes {dimension_semantics = [#tpu.dimension_semantics<parallel>], iteration_bounds = array<i64: 2>, scalar_prefetch = 0 : i64, scratch_operands = 0 : i64, tpu.core_type = #tpu.core_type<tc>, window_params = [{transform_indices = @transform_0, window_bounds = array<i64: 512, 256>}, {pipeline_mode = #tpu.pipeline_mode<synchronous>, transform_indices = @transform_1, window_bounds = array<i64: 256, 128>}, {pipeline_mode = #tpu.pipeline_mode<synchronous>, transform_indices = @transform_2, window_bounds = array<i64: 1, 128>}, {pipeline_mode = #tpu.pipeline_mode<synchronous>, transform_indices = @transform_3, window_bounds = array<i64: 128, 256>}, {pipeline_mode = #tpu.pipeline_mode<synchronous>, transform_indices = @transform_4, window_bounds = array<i64: 1, 128>}, {pipeline_mode = #tpu.pipeline_mode<synchronous>, transform_indices = @transform_5, window_bounds = array<i64: 1, 128>}, {pipeline_mode = #tpu.pipeline_mode<synchronous>, transform_indices = @transform_6, window_bounds = array<i64: 128, 256>}, {pipeline_mode = #tpu.pipeline_mode<synchronous>, transform_indices = @transform_7, window_bounds = array<i64: 1, 256>}, {transform_indices = @transform_8, window_bounds = array<i64: 512, 256>}, {transform_indices = @transform_9, window_bounds = array<i64: 512, 128>}]} {
    %c0 = arith.constant 0 : index
    %c0_0 = arith.constant 0 : index
    %0 = vector.load %arg1[%c0, %c0_0] : memref<512x256xf32, #tpu.memory_space<vmem>>, vector<512x256xf32>
    %1 = arith.mulf %0, %0 : vector<512x256xf32>
    %cst = arith.constant dense<0.000000e+00> : vector<512xf32>
    %2 = vector.multi_reduction <add>, %1, %cst [1] : vector<512x256xf32> to vector<512xf32>
    %3 = vector.shape_cast %2 : vector<512xf32> to vector<512x1xf32>
    %cst_1 = arith.constant 1.000000e-24 : f32
    %4 = vector.broadcast %cst_1 : f32 to vector<512x1xf32>
    %5 = arith.maximumf %3, %4 : vector<512x1xf32>
    %6 = math.rsqrt %5 : vector<512x1xf32>
    %7 = arith.truncf %0 : vector<512x256xf32> to vector<512x256xbf16>
    %c0_2 = arith.constant 0 : index
    %c0_3 = arith.constant 0 : index
    %8 = vector.load %arg2[%c0_2, %c0_3] : memref<256x128xbf16, #tpu.memory_space<vmem>>, vector<256x128xbf16>
    %cst_4 = arith.constant dense<0.000000e+00> : vector<512x128xf32>
    %9 = tpu.matmul %7, %8, %cst_4 {dimension_numbers = #tpu.dot_dimension_numbers<[1], [0], [0], [1], [0, 0, 1, 1], [], []>} : vector<512x256xbf16>, vector<256x128xbf16>, vector<512x128xf32> -> vector<512x128xf32>
    %10 = vector.broadcast %6 : vector<512x1xf32> to vector<512x128xf32>
    %11 = arith.mulf %10, %9 : vector<512x128xf32>
    %c0_5 = arith.constant 0 : index
    %c0_6 = arith.constant 0 : index
    %12 = vector.load %arg3[%c0_5, %c0_6] : memref<1x128xf32, #tpu.memory_space<vmem>>, vector<1x128xf32>
    %13 = vector.broadcast %12 : vector<1x128xf32> to vector<512x128xf32>
    %14 = arith.addf %11, %13 : vector<512x128xf32>
    %15 = math.tanh %14 : vector<512x128xf32>
    %16 = arith.truncf %15 : vector<512x128xf32> to vector<512x128xbf16>
    %c0_7 = arith.constant 0 : index
    %c0_8 = arith.constant 0 : index
    %17 = vector.load %arg4[%c0_7, %c0_8] : memref<128x256xbf16, #tpu.memory_space<vmem>>, vector<128x256xbf16>
    %cst_9 = arith.constant dense<0.000000e+00> : vector<512x256xf32>
    %18 = tpu.matmul %16, %17, %cst_9 {dimension_numbers = #tpu.dot_dimension_numbers<[1], [0], [0], [1], [0, 0, 1, 1], [], []>} : vector<512x128xbf16>, vector<128x256xbf16>, vector<512x256xf32> -> vector<512x256xf32>
    %19 = vector.extract_strided_slice %18 {offsets = [0, 0], sizes = [512, 128], strides = [1, 1]} : vector<512x256xf32> to vector<512x128xf32>
    %c0_10 = arith.constant 0 : index
    %c0_11 = arith.constant 0 : index
    %20 = vector.load %arg5[%c0_10, %c0_11] : memref<1x128xf32, #tpu.memory_space<vmem>>, vector<1x128xf32>
    %21 = vector.broadcast %20 : vector<1x128xf32> to vector<512x128xf32>
    %22 = arith.addf %19, %21 : vector<512x128xf32>
    %c0_12 = arith.constant 0 : index
    %c0_13 = arith.constant 0 : index
    %23 = vector.load %arg10[%c0_12, %c0_13] : memref<512x128xf32, #tpu.memory_space<vmem>>, vector<512x128xf32>
    tpu.vector_store %arg10[%c0_12, %c0_13], %22 {strides = array<i32>} : memref<512x128xf32, #tpu.memory_space<vmem>>, vector<512x128xf32>,
    %24 = vector.extract_strided_slice %18 {offsets = [0, 128], sizes = [512, 128], strides = [1, 1]} : vector<512x256xf32> to vector<512x128xf32>
    %c0_14 = arith.constant 0 : index
    %c0_15 = arith.constant 0 : index
    %25 = vector.load %arg6[%c0_14, %c0_15] : memref<1x128xf32, #tpu.memory_space<vmem>>, vector<1x128xf32>
    %26 = vector.broadcast %25 : vector<1x128xf32> to vector<512x128xf32>
    %27 = arith.addf %24, %26 : vector<512x128xf32>
    %28 = math.tanh %27 : vector<512x128xf32>
    %29 = arith.truncf %28 : vector<512x128xf32> to vector<512x128xbf16>
    %c0_16 = arith.constant 0 : index
    %c0_17 = arith.constant 0 : index
    %30 = vector.load %arg7[%c0_16, %c0_17] : memref<128x256xbf16, #tpu.memory_space<vmem>>, vector<128x256xbf16>
    %cst_18 = arith.constant dense<0.000000e+00> : vector<512x256xf32>
    %31 = tpu.matmul %29, %30, %cst_18 {dimension_numbers = #tpu.dot_dimension_numbers<[1], [0], [0], [1], [0, 0, 1, 1], [], []>} : vector<512x128xbf16>, vector<128x256xbf16>, vector<512x256xf32> -> vector<512x256xf32>
    %c0_19 = arith.constant 0 : index
    %c0_20 = arith.constant 0 : index
    %32 = vector.load %arg8[%c0_19, %c0_20] : memref<1x256xf32, #tpu.memory_space<vmem>>, vector<1x256xf32>
    %33 = vector.broadcast %32 : vector<1x256xf32> to vector<512x256xf32>
    %34 = arith.addf %31, %33 : vector<512x256xf32>
    %c0_21 = arith.constant 0 : index
    %c0_22 = arith.constant 0 : index
    %35 = vector.load %arg9[%c0_21, %c0_22] : memref<512x256xf32, #tpu.memory_space<vmem>>, vector<512x256xf32>
    tpu.vector_store %arg9[%c0_21, %c0_22], %34 {strides = array<i32>} : memref<512x256xf32, #tpu.memory_space<vmem>>, vector<512x256xf32>,
    return
  }
  func.func @transform_0(%arg0: i32) -> (i32, i32) {
    %c0_i32 = arith.constant 0 : i32
    %c0_i32_0 = arith.constant 0 : i32
    return %arg0, %c0_i32 : i32, i32
  }
  func.func @transform_1(%arg0: i32) -> (i32, i32) {
    %c0_i32 = arith.constant 0 : i32
    %c0_i32_0 = arith.constant 0 : i32
    %c0_i32_1 = arith.constant 0 : i32
    return %c0_i32, %c0_i32_0 : i32, i32
  }
  func.func @transform_2(%arg0: i32) -> (i32, i32) {
    %c0_i32 = arith.constant 0 : i32
    %c0_i32_0 = arith.constant 0 : i32
    %c0_i32_1 = arith.constant 0 : i32
    return %c0_i32, %c0_i32_0 : i32, i32
  }
  func.func @transform_3(%arg0: i32) -> (i32, i32) {
    %c0_i32 = arith.constant 0 : i32
    %c0_i32_0 = arith.constant 0 : i32
    %c0_i32_1 = arith.constant 0 : i32
    return %c0_i32, %c0_i32_0 : i32, i32
  }
  func.func @transform_4(%arg0: i32) -> (i32, i32) {
    %c0_i32 = arith.constant 0 : i32
    %c0_i32_0 = arith.constant 0 : i32
    %c0_i32_1 = arith.constant 0 : i32
    return %c0_i32, %c0_i32_0 : i32, i32
  }
  func.func @transform_5(%arg0: i32) -> (i32, i32) {
    %c0_i32 = arith.constant 0 : i32
    %c0_i32_0 = arith.constant 0 : i32
    %c0_i32_1 = arith.constant 0 : i32
    return %c0_i32, %c0_i32_0 : i32, i32
  }
  func.func @transform_6(%arg0: i32) -> (i32, i32) {
    %c0_i32 = arith.constant 0 : i32
    %c0_i32_0 = arith.constant 0 : i32
    %c0_i32_1 = arith.constant 0 : i32
    return %c0_i32, %c0_i32_0 : i32, i32
  }
  func.func @transform_7(%arg0: i32) -> (i32, i32) {
    %c0_i32 = arith.constant 0 : i32
    %c0_i32_0 = arith.constant 0 : i32
    %c0_i32_1 = arith.constant 0 : i32
    return %c0_i32, %c0_i32_0 : i32, i32
  }
  func.func @transform_8(%arg0: i32) -> (i32, i32) {
    %c0_i32 = arith.constant 0 : i32
    %c0_i32_0 = arith.constant 0 : i32
    return %arg0, %c0_i32 : i32, i32
  }
  func.func @transform_9(%arg0: i32) -> (i32, i32) {
    %c0_i32 = arith.constant 0 : i32
    %c0_i32_0 = arith.constant 0 : i32
    return %arg0, %c0_i32 : i32, i32
  }
}

</mosaic_0001>

<llo_original>
// kernel: multivae_forward.1
$region0: #{multivae_forward.1}
  #allocation0 [shape = 'u32[]', space=smem, size = 0x4, offset = 0x4, fixed_abs, tag = 'smem constant byte address 0x4 - core index']
  #allocation1 [shape = 'u32[144,128]{1,0:T(1,128)}', space=vmem, size = 0x12000, scoped, tag = 'internal scratch']
  %s0 = inlined_call_operand.hbm [shape: f32[1024,256], index: 0, kind: input, shape index: {}]
  %s1 = inlined_call_operand.hbm [shape: bf16[256,128], index: 1, kind: input, shape index: {}]
  %s2 = inlined_call_operand.vmem [shape: f32[1,128], index: 2, kind: input, shape index: {}]
  %s3 = inlined_call_operand.hbm [shape: bf16[128,256], index: 3, kind: input, shape index: {}]
  %s4 = inlined_call_operand.vmem [shape: f32[1,128], index: 4, kind: input, shape index: {}]
  %s5 = inlined_call_operand.vmem [shape: f32[1,128], index: 5, kind: input, shape index: {}]
  %s6 = inlined_call_operand.hbm [shape: bf16[128,256], index: 6, kind: input, shape index: {}]
  %s7 = inlined_call_operand.vmem [shape: f32[1,256], index: 7, kind: input, shape index: {}]
  %s8 = inlined_call_operand.hbm [shape: f32[1024,256], index: 8, kind: output, shape index: {0}]
  %s9 = inlined_call_operand.vmem [shape: f32[1024,128], index: 9, kind: output, shape index: {1}]
  %10 = xla_tuple %s8, %s9
  %s11 = sld [smem:[#allocation0]]
  $region89: #{multivae_forward.1} parent=0
    _
  %s13 = ssub.s32 1, %s11
  %s14 = scalar_select 0, %s13, %s11
  $region1: #{multivae_forward.1} parent=0
    #allocation2 [shape = 'u8[1048576]{0}', space=vmem, size = 0x100000, scoped, tag = 'input window, operand 0']
    #allocation3 [shape = 's32[2]{0}', space=sflag, size = 0x8, scoped, tag = 'scoped memory for multivae_forward.1']
    #allocation4 [shape = 's32[2]{0}', space=sflag, size = 0x8, scoped, tag = 'scoped memory for multivae_forward.1']
    #allocation5 [shape = 'u8[65536]{0}', space=vmem, size = 0x10000, scoped, tag = 'input window, operand 1, single buffered']
    #allocation6 [shape = 's32[1]{0}', space=sflag, size = 0x4, scoped, tag = 'scoped memory for multivae_forward.1']
    #allocation7 [shape = 'u8[65536]{0}', space=vmem, size = 0x10000, scoped, tag = 'input window, operand 3, single buffered']
    #allocation8 [shape = 'u8[65536]{0}', space=vmem, size = 0x10000, scoped, tag = 'input window, operand 6, single buffered']
    #allocation9 [shape = 's32[1]{0}', space=sflag, size = 0x4, scoped, tag = 'scoped memory for multivae_forward.1']
    #allocation10 [shape = 'u8[1048576]{0}', space=vmem, size = 0x100000, scoped, tag = 'output window, operand 0']
    %15 = vsyncpa [#allocation3], 0
    %s16 = scalar_lea.sflag [#allocation3], 1
    %17 = vsyncpa %s16, 0
    %18 = vsyncpa [#allocation6], 0
    %19 = vsyncpa [#allocation9], 0
    %20 = vsyncpa [#allocation4], 0
    %s21 = scalar_lea.sflag [#allocation4], 1
    %22 = vsyncpa %s21, 0
    loop: start=0, step=1, limit=4
    $region2: #{multivae_forward.1} parent=1 // loop_pre_header
      _
    $region3: #{multivae_forward.1} parent=1 // loop_header
      %s24 = sphi 0, %s28
      %p25 = scmp.ge.s32.totalorder %s24, 4
      %s34 = sphi 0, %s36
      %s37 = sphi 0, %s34
      %s38 = sphi 0, %s37
      %s54 = sphi 0, %s38
      %s58 = sphi 0, %s58
      %s60 = sphi 0, %s58
      %s61 = sphi 0, %s60
      %s75 = sphi 0, %s61
      %s79 = sphi 0, %s79
      %s81 = sphi 0, %s79
      %s82 = sphi 0, %s81
      %s96 = sphi 0, %s82
      %s100 = sphi 0, %s100
      %s102 = sphi 0, %s100
      %s103 = sphi 0, %s102
      %s117 = sphi 0, %s103
      %s121 = sphi 0, %s121
      %s123 = sphi 0, %s121
      %s124 = sphi 0, %s123
      %s138 = sphi 0, %s124
      %s142 = sphi 0, %s142
      %s144 = sphi 0, %s142
      %s145 = sphi 0, %s144
      %s159 = sphi 0, %s145
      %s163 = sphi 0, %s163
      %s165 = sphi 0, %s163
      %s166 = sphi 0, %s165
      %s180 = sphi 0, %s166
      %s184 = sphi 0, %s184
      %s186 = sphi 0, %s184
      %s187 = sphi 0, %s186
      %s201 = sphi 0, %s187
      %s207 = sphi 0, %s209
      %s210 = sphi 0, %s207
      %s211 = sphi 0, %s210
      %s227 = sphi 0, %s211
      %s233 = sphi 0, %s235
      %s236 = sphi 0, %s233
      %s237 = sphi 0, %s236
      %s253 = sphi 0, %s237
    $region4: #{multivae_forward.1} parent=1 // loop_header_branch
      %27 = sbr.rel (%p25) target = $region8
    $region5: #{multivae_forward.1} parent=1 // loop_body
      %s29 = ssub.s32 %s24, 1
      %s30 = ssub.s32 %s24, 2
      %s31 = sadd.s32 %s24, 1
      %s32 = ssub.s32 %s24, %s31
      %p33 = scmp.eq.s32.totalorder %s32, 0
      %s35 = sadd.s32 %s34, 1
      %s36 = scalar_select %p33, %s34, %s35
      %p39 = pneg %p33
      %p40 = scmp.eq.s32.totalorder %s24, 1
      %p41 = por %p39, %p40
      %p42 = scmp.ne.s32.totalorder %s34, %s37
      %p43 = scmp.eq.s32.totalorder %s24, 0
      %p44 = por %p42, %p43
      %p45 = scmp.ne.s32.totalorder %s34, %s37
      %p46 = scmp.eq.s32.totalorder %s29, 1
      %p47 = por %p45, %p46
      %p48 = scmp.ne.s32.totalorder %s37, %s38
      %p49 = scmp.eq.s32.totalorder %s29, 0
      %p50 = por %p48, %p49
      %p51 = scmp.ne.s32.totalorder %s37, %s38
      %p52 = scmp.eq.s32.totalorder %s30, 1
      %p53 = por %p51, %p52
      %p55 = scmp.ne.s32.totalorder %s38, %s54
      %p56 = scmp.eq.s32.totalorder %s30, 0
      %p57 = por %p55, %p56
      %s59 = sadd.s32 %s58, 1
      %p62 = scmp.eq.s32.totalorder %s24, 1
      %p63 = scmp.ne.s32.totalorder %s58, %s60
      %p64 = scmp.eq.s32.totalorder %s24, 0
      %p65 = por %p63, %p64
      %p66 = scmp.ne.s32.totalorder %s58, %s60
      %p67 = scmp.eq.s32.totalorder %s29, 1
      %p68 = por %p66, %p67
      %p69 = scmp.ne.s32.totalorder %s60, %s61
      %p70 = scmp.eq.s32.totalorder %s29, 0
      %p71 = por %p69, %p70
      %p72 = scmp.ne.s32.totalorder %s60, %s61
      %p73 = scmp.eq.s32.totalorder %s30, 1
      %p74 = por %p72, %p73
      %p76 = scmp.ne.s32.totalorder %s61, %s75
      %p77 = scmp.eq.s32.totalorder %s30, 0
      %p78 = por %p76, %p77
      %s80 = sadd.s32 %s79, 1
      %p83 = scmp.eq.s32.totalorder %s24, 1
      %p84 = scmp.ne.s32.totalorder %s79, %s81
      %p85 = scmp.eq.s32.totalorder %s24, 0
      %p86 = por %p84, %p85
      %p87 = scmp.ne.s32.totalorder %s79, %s81
      %p88 = scmp.eq.s32.totalorder %s29, 1
      %p89 = por %p87, %p88
      %p90 = scmp.ne.s32.totalorder %s81, %s82
      %p91 = scmp.eq.s32.totalorder %s29, 0
      %p92 = por %p90, %p91
      %p93 = scmp.ne.s32.totalorder %s81, %s82
      %p94 = scmp.eq.s32.totalorder %s30, 1
      %p95 = por %p93, %p94
      %p97 = scmp.ne.s32.totalorder %s82, %s96
      %p98 = scmp.eq.s32.totalorder %s30, 0
      %p99 = por %p97, %p98
      %s101 = sadd.s32 %s100, 1
      %p104 = scmp.eq.s32.totalorder %s24, 1
      %p105 = scmp.ne.s32.totalorder %s100, %s102
      %p106 = scmp.eq.s32.totalorder %s24, 0
      %p107 = por %p105, %p106
      %p108 = scmp.ne.s32.totalorder %s100, %s102
      %p109 = scmp.eq.s32.totalorder %s29, 1
      %p110 = por %p108, %p109
      %p111 = scmp.ne.s32.totalorder %s102, %s103
      %p112 = scmp.eq.s32.totalorder %s29, 0
      %p113 = por %p111, %p112
      %p114 = scmp.ne.s32.totalorder %s102, %s103
      %p115 = scmp.eq.s32.totalorder %s30, 1
      %p116 = por %p114, %p115
      %p118 = scmp.ne.s32.totalorder %s103, %s117
      %p119 = scmp.eq.s32.totalorder %s30, 0
      %p120 = por %p118, %p119
      %s122 = sadd.s32 %s121, 1
      %p125 = scmp.eq.s32.totalorder %s24, 1
      %p126 = scmp.ne.s32.totalorder %s121, %s123
      %p127 = scmp.eq.s32.totalorder %s24, 0
      %p128 = por %p126, %p127
      %p129 = scmp.ne.s32.totalorder %s121, %s123
      %p130 = scmp.eq.s32.totalorder %s29, 1
      %p131 = por %p129, %p130
      %p132 = scmp.ne.s32.totalorder %s123, %s124
      %p133 = scmp.eq.s32.totalorder %s29, 0
      %p134 = por %p132, %p133
      %p135 = scmp.ne.s32.totalorder %s123, %s124
      %p136 = scmp.eq.s32.totalorder %s30, 1
      %p137 = por %p135, %p136
      %p139 = scmp.ne.s32.totalorder %s124, %s138
      %p140 = scmp.eq.s32.totalorder %s30, 0
      %p141 = por %p139, %p140
      %s143 = sadd.s32 %s142, 1
      %p146 = scmp.eq.s32.totalorder %s24, 1
      %p147 = scmp.ne.s32.totalorder %s142, %s144
      %p148 = scmp.eq.s32.totalorder %s24, 0
      %p149 = por %p147, %p148
      %p150 = scmp.ne.s32.totalorder %s142, %s144
      %p151 = scmp.eq.s32.totalorder %s29, 1
      %p152 = por %p150, %p151
      %p153 = scmp.ne.s32.totalorder %s144, %s145
      %p154 = scmp.eq.s32.totalorder %s29, 0
      %p155 = por %p153, %p154
      %p156 = scmp.ne.s32.totalorder %s144, %s145
      %p157 = scmp.eq.s32.totalorder %s30, 1
      %p158 = por %p156, %p157
      %p160 = scmp.ne.s32.totalorder %s145, %s159
      %p161 = scmp.eq.s32.totalorder %s30, 0
      %p162 = por %p160, %p161
      %s164 = sadd.s32 %s163, 1
      %p167 = scmp.eq.s32.totalorder %s24, 1
      %p168 = scmp.ne.s32.totalorder %s163, %s165
      %p169 = scmp.eq.s32.totalorder %s24, 0
      %p170 = por %p168, %p169
      %p171 = scmp.ne.s32.totalorder %s163, %s165
      %p172 = scmp.eq.s32.totalorder %s29, 1
      %p173 = por %p171, %p172
      %p174 = scmp.ne.s32.totalorder %s165, %s166
      %p175 = scmp.eq.s32.totalorder %s29, 0
      %p176 = por %p174, %p175
      %p177 = scmp.ne.s32.totalorder %s165, %s166
      %p178 = scmp.eq.s32.totalorder %s30, 1
      %p179 = por %p177, %p178
      %p181 = scmp.ne.s32.totalorder %s166, %s180
      %p182 = scmp.eq.s32.totalorder %s30, 0
      %p183 = por %p181, %p182
      %s185 = sadd.s32 %s184, 1
      %p188 = scmp.eq.s32.totalorder %s24, 1
      %p189 = scmp.ne.s32.totalorder %s184, %s186
      %p190 = scmp.eq.s32.totalorder %s24, 0
      %p191 = por %p189, %p190
      %p192 = scmp.ne.s32.totalorder %s184, %s186
      %p193 = scmp.eq.s32.totalorder %s29, 1
      %p194 = por %p192, %p193
      %p195 = scmp.ne.s32.totalorder %s186, %s187
      %p196 = scmp.eq.s32.totalorder %s29, 0
      %p197 = por %p195, %p196
      %p198 = scmp.ne.s32.totalorder %s186, %s187
      %p199 = scmp.eq.s32.totalorder %s30, 1
      %p200 = por %p198, %p199
      %p202 = scmp.ne.s32.totalorder %s187, %s201
      %p203 = scmp.eq.s32.totalorder %s30, 0
      %p204 = por %p202, %p203
      %s205 = ssub.s32 %s24, %s31
      %p206 = scmp.eq.s32.totalorder %s205, 0
      %s208 = sadd.s32 %s207, 1
      %s209 = scalar_select %p206, %s207, %s208
      %p212 = pneg %p206
      %p213 = scmp.eq.s32.totalorder %s24, 1
      %p214 = por %p212, %p213
      %p215 = scmp.ne.s32.totalorder %s207, %s210
      %p216 = scmp.eq.s32.totalorder %s24, 0
      %p217 = por %p215, %p216
      %p218 = scmp.ne.s32.totalorder %s207, %s210
      %p219 = scmp.eq.s32.totalorder %s29, 1
      %p220 = por %p218, %p219
      %p221 = scmp.ne.s32.totalorder %s210, %s211
      %p222 = scmp.eq.s32.totalorder %s29, 0
      %p223 = por %p221, %p222
      %p224 = scmp.ne.s32.totalorder %s210, %s211
      %p225 = scmp.eq.s32.totalorder %s30, 1
      %p226 = por %p224, %p225
      %p228 = scmp.ne.s32.totalorder %s211, %s227
      %p229 = scmp.eq.s32.totalorder %s30, 0
      %p230 = por %p228, %p229
      %s231 = ssub.s32 %s24, %s31
      %p232 = scmp.eq.s32.totalorder %s231, 0
      %s234 = sadd.s32 %s233, 1
      %s235 = scalar_select %p232, %s233, %s234
      %p238 = pneg %p232
      %p239 = scmp.eq.s32.totalorder %s24, 1
      %p240 = por %p238, %p239
      %p241 = scmp.ne.s32.totalorder %s233, %s236
      %p242 = scmp.eq.s32.totalorder %s24, 0
      %p243 = por %p241, %p242
      %p244 = scmp.ne.s32.totalorder %s233, %s236
      %p245 = scmp.eq.s32.totalorder %s29, 1
      %p246 = por %p244, %p245
      %p247 = scmp.ne.s32.totalorder %s236, %s237
      %p248 = scmp.eq.s32.totalorder %s29, 0
      %p249 = por %p247, %p248
      %p250 = scmp.ne.s32.totalorder %s236, %s237
      %p251 = scmp.eq.s32.totalorder %s30, 1
      %p252 = por %p250, %p251
      %p254 = scmp.ne.s32.totalorder %s237, %s253
      %p255 = scmp.eq.s32.totalorder %s30, 0
      %p256 = por %p254, %p255
      %p257 = scmp.le.s32.totalorder 1, %s24
      %p258 = scmp.lt.s32.totalorder %s24, 3
      %p259 = pnand %p257, %p258
      %p260 = pneg %p259
      // Predicated region
      $region9: #{multivae_forward.1} parent=5 // pred_check
        _
      $region10: #{multivae_forward.1} parent=5 // pred_check_branch
        %262 = sbr.rel (%p259) target = $region12
      $region11: #{multivae_forward.1} parent=5 // pred_region
        %s263 = ssub.s32 %s24, 1
        // Predicated region
        $region13: #{multivae_forward.1} parent=11 // pred_check
          %p264 = pneg %p71
        $region14: #{multivae_forward.1} parent=11 // pred_check_branch
          %266 = sbr.rel (%p264) target = $region16
        $region15: #{multivae_forward.1} parent=11 // pred_region
          %s268 = ssub.s32 2048, 2048
          %269 = vsyncadd [#allocation6], %s268
          %s270 = sshll.u32 [#allocation5], 4
          %s271 = int_to_ptr.vmem [resolvable:$true] %s270
          %276 = dma.hbm_to_vmem [thread:$0]  %s1, 2048, %s271, [#allocation6], 64, 64, 4
        $region16: #{multivae_forward.1} parent=11 // pred_fallthru
          _
        // Predicated region
        $region17: #{multivae_forward.1} parent=11 // pred_check
          %p277 = pneg %p92
        $region18: #{multivae_forward.1} parent=11 // pred_check_branch
          %279 = sbr.rel (%p277) target = $region20
        $region19: #{multivae_forward.1} parent=11 // pred_region
          _
        $region20: #{multivae_forward.1} parent=11 // pred_fallthru
          _
        // Predicated region
        $region21: #{multivae_forward.1} parent=11 // pred_check
          %p280 = pneg %p113
        $region22: #{multivae_forward.1} parent=11 // pred_check_branch
          %282 = sbr.rel (%p280) target = $region24
        $region23: #{multivae_forward.1} parent=11 // pred_region
          %s284 = ssub.s32 2048, 2048
          %285 = vsyncadd [#allocation6], %s284
          %s286 = sshll.u32 [#allocation7], 4
          %s287 = int_to_ptr.vmem [resolvable:$true] %s286
          %292 = dma.hbm_to_vmem [thread:$0]  %s3, 2048, %s287, [#allocation6], 128, 128, 8
        $region24: #{multivae_forward.1} parent=11 // pred_fallthru
          _
        // Predicated region
        $region25: #{multivae_forward.1} parent=11 // pred_check
          %p293 = pneg %p134
        $region26: #{multivae_forward.1} parent=11 // pred_check_branch
          %295 = sbr.rel (%p293) target = $region28
        $region27: #{multivae_forward.1} parent=11 // pred_region
          _
        $region28: #{multivae_forward.1} parent=11 // pred_fallthru
          _
        // Predicated region
        $region29: #{multivae_forward.1} parent=11 // pred_check
          %p296 = pneg %p155
        $region30: #{multivae_forward.1} parent=11 // pred_check_branch
          %298 = sbr.rel (%p296) target = $region32
        $region31: #{multivae_forward.1} parent=11 // pred_region
          _
        $region32: #{multivae_forward.1} parent=11 // pred_fallthru
          _
        // Predicated region
        $region33: #{multivae_forward.1} parent=11 // pred_check
          %p299 = pneg %p176
        $region34: #{multivae_forward.1} parent=11 // pred_check_branch
          %301 = sbr.rel (%p299) target = $region36
        $region35: #{multivae_forward.1} parent=11 // pred_region
          %s303 = ssub.s32 2048, 2048
          %304 = vsyncadd [#allocation9], %s303
          %s305 = sshll.u32 [#allocation8], 4
          %s306 = int_to_ptr.vmem [resolvable:$true] %s305
          %311 = dma.hbm_to_vmem [thread:$0]  %s6, 2048, %s306, [#allocation9], 128, 128, 8
        $region36: #{multivae_forward.1} parent=11 // pred_fallthru
          _
        // Predicated region
        $region37: #{multivae_forward.1} parent=11 // pred_check
          %p312 = pneg %p197
        $region38: #{multivae_forward.1} parent=11 // pred_check_branch
          %314 = sbr.rel (%p312) target = $region40
        $region39: #{multivae_forward.1} parent=11 // pred_region
          _
        $region40: #{multivae_forward.1} parent=11 // pred_fallthru
          _
      $region12: #{multivae_forward.1} parent=5 // pred_fallthru
        _
      %p315 = scmp.lt.s32.totalorder %s24, 2
      // Predicated region
      $region41: #{multivae_forward.1} parent=5 // pred_check
        %p316 = pneg %p315
      $region42: #{multivae_forward.1} parent=5 // pred_check_branch
        %318 = sbr.rel (%p316) target = $region44
      $region43: #{multivae_forward.1} parent=5 // pred_region
        // Predicated region
        $region45: #{multivae_forward.1} parent=43 // pred_check
          %p319 = pneg %p44
        $region46: #{multivae_forward.1} parent=43 // pred_check_branch
          %321 = sbr.rel (%p319) target = $region48
        $region47: #{multivae_forward.1} parent=43 // pred_region
          %s322 = sand.u32 %s34, 1
          %s323 = scalar_lea.sflag [#allocation3], %s322
          %s324 = sand.u32 %s34, 1
          %s325 = smul.addr %s324, 1024
          %s326 = scalar_lea.vmem [#allocation2], %s325
          %s327 = smul.u32 64, %s24
          %s329 = ssub.s32 16384, 16384
          %330 = vsyncadd %s323, %s329
          %s331 = smul.addr %s327, 2
          %s332 = smul.addr %s331, 128
          %s333 = scalar_lea.hbm %s0, %s332
          %s334 = sshll.u32 %s326, 4
          %s335 = int_to_ptr.vmem [resolvable:$true] %s334
          %340 = dma.hbm_to_vmem [thread:$0]  %s333, 16384, %s335, %s323, 256, 256, 16
        $region48: #{multivae_forward.1} parent=43 // pred_fallthru
          _
      $region44: #{multivae_forward.1} parent=5 // pred_fallthru
        _
      %p341 = scmp.le.s32.totalorder 1, %s24
      %p342 = scmp.lt.s32.totalorder %s24, 3
      %p343 = pnand %p341, %p342
      %p344 = pneg %p343
      // Predicated region
      $region49: #{multivae_forward.1} parent=5 // pred_check
        _
      $region50: #{multivae_forward.1} parent=5 // pred_check_branch
        %346 = sbr.rel (%p343) target = $region52
      $region51: #{multivae_forward.1} parent=5 // pred_region
        %s347 = ssub.s32 %s24, 1
        %s348 = sand.u32 %s37, 1
        %s349 = scalar_lea.sflag [#allocation3], %s348
        %s350 = sand.u32 %s37, 1
        %s351 = smul.addr %s350, 1024
        %s352 = scalar_lea.vmem [#allocation2], %s351
        // Predicated region
        $region53: #{multivae_forward.1} parent=51 // pred_check
          %p353 = pneg %p50
        $region54: #{multivae_forward.1} parent=51 // pred_check_branch
          %355 = sbr.rel (%p353) target = $region56
        $region55: #{multivae_forward.1} parent=51 // pred_region
          %356 = dma.done %s349, 16384
        $region56: #{multivae_forward.1} parent=51 // pred_fallthru
          _
        // Predicated region
        $region57: #{multivae_forward.1} parent=51 // pred_check
          %p357 = pneg %p71
        $region58: #{multivae_forward.1} parent=51 // pred_check_branch
          %359 = sbr.rel (%p357) target = $region60
        $region59: #{multivae_forward.1} parent=51 // pred_region
          %360 = dma.done [#allocation6], 2048
        $region60: #{multivae_forward.1} parent=51 // pred_fallthru
          _
        // Predicated region
        $region61: #{multivae_forward.1} parent=51 // pred_check
          %p361 = pneg %p113
        $region62: #{multivae_forward.1} parent=51 // pred_check_branch
          %363 = sbr.rel (%p361) target = $region64
        $region63: #{multivae_forward.1} parent=51 // pred_region
          %364 = dma.done [#allocation6], 2048
        $region64: #{multivae_forward.1} parent=51 // pred_fallthru
          _
        // Predicated region
        $region65: #{multivae_forward.1} parent=51 // pred_check
          %p365 = pneg %p176
        $region66: #{multivae_forward.1} parent=51 // pred_check_branch
          %367 = sbr.rel (%p365) target = $region68
        $region67: #{multivae_forward.1} parent=51 // pred_region
          %368 = dma.done [#allocation9], 2048
        $region68: #{multivae_forward.1} parent=51 // pred_fallthru
          _
        %s369 = sand.u32 %s37, 1
        %s370 = scalar_lea.sflag [#allocation3], %s369
        %s371 = sand.u32 %s37, 1
        %s372 = smul.addr %s371, 1024
        %s373 = scalar_lea.vmem [#allocation2], %s372
        %p374 = pneg %p50
        %p375 = pneg %p47
        %p376 = pneg %p71
        %p377 = pneg %p68
        %p378 = pneg %p92
        %p379 = pneg %p89
        %p380 = pneg %p113
        %p381 = pneg %p110
        %p382 = pneg %p134
        %p383 = pneg %p131
        %p384 = pneg %p155
        %p385 = pneg %p152
        %p386 = pneg %p176
        %p387 = pneg %p173
        %p388 = pneg %p197
        %p389 = pneg %p194
        %p390 = pneg %p223
        %p391 = pneg %p220
        %s392 = sand.u32 %s210, 1
        %s393 = scalar_lea.sflag [#allocation4], %s392
        %s394 = sand.u32 %s210, 1
        %s395 = smul.addr %s394, 1024
        %s396 = scalar_lea.vmem [#allocation10], %s395
        %p397 = pneg %p249
        %p398 = pneg %p246
        %s399 = smul.u32 64, %s29
        %p400 = scmp.lt.s32.totalorder %s399, 127
        %s401 = scalar_select %p400, %s399, 127
        %s402 = smul.addr %s401, 8
        %s403 = scalar_lea.vmem %s9, %s402
        %s404 = smul.u32 64, %s29
        %s405 = smul.u32 64, %s29
        %s406 = smul.u32 64, %s29
        %p407 = scmp.lt.s32.totalorder %s406, 127
        %s408 = scalar_select %p407, %s406, 127
        %s409 = smul.addr %s408, 8
        %s410 = scalar_lea.vmem %s9, %s409
        %s411 = smul.u32 64, %s29
        %v413 = vld [vmem:[%s352] sm:$0xff]
        %v414 = vld [vmem:[%s352 + $0x8] sm:$0xff]
        %v415 = vld [vmem:[%s352 + $0x10] sm:$0xff]
        %v416 = vld [vmem:[%s352 + $0x18] sm:$0xff]
        %v417 = vld [vmem:[%s352 + $0x20] sm:$0xff]
        %v418 = vld [vmem:[%s352 + $0x28] sm:$0xff]
        %v419 = vld [vmem:[%s352 + $0x30] sm:$0xff]
        %v420 = vld [vmem:[%s352 + $0x38] sm:$0xff]
        %v421 = vld [vmem:[%s352 + $0x40] sm:$0xff]
        %v422 = vld [vmem:[%s352 + $0x48] sm:$0xff]
        %v423 = vld [vmem:[%s352 + $0x50] sm:$0xff]
        %v424 = vld [vmem:[%s352 + $0x58] sm:$0xff]
        %v425 = vld [vmem:[%s352 + $0x60] sm:$0xff]
        %v426 = vld [vmem:[%s352 + $0x68] sm:$0xff]
        %v427 = vld [vmem:[%s352 + $0x70] sm:$0xff]
        %v428 = vld [vmem:[%s352 + $0x78] sm:$0xff]
        %v429 = vld [vmem:[%s352 + $0x80] sm:$0xff]
        %v430 = vld [vmem:[%s352 + $0x88] sm:$0xff]
        %v431 = vld [vmem:[%s352 + $0x90] sm:$0xff]
        %v432 = vld [vmem:[%s352 + $0x98] sm:$0xff]
        %v433 = vld [vmem:[%s352 + $0xa0] sm:$0xff]
        %v434 = vld [vmem:[%s352 + $0xa8] sm:$0xff]
        %v435 = vld [vmem:[%s352 + $0xb0] sm:$0xff]
        %v436 = vld [vmem:[%s352 + $0xb8] sm:$0xff]
        %v437 = vld [vmem:[%s352 + $0xc0] sm:$0xff]
        %v438 = vld [vmem:[%s352 + $0xc8] sm:$0xff]
        %v439 = vld [vmem:[%s352 + $0xd0] sm:$0xff]
        %v440 = vld [vmem:[%s352 + $0xd8] sm:$0xff]
        %v441 = vld [vmem:[%s352 + $0xe0] sm:$0xff]
        %v442 = vld [vmem:[%s352 + $0xe8] sm:$0xff]
        %v443 = vld [vmem:[%s352 + $0xf0] sm:$0xff]
        %v444 = vld [vmem:[%s352 + $0xf8] sm:$0xff]
        %v445 = vld [vmem:[%s352 + $0x100] sm:$0xff]
        %v446 = vld [vmem:[%s352 + $0x108] sm:$0xff]
        %v447 = vld [vmem:[%s352 + $0x110] sm:$0xff]
        %v448 = vld [vmem:[%s352 + $0x118] sm:$0xff]
        %v449 = vld [vmem:[%s352 + $0x120] sm:$0xff]
        %v450 = vld [vmem:[%s352 + $0x128] sm:$0xff]
        %v451 = vld [vmem:[%s352 + $0x130] sm:$0xff]
        %v452 = vld [vmem:[%s352 + $0x138] sm:$0xff]
        %v453 = vld [vmem:[%s352 + $0x140] sm:$0xff]
        %v454 = vld [vmem:[%s352 + $0x148] sm:$0xff]
        %v455 = vld [vmem:[%s352 + $0x150] sm:$0xff]
        %v456 = vld [vmem:[%s352 + $0x158] sm:$0xff]
        %v457 = vld [vmem:[%s352 + $0x160] sm:$0xff]
        %v458 = vld [vmem:[%s352 + $0x168] sm:$0xff]
        %v459 = vld [vmem:[%s352 + $0x170] sm:$0xff]
        %v460 = vld [vmem:[%s352 + $0x178] sm:$0xff]
        %v461 = vld [vmem:[%s352 + $0x180] sm:$0xff]
        %v462 = vld [vmem:[%s352 + $0x188] sm:$0xff]
        %v463 = vld [vmem:[%s352 + $0x190] sm:$0xff]
        %v464 = vld [vmem:[%s352 + $0x198] sm:$0xff]
        %v465 = vld [vmem:[%s352 + $0x1a0] sm:$0xff]
        %v466 = vld [vmem:[%s352 + $0x1a8] sm:$0xff]
        %v467 = vld [vmem:[%s352 + $0x1b0] sm:$0xff]
        %v468 = vld [vmem:[%s352 + $0x1b8] sm:$0xff]
        %v469 = vld [vmem:[%s352 + $0x1c0] sm:$0xff]
        %v470 = vld [vmem:[%s352 + $0x1c8] sm:$0xff]
        %v471 = vld [vmem:[%s352 + $0x1d0] sm:$0xff]
        %v472 = vld [vmem:[%s352 + $0x1d8] sm:$0xff]
        %v473 = vld [vmem:[%s352 + $0x1e0] sm:$0xff]
        %v474 = vld [vmem:[%s352 + $0x1e8] sm:$0xff]
        %v475 = vld [vmem:[%s352 + $0x1f0] sm:$0xff]
        %v476 = vld [vmem:[%s352 + $0x1f8] sm:$0xff]
        %v477 = vld [vmem:[%s352 + $0x200] sm:$0xff]
        %v478 = vld [vmem:[%s352 + $0x208] sm:$0xff]
        %v479 = vld [vmem:[%s352 + $0x210] sm:$0xff]
        %v480 = vld [vmem:[%s352 + $0x218] sm:$0xff]
        %v481 = vld [vmem:[%s352 + $0x220] sm:$0xff]
        %v482 = vld [vmem:[%s352 + $0x228] sm:$0xff]
        %v483 = vld [vmem:[%s352 + $0x230] sm:$0xff]
        %v484 = vld [vmem:[%s352 + $0x238] sm:$0xff]
        %v485 = vld [vmem:[%s352 + $0x240] sm:$0xff]
        %v486 = vld [vmem:[%s352 + $0x248] sm:$0xff]
        %v487 = vld [vmem:[%s352 + $0x250] sm:$0xff]
        %v488 = vld [vmem:[%s352 + $0x258] sm:$0xff]
        %v489 = vld [vmem:[%s352 + $0x260] sm:$0xff]
        %v490 = vld [vmem:[%s352 + $0x268] sm:$0xff]
        %v491 = vld [vmem:[%s352 + $0x270] sm:$0xff]
        %v492 = vld [vmem:[%s352 + $0x278] sm:$0xff]
        %v493 = vld [vmem:[%s352 + $0x280] sm:$0xff]
        %v494 = vld [vmem:[%s352 + $0x288] sm:$0xff]
        %v495 = vld [vmem:[%s352 + $0x290] sm:$0xff]
        %v496 = vld [vmem:[%s352 + $0x298] sm:$0xff]
        %v497 = vld [vmem:[%s352 + $0x2a0] sm:$0xff]
        %v498 = vld [vmem:[%s352 + $0x2a8] sm:$0xff]
        %v499 = vld [vmem:[%s352 + $0x2b0] sm:$0xff]
        %v500 = vld [vmem:[%s352 + $0x2b8] sm:$0xff]
        %v501 = vld [vmem:[%s352 + $0x2c0] sm:$0xff]
        %v502 = vld [vmem:[%s352 + $0x2c8] sm:$0xff]
        %v503 = vld [vmem:[%s352 + $0x2d0] sm:$0xff]
        %v504 = vld [vmem:[%s352 + $0x2d8] sm:$0xff]
        %v505 = vld [vmem:[%s352 + $0x2e0] sm:$0xff]
        %v506 = vld [vmem:[%s352 + $0x2e8] sm:$0xff]
        %v507 = vld [vmem:[%s352 + $0x2f0] sm:$0xff]
        %v508 = vld [vmem:[%s352 + $0x2f8] sm:$0xff]
        %v509 = vld [vmem:[%s352 + $0x300] sm:$0xff]
        %v510 = vld [vmem:[%s352 + $0x308] sm:$0xff]
        %v511 = vld [vmem:[%s352 + $0x310] sm:$0xff]
        %v512 = vld [vmem:[%s352 + $0x318] sm:$0xff]
        %v513 = vld [vmem:[%s352 + $0x320] sm:$0xff]
        %v514 = vld [vmem:[%s352 + $0x328] sm:$0xff]
        %v515 = vld [vmem:[%s352 + $0x330] sm:$0xff]
        %v516 = vld [vmem:[%s352 + $0x338] sm:$0xff]
        %v517 = vld [vmem:[%s352 + $0x340] sm:$0xff]
        %v518 = vld [vmem:[%s352 + $0x348] sm:$0xff]
        %v519 = vld [vmem:[%s352 + $0x350] sm:$0xff]
        %v520 = vld [vmem:[%s352 + $0x358] sm:$0xff]
        %v521 = vld [vmem:[%s352 + $0x360] sm:$0xff]
        %v522 = vld [vmem:[%s352 + $0x368] sm:$0xff]
        %v523 = vld [vmem:[%s352 + $0x370] sm:$0xff]
        %v524 = vld [vmem:[%s352 + $0x378] sm:$0xff]
        %v525 = vld [vmem:[%s352 + $0x380] sm:$0xff]
        %v526 = vld [vmem:[%s352 + $0x388] sm:$0xff]
        %v527 = vld [vmem:[%s352 + $0x390] sm:$0xff]
        %v528 = vld [vmem:[%s352 + $0x398] sm:$0xff]
        %v529 = vld [vmem:[%s352 + $0x3a0] sm:$0xff]
        %v530 = vld [vmem:[%s352 + $0x3a8] sm:$0xff]
        %v531 = vld [vmem:[%s352 + $0x3b0] sm:$0xff]
        %v532 = vld [vmem:[%s352 + $0x3b8] sm:$0xff]
        %v533 = vld [vmem:[%s352 + $0x3c0] sm:$0xff]
        %v534 = vld [vmem:[%s352 + $0x3c8] sm:$0xff]
        %v535 = vld [vmem:[%s352 + $0x3d0] sm:$0xff]
        %v536 = vld [vmem:[%s352 + $0x3d8] sm:$0xff]
        %v537 = vld [vmem:[%s352 + $0x3e0] sm:$0xff]
        %v538 = vld [vmem:[%s352 + $0x3e8] sm:$0xff]
        %v539 = vld [vmem:[%s352 + $0x3f0] sm:$0xff]
        %v540 = vld [vmem:[%s352 + $0x3f8] sm:$0xff]
        %v541 = vmul.f32 %v413, %v413
        %v542 = vmul.f32 %v414, %v414
        %v543 = vmul.f32 %v415, %v415
        %v544 = vmul.f32 %v416, %v416
        %v545 = vmul.f32 %v417, %v417
        %v546 = vmul.f32 %v418, %v418
        %v547 = vmul.f32 %v419, %v419
        %v548 = vmul.f32 %v420, %v420
        %v549 = vmul.f32 %v421, %v421
        %v550 = vmul.f32 %v422, %v422
        %v551 = vmul.f32 %v423, %v423
        %v552 = vmul.f32 %v424, %v424
        %v553 = vmul.f32 %v425, %v425
        %v554 = vmul.f32 %v426, %v426
        %v555 = vmul.f32 %v427, %v427
        %v556 = vmul.f32 %v428, %v428
        %v557 = vmul.f32 %v429, %v429
        %v558 = vmul.f32 %v430, %v430
        %v559 = vmul.f32 %v431, %v431
        %v560 = vmul.f32 %v432, %v432
        %v561 = vmul.f32 %v433, %v433
        %v562 = vmul.f32 %v434, %v434
        %v563 = vmul.f32 %v435, %v435
        %v564 = vmul.f32 %v436, %v436
        %v565 = vmul.f32 %v437, %v437
        %v566 = vmul.f32 %v438, %v438
        %v567 = vmul.f32 %v439, %v439
        %v568 = vmul.f32 %v440, %v440
        %v569 = vmul.f32 %v441, %v441
        %v570 = vmul.f32 %v442, %v442
        %v571 = vmul.f32 %v443, %v443
        %v572 = vmul.f32 %v444, %v444
        %v573 = vmul.f32 %v445, %v445
        %v574 = vmul.f32 %v446, %v446
        %v575 = vmul.f32 %v447, %v447
        %v576 = vmul.f32 %v448, %v448
        %v577 = vmul.f32 %v449, %v449
        %v578 = vmul.f32 %v450, %v450
        %v579 = vmul.f32 %v451, %v451
        %v580 = vmul.f32 %v452, %v452
        %v581 = vmul.f32 %v453, %v453
        %v582 = vmul.f32 %v454, %v454
        %v583 = vmul.f32 %v455, %v455
        %v584 = vmul.f32 %v456, %v456
        %v585 = vmul.f32 %v457, %v457
        %v586 = vmul.f32 %v458, %v458
        %v587 = vmul.f32 %v459, %v459
        %v588 = vmul.f32 %v460, %v460
        %v589 = vmul.f32 %v461, %v461
        %v590 = vmul.f32 %v462, %v462
        %v591 = vmul.f32 %v463, %v463
        %v592 = vmul.f32 %v464, %v464
        %v593 = vmul.f32 %v465, %v465
        %v594 = vmul.f32 %v466, %v466
        %v595 = vmul.f32 %v467, %v467
        %v596 = vmul.f32 %v468, %v468
        %v597 = vmul.f32 %v469, %v469
        %v598 = vmul.f32 %v470, %v470
        %v599 = vmul.f32 %v471, %v471
        %v600 = vmul.f32 %v472, %v472
        %v601 = vmul.f32 %v473, %v473
        %v602 = vmul.f32 %v474, %v474
        %v603 = vmul.f32 %v475, %v475
        %v604 = vmul.f32 %v476, %v476
        %v605 = vmul.f32 %v477, %v477
        %v606 = vmul.f32 %v478, %v478
        %v607 = vmul.f32 %v479, %v479
        %v608 = vmul.f32 %v480, %v480
        %v609 = vmul.f32 %v481, %v481
        %v610 = vmul.f32 %v482, %v482
        %v611 = vmul.f32 %v483, %v483
        %v612 = vmul.f32 %v484, %v484
        %v613 = vmul.f32 %v485, %v485
        %v614 = vmul.f32 %v486, %v486
        %v615 = vmul.f32 %v487, %v487
        %v616 = vmul.f32 %v488, %v488
        %v617 = vmul.f32 %v489, %v489
        %v618 = vmul.f32 %v490, %v490
        %v619 = vmul.f32 %v491, %v491
        %v620 = vmul.f32 %v492, %v492
        %v621 = vmul.f32 %v493, %v493
        %v622 = vmul.f32 %v494, %v494
        %v623 = vmul.f32 %v495, %v495
        %v624 = vmul.f32 %v496, %v496
        %v625 = vmul.f32 %v497, %v497
        %v626 = vmul.f32 %v498, %v498
        %v627 = vmul.f32 %v499, %v499
        %v628 = vmul.f32 %v500, %v500
        %v629 = vmul.f32 %v501, %v501
        %v630 = vmul.f32 %v502, %v502
        %v631 = vmul.f32 %v503, %v503
        %v632 = vmul.f32 %v504, %v504
        %v633 = vmul.f32 %v505, %v505
        %v634 = vmul.f32 %v506, %v506
        %v635 = vmul.f32 %v507, %v507
        %v636 = vmul.f32 %v508, %v508
        %v637 = vmul.f32 %v509, %v509
        %v638 = vmul.f32 %v510, %v510
        %v639 = vmul.f32 %v511, %v511
        %v640 = vmul.f32 %v512, %v512
        %v641 = vmul.f32 %v513, %v513
        %v642 = vmul.f32 %v514, %v514
        %v643 = vmul.f32 %v515, %v515
        %v644 = vmul.f32 %v516, %v516
        %v645 = vmul.f32 %v517, %v517
        %v646 = vmul.f32 %v518, %v518
        %v647 = vmul.f32 %v519, %v519
        %v648 = vmul.f32 %v520, %v520
        %v649 = vmul.f32 %v521, %v521
        %v650 = vmul.f32 %v522, %v522
        %v651 = vmul.f32 %v523, %v523
        %v652 = vmul.f32 %v524, %v524
        %v653 = vmul.f32 %v525, %v525
        %v654 = vmul.f32 %v526, %v526
        %v655 = vmul.f32 %v527, %v527
        %v656 = vmul.f32 %v528, %v528
        %v657 = vmul.f32 %v529, %v529
        %v658 = vmul.f32 %v530, %v530
        %v659 = vmul.f32 %v531, %v531
        %v660 = vmul.f32 %v532, %v532
        %v661 = vmul.f32 %v533, %v533
        %v662 = vmul.f32 %v534, %v534
        %v663 = vmul.f32 %v535, %v535
        %v664 = vmul.f32 %v536, %v536
        %v665 = vmul.f32 %v537, %v537
        %v666 = vmul.f32 %v538, %v538
        %v667 = vmul.f32 %v539, %v539
        %v668 = vmul.f32 %v540, %v540
        %v669 = vadd.f32 %v541, %v542
        %670 = vadd.xlane.f32.xlu0 %v669
        %v671 = vpop.xlane.xlu0 %670
        %v672 = vadd.f32 %v543, %v544
        %673 = vadd.xlane.f32.xlu0 %v672
        %v674 = vpop.xlane.xlu0 %673
        %v675 = vadd.f32 %v545, %v546
        %676 = vadd.xlane.f32.xlu0 %v675
        %v677 = vpop.xlane.xlu0 %676
        %v678 = vadd.f32 %v547, %v548
        %679 = vadd.xlane.f32.xlu0 %v678
        %v680 = vpop.xlane.xlu0 %679
        %v681 = vadd.f32 %v549, %v550
        %682 = vadd.xlane.f32.xlu0 %v681
        %v683 = vpop.xlane.xlu0 %682
        %v684 = vadd.f32 %v551, %v552
        %685 = vadd.xlane.f32.xlu0 %v684
        %v686 = vpop.xlane.xlu0 %685
        %v687 = vadd.f32 %v553, %v554
        %688 = vadd.xlane.f32.xlu0 %v687
        %v689 = vpop.xlane.xlu0 %688
        %v690 = vadd.f32 %v555, %v556
        %691 = vadd.xlane.f32.xlu0 %v690
        %v692 = vpop.xlane.xlu0 %691
        %v693 = vadd.f32 %v557, %v558
        %694 = vadd.xlane.f32.xlu0 %v693
        %v695 = vpop.xlane.xlu0 %694
        %v696 = vadd.f32 %v559, %v560
        %697 = vadd.xlane.f32.xlu0 %v696
        %v698 = vpop.xlane.xlu0 %697
        %v699 = vadd.f32 %v561, %v562
        %700 = vadd.xlane.f32.xlu0 %v699
        %v701 = vpop.xlane.xlu0 %700
        %v702 = vadd.f32 %v563, %v564
        %703 = vadd.xlane.f32.xlu0 %v702
        %v704 = vpop.xlane.xlu0 %703
        %v705 = vadd.f32 %v565, %v566
        %706 = vadd.xlane.f32.xlu0 %v705
        %v707 = vpop.xlane.xlu0 %706
        %v708 = vadd.f32 %v567, %v568
        %709 = vadd.xlane.f32.xlu0 %v708
        %v710 = vpop.xlane.xlu0 %709
        %v711 = vadd.f32 %v569, %v570
        %712 = vadd.xlane.f32.xlu0 %v711
        %v713 = vpop.xlane.xlu0 %712
        %v714 = vadd.f32 %v571, %v572
        %715 = vadd.xlane.f32.xlu0 %v714
        %v716 = vpop.xlane.xlu0 %715
        %v717 = vadd.f32 %v573, %v574
        %718 = vadd.xlane.f32.xlu0 %v717
        %v719 = vpop.xlane.xlu0 %718
        %v720 = vadd.f32 %v575, %v576
        %721 = vadd.xlane.f32.xlu0 %v720
        %v722 = vpop.xlane.xlu0 %721
        %v723 = vadd.f32 %v577, %v578
        %724 = vadd.xlane.f32.xlu0 %v723
        %v725 = vpop.xlane.xlu0 %724
        %v726 = vadd.f32 %v579, %v580
        %727 = vadd.xlane.f32.xlu0 %v726
        %v728 = vpop.xlane.xlu0 %727
        %v729 = vadd.f32 %v581, %v582
        %730 = vadd.xlane.f32.xlu0 %v729
        %v731 = vpop.xlane.xlu0 %730
        %v732 = vadd.f32 %v583, %v584
        %733 = vadd.xlane.f32.xlu0 %v732
        %v734 = vpop.xlane.xlu0 %733
        %v735 = vadd.f32 %v585, %v586
        %736 = vadd.xlane.f32.xlu0 %v735
        %v737 = vpop.xlane.xlu0 %736
        %v738 = vadd.f32 %v587, %v588
        %739 = vadd.xlane.f32.xlu0 %v738
        %v740 = vpop.xlane.xlu0 %739
        %v741 = vadd.f32 %v589, %v590
        %742 = vadd.xlane.f32.xlu0 %v741
        %v743 = vpop.xlane.xlu0 %742
        %v744 = vadd.f32 %v591, %v592
        %745 = vadd.xlane.f32.xlu0 %v744
        %v746 = vpop.xlane.xlu0 %745
        %v747 = vadd.f32 %v593, %v594
        %748 = vadd.xlane.f32.xlu0 %v747
        %v749 = vpop.xlane.xlu0 %748
        %v750 = vadd.f32 %v595, %v596
        %751 = vadd.xlane.f32.xlu0 %v750
        %v752 = vpop.xlane.xlu0 %751
        %v753 = vadd.f32 %v597, %v598
        %754 = vadd.xlane.f32.xlu0 %v753
        %v755 = vpop.xlane.xlu0 %754
        %v756 = vadd.f32 %v599, %v600
        %757 = vadd.xlane.f32.xlu0 %v756
        %v758 = vpop.xlane.xlu0 %757
        %v759 = vadd.f32 %v601, %v602
        %760 = vadd.xlane.f32.xlu0 %v759
        %v761 = vpop.xlane.xlu0 %760
        %v762 = vadd.f32 %v603, %v604
        %763 = vadd.xlane.f32.xlu0 %v762
        %v764 = vpop.xlane.xlu0 %763
        %v765 = vadd.f32 %v605, %v606
        %766 = vadd.xlane.f32.xlu0 %v765
        %v767 = vpop.xlane.xlu0 %766
        %v768 = vadd.f32 %v607, %v608
        %769 = vadd.xlane.f32.xlu0 %v768
        %v770 = vpop.xlane.xlu0 %769
        %v771 = vadd.f32 %v609, %v610
        %772 = vadd.xlane.f32.xlu0 %v771
        %v773 = vpop.xlane.xlu0 %772
        %v774 = vadd.f32 %v611, %v612
        %775 = vadd.xlane.f32.xlu0 %v774
        %v776 = vpop.xlane.xlu0 %775
        %v777 = vadd.f32 %v613, %v614
        %778 = vadd.xlane.f32.xlu0 %v777
        %v779 = vpop.xlane.xlu0 %778
        %v780 = vadd.f32 %v615, %v616
        %781 = vadd.xlane.f32.xlu0 %v780
        %v782 = vpop.xlane.xlu0 %781
        %v783 = vadd.f32 %v617, %v618
        %784 = vadd.xlane.f32.xlu0 %v783
        %v785 = vpop.xlane.xlu0 %784
        %v786 = vadd.f32 %v619, %v620
        %787 = vadd.xlane.f32.xlu0 %v786
        %v788 = vpop.xlane.xlu0 %787
        %v789 = vadd.f32 %v621, %v622
        %790 = vadd.xlane.f32.xlu0 %v789
        %v791 = vpop.xlane.xlu0 %790
        %v792 = vadd.f32 %v623, %v624
        %793 = vadd.xlane.f32.xlu0 %v792
        %v794 = vpop.xlane.xlu0 %793
        %v795 = vadd.f32 %v625, %v626
        %796 = vadd.xlane.f32.xlu0 %v795
        %v797 = vpop.xlane.xlu0 %796
        %v798 = vadd.f32 %v627, %v628
        %799 = vadd.xlane.f32.xlu0 %v798
        %v800 = vpop.xlane.xlu0 %799
        %v801 = vadd.f32 %v629, %v630
        %802 = vadd.xlane.f32.xlu0 %v801
        %v803 = vpop.xlane.xlu0 %802
        %v804 = vadd.f32 %v631, %v632
        %805 = vadd.xlane.f32.xlu0 %v804
        %v806 = vpop.xlane.xlu0 %805
        %v807 = vadd.f32 %v633, %v634
        %808 = vadd.xlane.f32.xlu0 %v807
        %v809 = vpop.xlane.xlu0 %808
        %v810 = vadd.f32 %v635, %v636
        %811 = vadd.xlane.f32.xlu0 %v810
        %v812 = vpop.xlane.xlu0 %811
        %v813 = vadd.f32 %v637, %v638
        %814 = vadd.xlane.f32.xlu0 %v813
        %v815 = vpop.xlane.xlu0 %814
        %v816 = vadd.f32 %v639, %v640
        %817 = vadd.xlane.f32.xlu0 %v816
        %v818 = vpop.xlane.xlu0 %817
        %v819 = vadd.f32 %v641, %v642
        %820 = vadd.xlane.f32.xlu0 %v819
        %v821 = vpop.xlane.xlu0 %820
        %v822 = vadd.f32 %v643, %v644
        %823 = vadd.xlane.f32.xlu0 %v822
        %v824 = vpop.xlane.xlu0 %823
        %v825 = vadd.f32 %v645, %v646
        %826 = vadd.xlane.f32.xlu0 %v825
        %v827 = vpop.xlane.xlu0 %826
        %v828 = vadd.f32 %v647, %v648
        %829 = vadd.xlane.f32.xlu0 %v828
        %v830 = vpop.xlane.xlu0 %829
        %v831 = vadd.f32 %v649, %v650
        %832 = vadd.xlane.f32.xlu0 %v831
        %v833 = vpop.xlane.xlu0 %832
        %v834 = vadd.f32 %v651, %v652
        %835 = vadd.xlane.f32.xlu0 %v834
        %v836 = vpop.xlane.xlu0 %835
        %v837 = vadd.f32 %v653, %v654
        %838 = vadd.xlane.f32.xlu0 %v837
        %v839 = vpop.xlane.xlu0 %838
        %v840 = vadd.f32 %v655, %v656
        %841 = vadd.xlane.f32.xlu0 %v840
        %v842 = vpop.xlane.xlu0 %841
        %v843 = vadd.f32 %v657, %v658
        %844 = vadd.xlane.f32.xlu0 %v843
        %v845 = vpop.xlane.xlu0 %844
        %v846 = vadd.f32 %v659, %v660
        %847 = vadd.xlane.f32.xlu0 %v846
        %v848 = vpop.xlane.xlu0 %847
        %v849 = vadd.f32 %v661, %v662
        %850 = vadd.xlane.f32.xlu0 %v849
        %v851 = vpop.xlane.xlu0 %850
        %v852 = vadd.f32 %v663, %v664
        %853 = vadd.xlane.f32.xlu0 %v852
        %v854 = vpop.xlane.xlu0 %853
        %v855 = vadd.f32 %v665, %v666
        %856 = vadd.xlane.f32.xlu0 %v855
        %v857 = vpop.xlane.xlu0 %856
        %v858 = vadd.f32 %v667, %v668
        %859 = vadd.xlane.f32.xlu0 %v858
        %v860 = vpop.xlane.xlu0 %859
        %v861 = vmax.f32 %v671, 1e-24
        %v862 = vmax.f32 %v674, 1e-24
        %v863 = vmax.f32 %v677, 1e-24
        %v864 = vmax.f32 %v680, 1e-24
        %v865 = vmax.f32 %v683, 1e-24
        %v866 = vmax.f32 %v686, 1e-24
        %v867 = vmax.f32 %v689, 1e-24
        %v868 = vmax.f32 %v692, 1e-24
        %v869 = vmax.f32 %v695, 1e-24
        %v870 = vmax.f32 %v698, 1e-24
        %v871 = vmax.f32 %v701, 1e-24
        %v872 = vmax.f32 %v704, 1e-24
        %v873 = vmax.f32 %v707, 1e-24
        %v874 = vmax.f32 %v710, 1e-24
        %v875 = vmax.f32 %v713, 1e-24
        %v876 = vmax.f32 %v716, 1e-24
        %v877 = vmax.f32 %v719, 1e-24
        %v878 = vmax.f32 %v722, 1e-24
        %v879 = vmax.f32 %v725, 1e-24
        %v880 = vmax.f32 %v728, 1e-24
        %v881 = vmax.f32 %v731, 1e-24
        %v882 = vmax.f32 %v734, 1e-24
        %v883 = vmax.f32 %v737, 1e-24
        %v884 = vmax.f32 %v740, 1e-24
        %v885 = vmax.f32 %v743, 1e-24
        %v886 = vmax.f32 %v746, 1e-24
        %v887 = vmax.f32 %v749, 1e-24
        %v888 = vmax.f32 %v752, 1e-24
        %v889 = vmax.f32 %v755, 1e-24
        %v890 = vmax.f32 %v758, 1e-24
        %v891 = vmax.f32 %v761, 1e-24
        %v892 = vmax.f32 %v764, 1e-24
        %v893 = vmax.f32 %v767, 1e-24
        %v894 = vmax.f32 %v770, 1e-24
        %v895 = vmax.f32 %v773, 1e-24
        %v896 = vmax.f32 %v776, 1e-24
        %v897 = vmax.f32 %v779, 1e-24
        %v898 = vmax.f32 %v782, 1e-24
        %v899 = vmax.f32 %v785, 1e-24
        %v900 = vmax.f32 %v788, 1e-24
        %v901 = vmax.f32 %v791, 1e-24
        %v902 = vmax.f32 %v794, 1e-24
        %v903 = vmax.f32 %v797, 1e-24
        %v904 = vmax.f32 %v800, 1e-24
        %v905 = vmax.f32 %v803, 1e-24
        %v906 = vmax.f32 %v806, 1e-24
        %v907 = vmax.f32 %v809, 1e-24
        %v908 = vmax.f32 %v812, 1e-24
        %v909 = vmax.f32 %v815, 1e-24
        %v910 = vmax.f32 %v818, 1e-24
        %v911 = vmax.f32 %v821, 1e-24
        %v912 = vmax.f32 %v824, 1e-24
        %v913 = vmax.f32 %v827, 1e-24
        %v914 = vmax.f32 %v830, 1e-24
        %v915 = vmax.f32 %v833, 1e-24
        %v916 = vmax.f32 %v836, 1e-24
        %v917 = vmax.f32 %v839, 1e-24
        %v918 = vmax.f32 %v842, 1e-24
        %v919 = vmax.f32 %v845, 1e-24
        %v920 = vmax.f32 %v848, 1e-24
        %v921 = vmax.f32 %v851, 1e-24
        %v922 = vmax.f32 %v854, 1e-24
        %v923 = vmax.f32 %v857, 1e-24
        %v924 = vmax.f32 %v860, 1e-24
        %v925 = vrsqrt.pop %v861
        %v926 = vrsqrt.pop %v862
        %v927 = vrsqrt.pop %v863
        %v928 = vrsqrt.pop %v864
        %v929 = vrsqrt.pop %v865
        %v930 = vrsqrt.pop %v866
        %v931 = vrsqrt.pop %v867
        %v932 = vrsqrt.pop %v868
        %v933 = vrsqrt.pop %v869
        %v934 = vrsqrt.pop %v870
        %v935 = vrsqrt.pop %v871
        %v936 = vrsqrt.pop %v872
        %v937 = vrsqrt.pop %v873
        %v938 = vrsqrt.pop %v874
        %v939 = vrsqrt.pop %v875
        %v940 = vrsqrt.pop %v876
        %v941 = vrsqrt.pop %v877
        %v942 = vrsqrt.pop %v878
        %v943 = vrsqrt.pop %v879
        %v944 = vrsqrt.pop %v880
        %v945 = vrsqrt.pop %v881
        %v946 = vrsqrt.pop %v882
        %v947 = vrsqrt.pop %v883
        %v948 = vrsqrt.pop %v884
        %v949 = vrsqrt.pop %v885
        %v950 = vrsqrt.pop %v886
        %v951 = vrsqrt.pop %v887
        %v952 = vrsqrt.pop %v888
        %v953 = vrsqrt.pop %v889
        %v954 = vrsqrt.pop %v890
        %v955 = vrsqrt.pop %v891
        %v956 = vrsqrt.pop %v892
        %v957 = vrsqrt.pop %v893
        %v958 = vrsqrt.pop %v894
        %v959 = vrsqrt.pop %v895
        %v960 = vrsqrt.pop %v896
        %v961 = vrsqrt.pop %v897
        %v962 = vrsqrt.pop %v898
        %v963 = vrsqrt.pop %v899
        %v964 = vrsqrt.pop %v900
        %v965 = vrsqrt.pop %v901
        %v966 = vrsqrt.pop %v902
        %v967 = vrsqrt.pop %v903
        %v968 = vrsqrt.pop %v904
        %v969 = vrsqrt.pop %v905
        %v970 = vrsqrt.pop %v906
        %v971 = vrsqrt.pop %v907
        %v972 = vrsqrt.pop %v908
        %v973 = vrsqrt.pop %v909
        %v974 = vrsqrt.pop %v910
        %v975 = vrsqrt.pop %v911
        %v976 = vrsqrt.pop %v912
        %v977 = vrsqrt.pop %v913
        %v978 = vrsqrt.pop %v914
        %v979 = vrsqrt.pop %v915
        %v980 = vrsqrt.pop %v916
        %v981 = vrsqrt.pop %v917
        %v982 = vrsqrt.pop %v918
        %v983 = vrsqrt.pop %v919
        %v984 = vrsqrt.pop %v920
        %v985 = vrsqrt.pop %v921
        %v986 = vrsqrt.pop %v922
        %v987 = vrsqrt.pop %v923
        %v988 = vrsqrt.pop %v924
        %v989 = vpack.c.bf16 %v415, %v413
        %v990 = vpack.c.bf16 %v416, %v414
        %v991 = vpack.c.bf16 %v419, %v417
        %v992 = vpack.c.bf16 %v420, %v418
        %v993 = vpack.c.bf16 %v423, %v421
        %v994 = vpack.c.bf16 %v424, %v422
        %v995 = vpack.c.bf16 %v427, %v425
        %v996 = vpack.c.bf16 %v428, %v426
        %v997 = vpack.c.bf16 %v431, %v429
        %v998 = vpack.c.bf16 %v432, %v430
        %v999 = vpack.c.bf16 %v435, %v433
        %v1000 = vpack.c.bf16 %v436, %v434
        %v1001 = vpack.c.bf16 %v439, %v437
        %v1002 = vpack.c.bf16 %v440, %v438
        %v1003 = vpack.c.bf16 %v443, %v441
        %v1004 = vpack.c.bf16 %v444, %v442
        %v1005 = vpack.c.bf16 %v447, %v445
        %v1006 = vpack.c.bf16 %v448, %v446
        %v1007 = vpack.c.bf16 %v451, %v449
        %v1008 = vpack.c.bf16 %v452, %v450
        %v1009 = vpack.c.bf16 %v455, %v453
        %v1010 = vpack.c.bf16 %v456, %v454
        %v1011 = vpack.c.bf16 %v459, %v457
        %v1012 = vpack.c.bf16 %v460, %v458
        %v1013 = vpack.c.bf16 %v463, %v461
        %v1014 = vpack.c.bf16 %v464, %v462
        %v1015 = vpack.c.bf16 %v467, %v465
        %v1016 = vpack.c.bf16 %v468, %v466
        %v1017 = vpack.c.bf16 %v471, %v469
        %v1018 = vpack.c.bf16 %v472, %v470
        %v1019 = vpack.c.bf16 %v475, %v473
        %v1020 = vpack.c.bf16 %v476, %v474
        %v1021 = vpack.c.bf16 %v479, %v477
        %v1022 = vpack.c.bf16 %v480, %v478
        %v1023 = vpack.c.bf16 %v483, %v481
        %v1024 = vpack.c.bf16 %v484, %v482
        %v1025 = vpack.c.bf16 %v487, %v485
        %v1026 = vpack.c.bf16 %v488, %v486
        %v1027 = vpack.c.bf16 %v491, %v489
        %v1028 = vpack.c.bf16 %v492, %v490
        %v1029 = vpack.c.bf16 %v495, %v493
        %v1030 = vpack.c.bf16 %v496, %v494
        %v1031 = vpack.c.bf16 %v499, %v497
        %v1032 = vpack.c.bf16 %v500, %v498
        %v1033 = vpack.c.bf16 %v503, %v501
        %v1034 = vpack.c.bf16 %v504, %v502
        %v1035 = vpack.c.bf16 %v507, %v505
        %v1036 = vpack.c.bf16 %v508, %v506
        %v1037 = vpack.c.bf16 %v511, %v509
        %v1038 = vpack.c.bf16 %v512, %v510
        %v1039 = vpack.c.bf16 %v515, %v513
        %v1040 = vpack.c.bf16 %v516, %v514
        %v1041 = vpack.c.bf16 %v519, %v517
        %v1042 = vpack.c.bf16 %v520, %v518
        %v1043 = vpack.c.bf16 %v523, %v521
        %v1044 = vpack.c.bf16 %v524, %v522
        %v1045 = vpack.c.bf16 %v527, %v525
        %v1046 = vpack.c.bf16 %v528, %v526
        %v1047 = vpack.c.bf16 %v531, %v529
        %v1048 = vpack.c.bf16 %v532, %v530
        %v1049 = vpack.c.bf16 %v535, %v533
        %v1050 = vpack.c.bf16 %v536, %v534
        %v1051 = vpack.c.bf16 %v539, %v537
        %v1052 = vpack.c.bf16 %v540, %v538
        %v1053 = vld [vmem:[#allocation5] sm:$0xf]
        %v1054 = vld [vmem:[#allocation5 + $0x4] sm:$0xf]
        %v1055 = vld [vmem:[#allocation5 + $0x8] sm:$0xf]
        %v1056 = vld [vmem:[#allocation5 + $0xc] sm:$0xf]
        %v1057 = vld [vmem:[#allocation5 + $0x10] sm:$0xf]
        %v1058 = vld [vmem:[#allocation5 + $0x14] sm:$0xf]
        %v1059 = vld [vmem:[#allocation5 + $0x18] sm:$0xf]
        %v1060 = vld [vmem:[#allocation5 + $0x1c] sm:$0xf]
        %v1061 = vld [vmem:[#allocation5 + $0x20] sm:$0xf]
        %v1062 = vld [vmem:[#allocation5 + $0x24] sm:$0xf]
        %v1063 = vld [vmem:[#allocation5 + $0x28] sm:$0xf]
        %v1064 = vld [vmem:[#allocation5 + $0x2c] sm:$0xf]
        %v1065 = vld [vmem:[#allocation5 + $0x30] sm:$0xf]
        %v1066 = vld [vmem:[#allocation5 + $0x34] sm:$0xf]
        %v1067 = vld [vmem:[#allocation5 + $0x38] sm:$0xf]
        %v1068 = vld [vmem:[#allocation5 + $0x3c] sm:$0xf]
        %v1069 = vld [vmem:[#allocation5 + $0x40] sm:$0xf]
        %v1070 = vld [vmem:[#allocation5 + $0x44] sm:$0xf]
        %v1071 = vld [vmem:[#allocation5 + $0x48] sm:$0xf]
        %v1072 = vld [vmem:[#allocation5 + $0x4c] sm:$0xf]
        %v1073 = vld [vmem:[#allocation5 + $0x50] sm:$0xf]
        %v1074 = vld [vmem:[#allocation5 + $0x54] sm:$0xf]
        %v1075 = vld [vmem:[#allocation5 + $0x58] sm:$0xf]
        %v1076 = vld [vmem:[#allocation5 + $0x5c] sm:$0xf]
        %v1077 = vld [vmem:[#allocation5 + $0x60] sm:$0xf]
        %v1078 = vld [vmem:[#allocation5 + $0x64] sm:$0xf]
        %v1079 = vld [vmem:[#allocation5 + $0x68] sm:$0xf]
        %v1080 = vld [vmem:[#allocation5 + $0x6c] sm:$0xf]
        %v1081 = vld [vmem:[#allocation5 + $0x70] sm:$0xf]
        %v1082 = vld [vmem:[#allocation5 + $0x74] sm:$0xf]
        %v1083 = vld [vmem:[#allocation5 + $0x78] sm:$0xf]
        %v1084 = vld [vmem:[#allocation5 + $0x7c] sm:$0xf]
        %v1117 = vunpack.c.l.b16 %v1053
        %v1118 = vunpack.c.l.b16 %v1054
        %v1119 = vunpack.c.l.b16 %v1055
        %v1120 = vunpack.c.l.b16 %v1056
        %v1121 = vunpack.c.l.b16 %v1057
        %v1122 = vunpack.c.l.b16 %v1058
        %v1123 = vunpack.c.l.b16 %v1059
        %v1124 = vunpack.c.l.b16 %v1060
        %v1125 = vunpack.c.l.b16 %v1061
        %v1126 = vunpack.c.l.b16 %v1062
        %v1127 = vunpack.c.l.b16 %v1063
        %v1128 = vunpack.c.l.b16 %v1064
        %v1129 = vunpack.c.l.b16 %v1065
        %v1130 = vunpack.c.l.b16 %v1066
        %v1131 = vunpack.c.l.b16 %v1067
        %v1132 = vunpack.c.l.b16 %v1068
        %v1133 = vunpack.c.l.b16 %v1069
        %v1134 = vunpack.c.l.b16 %v1070
        %v1135 = vunpack.c.l.b16 %v1071
        %v1136 = vunpack.c.l.b16 %v1072
        %v1137 = vunpack.c.l.b16 %v1073
        %v1138 = vunpack.c.l.b16 %v1074
        %v1139 = vunpack.c.l.b16 %v1075
        %v1140 = vunpack.c.l.b16 %v1076
        %v1141 = vunpack.c.l.b16 %v1077
        %v1142 = vunpack.c.l.b16 %v1078
        %v1143 = vunpack.c.l.b16 %v1079
        %v1144 = vunpack.c.l.b16 %v1080
        %v1145 = vunpack.c.l.b16 %v1081
        %v1146 = vunpack.c.l.b16 %v1082
        %v1147 = vunpack.c.l.b16 %v1083
        %v1148 = vunpack.c.l.b16 %v1084
        %v1149 = vpack.c.b16 %v1118, %v1117
        %v1150 = vpack.c.b16 %v1120, %v1119
        %v1151 = vpack.c.b16 %v1122, %v1121
        %v1152 = vpack.c.b16 %v1124, %v1123
        %v1153 = vpack.c.b16 %v1126, %v1125
        %v1154 = vpack.c.b16 %v1128, %v1127
        %v1155 = vpack.c.b16 %v1130, %v1129
        %v1156 = vpack.c.b16 %v1132, %v1131
        %v1157 = vpack.c.b16 %v1134, %v1133
        %v1158 = vpack.c.b16 %v1136, %v1135
        %v1159 = vpack.c.b16 %v1138, %v1137
        %v1160 = vpack.c.b16 %v1140, %v1139
        %v1161 = vpack.c.b16 %v1142, %v1141
        %v1162 = vpack.c.b16 %v1144, %v1143
        %v1163 = vpack.c.b16 %v1146, %v1145
        %v1164 = vpack.c.b16 %v1148, %v1147
        %1181 = vmatprep.subr.bf16.mxu0 0
        %1182 = vmatpush1.bf16.msra.mxu0 %v1149
        %1183 = vmatprep.subr.bf16.mxu0 0
        %1184 = vmatpush1.bf16.msra.mxu0 %v1150
        %1185 = vmatprep.subr.bf16.mxu0 0
        %1186 = vmatpush1.bf16.msra.mxu0 %v1151
        %1187 = vmatprep.subr.bf16.mxu0 0
        %1188 = vmatpush1.bf16.msra.mxu0 %v1152
        %1189 = vmatprep.subr.bf16.mxu0 0
        %1190 = vmatpush1.bf16.msra.mxu0 %v1153
        %1191 = vmatprep.subr.bf16.mxu0 0
        %1192 = vmatpush1.bf16.msra.mxu0 %v1154
        %1193 = vmatprep.subr.bf16.mxu0 0
        %1194 = vmatpush1.bf16.msra.mxu0 %v1155
        %1195 = vmatprep.subr.bf16.mxu0 0
        %1196 = vmatpush1.bf16.msra.mxu0 %v1156
        %1197 = vmatprep.subr.bf16.mxu0 0
        %1198 = vmatpush1.bf16.msra.mxu0 %v1157
        %1199 = vmatprep.subr.bf16.mxu0 0
        %1200 = vmatpush1.bf16.msra.mxu0 %v1158
        %1201 = vmatprep.subr.bf16.mxu0 0
        %1202 = vmatpush1.bf16.msra.mxu0 %v1159
        %1203 = vmatprep.subr.bf16.mxu0 0
        %1204 = vmatpush1.bf16.msra.mxu0 %v1160
        %1205 = vmatprep.subr.bf16.mxu0 0
        %1206 = vmatpush1.bf16.msra.mxu0 %v1161
        %1207 = vmatprep.subr.bf16.mxu0 0
        %1208 = vmatpush1.bf16.msra.mxu0 %v1162
        %1209 = vmatprep.subr.bf16.mxu0 0
        %1210 = vmatpush1.bf16.msra.mxu0 %v1163
        %1211 = vmatprep.subr.bf16.mxu0 0
        %1212 = vmatpush1.bf16.msra.mxu0 %v1164
        %1213 = vmatprep.mubr.bf16.mxu0 %v990
        %1214 = vmatmul.mubr.bf16.gmra.mrb[0].mxu0 %v989
        %v1215 = vpop.f32.mrb[0].mxu0
        %v1216 = vadd.f32 0.0, %v1215
        %v1217 = vpop.f32.mrb[0].mxu0
        %v1218 = vpop.f32.mrb[0].mxu0
        %v1219 = vadd.f32 0.0, %v1218
        %v1220 = vpop.f32.mrb[0].mxu0
        %1221 = vmatprep.mubr.bf16.mxu0 %v992
        %1222 = vmatmul.mubr.bf16.gmra.mrb[0].mxu0 %v991
        %v1223 = vpop.f32.mrb[0].mxu0
        %v1224 = vadd.f32 0.0, %v1223
        %v1225 = vpop.f32.mrb[0].mxu0
        %v1226 = vpop.f32.mrb[0].mxu0
        %v1227 = vadd.f32 0.0, %v1226
        %v1228 = vpop.f32.mrb[0].mxu0
        %1229 = vmatprep.mubr.bf16.mxu0 %v994
        %1230 = vmatmul.mubr.bf16.gmra.mrb[0].mxu0 %v993
        %v1231 = vpop.f32.mrb[0].mxu0
        %v1232 = vadd.f32 0.0, %v1231
        %v1233 = vpop.f32.mrb[0].mxu0
        %v1234 = vpop.f32.mrb[0].mxu0
        %v1235 = vadd.f32 0.0, %v1234
        %v1236 = vpop.f32.mrb[0].mxu0
        %1237 = vmatprep.mubr.bf16.mxu0 %v996
        %1238 = vmatmul.mubr.bf16.gmra.mrb[0].mxu0 %v995
        %v1239 = vpop.f32.mrb[0].mxu0
        %v1240 = vadd.f32 0.0, %v1239
        %v1241 = vpop.f32.mrb[0].mxu0
        %v1242 = vpop.f32.mrb[0].mxu0
        %v1243 = vadd.f32 0.0, %v1242
        %v1244 = vpop.f32.mrb[0].mxu0
        %1245 = vmatprep.mubr.bf16.mxu0 %v998
        %1246 = vmatmul.mubr.bf16.gmra.mrb[0].mxu0 %v997
        %v1247 = vpop.f32.mrb[0].mxu0
        %v1248 = vadd.f32 0.0, %v1247
        %v1249 = vpop.f32.mrb[0].mxu0
        %v1250 = vpop.f32.mrb[0].mxu0
        %v1251 = vadd.f32 0.0, %v1250
        %v1252 = vpop.f32.mrb[0].mxu0
        %1253 = vmatprep.mubr.bf16.mxu0 %v1000
        %1254 = vmatmul.mubr.bf16.gmra.mrb[0].mxu0 %v999
        %v1255 = vpop.f32.mrb[0].mxu0
        %v1256 = vadd.f32 0.0, %v1255
        %v1257 = vpop.f32.mrb[0].mxu0
        %v1258 = vpop.f32.mrb[0].mxu0
        %v1259 = vadd.f32 0.0, %v1258
        %v1260 = vpop.f32.mrb[0].mxu0
        %1261 = vmatprep.mubr.bf16.mxu0 %v1002
        %1262 = vmatmul.mubr.bf16.gmra.mrb[0].mxu0 %v1001
        %v1263 = vpop.f32.mrb[0].mxu0
        %v1264 = vadd.f32 0.0, %v1263
        %v1265 = vpop.f32.mrb[0].mxu0
        %v1266 = vpop.f32.mrb[0].mxu0
        %v1267 = vadd.f32 0.0, %v1266
        %v1268 = vpop.f32.mrb[0].mxu0
        %1269 = vmatprep.mubr.bf16.mxu0 %v1004
        %1270 = vmatmul.mubr.bf16.gmra.mrb[0].mxu0 %v1003
        %v1271 = vpop.f32.mrb[0].mxu0
        %v1272 = vadd.f32 0.0, %v1271
        %v1273 = vpop.f32.mrb[0].mxu0
        %v1274 = vpop.f32.mrb[0].mxu0
        %v1275 = vadd.f32 0.0, %v1274
        %v1276 = vpop.f32.mrb[0].mxu0
        %1277 = vmatprep.mubr.bf16.mxu0 %v1006
        %1278 = vmatmul.mubr.bf16.gmra.mrb[0].mxu0 %v1005
        %v1279 = vpop.f32.mrb[0].mxu0
        %v1280 = vadd.f32 0.0, %v1279
        %v1281 = vpop.f32.mrb[0].mxu0
        %v1282 = vpop.f32.mrb[0].mxu0
        %v1283 = vadd.f32 0.0, %v1282
        %v1284 = vpop.f32.mrb[0].mxu0
        %1285 = vmatprep.mubr.bf16.mxu0 %v1008
        %1286 = vmatmul.mubr.bf16.gmra.mrb[0].mxu0 %v1007
        %v1287 = vpop.f32.mrb[0].mxu0
        %v1288 = vadd.f32 0.0, %v1287
        %v1289 = vpop.f32.mrb[0].mxu0
        %v1290 = vpop.f32.mrb[0].mxu0
        %v1291 = vadd.f32 0.0, %v1290
        %v1292 = vpop.f32.mrb[0].mxu0
        %1293 = vmatprep.mubr.bf16.mxu0 %v1010
        %1294 = vmatmul.mubr.bf16.gmra.mrb[0].mxu0 %v1009
        %v1295 = vpop.f32.mrb[0].mxu0
        %v1296 = vadd.f32 0.0, %v1295
        %v1297 = vpop.f32.mrb[0].mxu0
        %v1298 = vpop.f32.mrb[0].mxu0
        %v1299 = vadd.f32 0.0, %v1298
        %v1300 = vpop.f32.mrb[0].mxu0
        %1301 = vmatprep.mubr.bf16.mxu0 %v1012
        %1302 = vmatmul.mubr.bf16.gmra.mrb[0].mxu0 %v1011
        %v1303 = vpop.f32.mrb[0].mxu0
        %v1304 = vadd.f32 0.0, %v1303
        %v1305 = vpop.f32.mrb[0].mxu0
        %v1306 = vpop.f32.mrb[0].mxu0
        %v1307 = vadd.f32 0.0, %v1306
        %v1308 = vpop.f32.mrb[0].mxu0
        %1309 = vmatprep.mubr.bf16.mxu0 %v1014
        %1310 = vmatmul.mubr.bf16.gmra.mrb[0].mxu0 %v1013
        %v1311 = vpop.f32.mrb[0].mxu0
        %v1312 = vadd.f32 0.0, %v1311
        %v1313 = vpop.f32.mrb[0].mxu0
        %v1314 = vpop.f32.mrb[0].mxu0
        %v1315 = vadd.f32 0.0, %v1314
        %v1316 = vpop.f32.mrb[0].mxu0
        %1317 = vmatprep.mubr.bf16.mxu0 %v1016
        %1318 = vmatmul.mubr.bf16.gmra.mrb[0].mxu0 %v1015
        %v1319 = vpop.f32.mrb[0].mxu0
        %v1320 = vadd.f32 0.0, %v1319
        %v1321 = vpop.f32.mrb[0].mxu0
        %v1322 = vpop.f32.mrb[0].mxu0
        %v1323 = vadd.f32 0.0, %v1322
        %v1324 = vpop.f32.mrb[0].mxu0
        %1325 = vmatprep.mubr.bf16.mxu0 %v1018
        %1326 = vmatmul.mubr.bf16.gmra.mrb[0].mxu0 %v1017
        %v1327 = vpop.f32.mrb[0].mxu0
        %v1328 = vadd.f32 0.0, %v1327
        %v1329 = vpop.f32.mrb[0].mxu0
        %v1330 = vpop.f32.mrb[0].mxu0
        %v1331 = vadd.f32 0.0, %v1330
        %v1332 = vpop.f32.mrb[0].mxu0
        %1333 = vmatprep.mubr.bf16.mxu0 %v1020
        %1334 = vmatmul.mubr.bf16.gmra.mrb[0].mxu0 %v1019
        %v1335 = vpop.f32.mrb[0].mxu0
        %v1336 = vadd.f32 0.0, %v1335
        %v1337 = vpop.f32.mrb[0].mxu0
        %v1338 = vpop.f32.mrb[0].mxu0
        %v1339 = vadd.f32 0.0, %v1338
        %v1340 = vpop.f32.mrb[0].mxu0
        %1341 = vmatprep.mubr.bf16.mxu0 %v1022
        %1342 = vmatmul.mubr.bf16.gmra.mrb[0].mxu0 %v1021
        %v1343 = vpop.f32.mrb[0].mxu0
        %v1344 = vadd.f32 0.0, %v1343
        %v1345 = vpop.f32.mrb[0].mxu0
        %v1346 = vpop.f32.mrb[0].mxu0
        %v1347 = vadd.f32 0.0, %v1346
        %v1348 = vpop.f32.mrb[0].mxu0
        %1349 = vmatprep.mubr.bf16.mxu0 %v1024
        %1350 = vmatmul.mubr.bf16.gmra.mrb[0].mxu0 %v1023
        %v1351 = vpop.f32.mrb[0].mxu0
        %v1352 = vadd.f32 0.0, %v1351
        %v1353 = vpop.f32.mrb[0].mxu0
        %v1354 = vpop.f32.mrb[0].mxu0
        %v1355 = vadd.f32 0.0, %v1354
        %v1356 = vpop.f32.mrb[0].mxu0
        %1357 = vmatprep.mubr.bf16.mxu0 %v1026
        %1358 = vmatmul.mubr.bf16.gmra.mrb[0].mxu0 %v1025
        %v1359 = vpop.f32.mrb[0].mxu0
        %v1360 = vadd.f32 0.0, %v1359
        %v1361 = vpop.f32.mrb[0].mxu0
        %v1362 = vpop.f32.mrb[0].mxu0
        %v1363 = vadd.f32 0.0, %v1362
        %v1364 = vpop.f32.mrb[0].mxu0
        %1365 = vmatprep.mubr.bf16.mxu0 %v1028
        %1366 = vmatmul.mubr.bf16.gmra.mrb[0].mxu0 %v1027
        %v1367 = vpop.f32.mrb[0].mxu0
        %v1368 = vadd.f32 0.0, %v1367
        %v1369 = vpop.f32.mrb[0].mxu0
        %v1370 = vpop.f32.mrb[0].mxu0
        %v1371 = vadd.f32 0.0, %v1370
        %v1372 = vpop.f32.mrb[0].mxu0
        %1373 = vmatprep.mubr.bf16.mxu0 %v1030
        %1374 = vmatmul.mubr.bf16.gmra.mrb[0].mxu0 %v1029
        %v1375 = vpop.f32.mrb[0].mxu0
        %v1376 = vadd.f32 0.0, %v1375
        %v1377 = vpop.f32.mrb[0].mxu0
        %v1378 = vpop.f32.mrb[0].mxu0
        %v1379 = vadd.f32 0.0, %v1378
        %v1380 = vpop.f32.mrb[0].mxu0
        %1381 = vmatprep.mubr.bf16.mxu0 %v1032
        %1382 = vmatmul.mubr.bf16.gmra.mrb[0].mxu0 %v1031
        %v1383 = vpop.f32.mrb[0].mxu0
        %v1384 = vadd.f32 0.0, %v1383
        %v1385 = vpop.f32.mrb[0].mxu0
        %v1386 = vpop.f32.mrb[0].mxu0
        %v1387 = vadd.f32 0.0, %v1386
        %v1388 = vpop.f32.mrb[0].mxu0
        %1389 = vmatprep.mubr.bf16.mxu0 %v1034
        %1390 = vmatmul.mubr.bf16.gmra.mrb[0].mxu0 %v1033
        %v1391 = vpop.f32.mrb[0].mxu0
        %v1392 = vadd.f32 0.0, %v1391
        %v1393 = vpop.f32.mrb[0].mxu0
        %v1394 = vpop.f32.mrb[0].mxu0
        %v1395 = vadd.f32 0.0, %v1394
        %v1396 = vpop.f32.mrb[0].mxu0
        %1397 = vmatprep.mubr.bf16.mxu0 %v1036
        %1398 = vmatmul.mubr.bf16.gmra.mrb[0].mxu0 %v1035
        %v1399 = vpop.f32.mrb[0].mxu0
        %v1400 = vadd.f32 0.0, %v1399
        %v1401 = vpop.f32.mrb[0].mxu0
        %v1402 = vpop.f32.mrb[0].mxu0
        %v1403 = vadd.f32 0.0, %v1402
        %v1404 = vpop.f32.mrb[0].mxu0
        %1405 = vmatprep.mubr.bf16.mxu0 %v1038
        %1406 = vmatmul.mubr.bf16.gmra.mrb[0].mxu0 %v1037
        %v1407 = vpop.f32.mrb[0].mxu0
        %v1408 = vadd.f32 0.0, %v1407
        %v1409 = vpop.f32.mrb[0].mxu0
        %v1410 = vpop.f32.mrb[0].mxu0
        %v1411 = vadd.f32 0.0, %v1410
        %v1412 = vpop.f32.mrb[0].mxu0
        %1413 = vmatprep.mubr.bf16.mxu0 %v1040
        %1414 = vmatmul.mubr.bf16.gmra.mrb[0].mxu0 %v1039
        %v1415 = vpop.f32.mrb[0].mxu0
        %v1416 = vadd.f32 0.0, %v1415
        %v1417 = vpop.f32.mrb[0].mxu0
        %v1418 = vpop.f32.mrb[0].mxu0
        %v1419 = vadd.f32 0.0, %v1418
        %v1420 = vpop.f32.mrb[0].mxu0
        %1421 = vmatprep.mubr.bf16.mxu0 %v1042
        %1422 = vmatmul.mubr.bf16.gmra.mrb[0].mxu0 %v1041
        %v1423 = vpop.f32.mrb[0].mxu0
        %v1424 = vadd.f32 0.0, %v1423
        %v1425 = vpop.f32.mrb[0].mxu0
        %v1426 = vpop.f32.mrb[0].mxu0
        %v1427 = vadd.f32 0.0, %v1426
        %v1428 = vpop.f32.mrb[0].mxu0
        %1429 = vmatprep.mubr.bf16.mxu0 %v1044
        %1430 = vmatmul.mubr.bf16.gmra.mrb[0].mxu0 %v1043
        %v1431 = vpop.f32.mrb[0].mxu0
        %v1432 = vadd.f32 0.0, %v1431
        %v1433 = vpop.f32.mrb[0].mxu0
        %v1434 = vpop.f32.mrb[0].mxu0
        %v1435 = vadd.f32 0.0, %v1434
        %v1436 = vpop.f32.mrb[0].mxu0
        %1437 = vmatprep.mubr.bf16.mxu0 %v1046
        %1438 = vmatmul.mubr.bf16.gmra.mrb[0].mxu0 %v1045
        %v1439 = vpop.f32.mrb[0].mxu0
        %v1440 = vadd.f32 0.0, %v1439
        %v1441 = vpop.f32.mrb[0].mxu0
        %v1442 = vpop.f32.mrb[0].mxu0
        %v1443 = vadd.f32 0.0, %v1442
        %v1444 = vpop.f32.mrb[0].mxu0
        %1445 = vmatprep.mubr.bf16.mxu0 %v1048
        %1446 = vmatmul.mubr.bf16.gmra.mrb[0].mxu0 %v1047
        %v1447 = vpop.f32.mrb[0].mxu0
        %v1448 = vadd.f32 0.0, %v1447
        %v1449 = vpop.f32.mrb[0].mxu0
        %v1450 = vpop.f32.mrb[0].mxu0
        %v1451 = vadd.f32 0.0, %v1450
        %v1452 = vpop.f32.mrb[0].mxu0
        %1453 = vmatprep.mubr.bf16.mxu0 %v1050
        %1454 = vmatmul.mubr.bf16.gmra.mrb[0].mxu0 %v1049
        %v1455 = vpop.f32.mrb[0].mxu0
        %v1456 = vadd.f32 0.0, %v1455
        %v1457 = vpop.f32.mrb[0].mxu0
        %v1458 = vpop.f32.mrb[0].mxu0
        %v1459 = vadd.f32 0.0, %v1458
        %v1460 = vpop.f32.mrb[0].mxu0
        %1461 = vmatprep.mubr.bf16.mxu0 %v1052
        %1462 = vmatmul.mubr.bf16.gmra.mrb[0].mxu0 %v1051
        %v1463 = vpop.f32.mrb[0].mxu0
        %v1464 = vadd.f32 0.0, %v1463
        %v1465 = vpop.f32.mrb[0].mxu0
        %v1466 = vpop.f32.mrb[0].mxu0
        %v1467 = vadd.f32 0.0, %v1466
        %v1468 = vpop.f32.mrb[0].mxu0
        %1469 = vdwg.mxu0
        %v1470 = vmul.f32 %v925, %v1216
        %v1471 = vmul.f32 %v926, %v1219
        %v1472 = vmul.f32 %v927, %v1224
        %v1473 = vmul.f32 %v928, %v1227
        %v1474 = vmul.f32 %v929, %v1232
        %v1475 = vmul.f32 %v930, %v1235
        %v1476 = vmul.f32 %v931, %v1240
        %v1477 = vmul.f32 %v932, %v1243
        %v1478 = vmul.f32 %v933, %v1248
        %v1479 = vmul.f32 %v934, %v1251
        %v1480 = vmul.f32 %v935, %v1256
        %v1481 = vmul.f32 %v936, %v1259
        %v1482 = vmul.f32 %v937, %v1264
        %v1483 = vmul.f32 %v938, %v1267
        %v1484 = vmul.f32 %v939, %v1272
        %v1485 = vmul.f32 %v940, %v1275
        %v1486 = vmul.f32 %v941, %v1280
        %v1487 = vmul.f32 %v942, %v1283
        %v1488 = vmul.f32 %v943, %v1288
        %v1489 = vmul.f32 %v944, %v1291
        %v1490 = vmul.f32 %v945, %v1296
        %v1491 = vmul.f32 %v946, %v1299
        %v1492 = vmul.f32 %v947, %v1304
        %v1493 = vmul.f32 %v948, %v1307
        %v1494 = vmul.f32 %v949, %v1312
        %v1495 = vmul.f32 %v950, %v1315
        %v1496 = vmul.f32 %v951, %v1320
        %v1497 = vmul.f32 %v952, %v1323
        %v1498 = vmul.f32 %v953, %v1328
        %v1499 = vmul.f32 %v954, %v1331
        %v1500 = vmul.f32 %v955, %v1336
        %v1501 = vmul.f32 %v956, %v1339
        %v1502 = vmul.f32 %v957, %v1344
        %v1503 = vmul.f32 %v958, %v1347
        %v1504 = vmul.f32 %v959, %v1352
        %v1505 = vmul.f32 %v960, %v1355
        %v1506 = vmul.f32 %v961, %v1360
        %v1507 = vmul.f32 %v962, %v1363
        %v1508 = vmul.f32 %v963, %v1368
        %v1509 = vmul.f32 %v964, %v1371
        %v1510 = vmul.f32 %v965, %v1376
        %v1511 = vmul.f32 %v966, %v1379
        %v1512 = vmul.f32 %v967, %v1384
        %v1513 = vmul.f32 %v968, %v1387
        %v1514 = vmul.f32 %v969, %v1392
        %v1515 = vmul.f32 %v970, %v1395
        %v1516 = vmul.f32 %v971, %v1400
        %v1517 = vmul.f32 %v972, %v1403
        %v1518 = vmul.f32 %v973, %v1408
        %v1519 = vmul.f32 %v974, %v1411
        %v1520 = vmul.f32 %v975, %v1416
        %v1521 = vmul.f32 %v976, %v1419
        %v1522 = vmul.f32 %v977, %v1424
        %v1523 = vmul.f32 %v978, %v1427
        %v1524 = vmul.f32 %v979, %v1432
        %v1525 = vmul.f32 %v980, %v1435
        %v1526 = vmul.f32 %v981, %v1440
        %v1527 = vmul.f32 %v982, %v1443
        %v1528 = vmul.f32 %v983, %v1448
        %v1529 = vmul.f32 %v984, %v1451
        %v1530 = vmul.f32 %v985, %v1456
        %v1531 = vmul.f32 %v986, %v1459
        %v1532 = vmul.f32 %v987, %v1464
        %v1533 = vmul.f32 %v988, %v1467
        %v1534 = vld [vmem:[%s2] sm:$0x1]
        %v1536 = vlaneseq
        %v1537 = vshrl.u32 %v1536, 7
        %v1538 = vsub.s32 0, %v1537
        %v1539 = vrot.slane %v1534, %v1538
        %v1541 = vadd.f32 %v1470, %v1539
        %v1542 = vadd.f32 %v1471, %v1539
        %v1543 = vadd.f32 %v1472, %v1539
        %v1544 = vadd.f32 %v1473, %v1539
        %v1545 = vadd.f32 %v1474, %v1539
        %v1546 = vadd.f32 %v1475, %v1539
        %v1547 = vadd.f32 %v1476, %v1539
        %v1548 = vadd.f32 %v1477, %v1539
        %v1549 = vadd.f32 %v1478, %v1539
        %v1550 = vadd.f32 %v1479, %v1539
        %v1551 = vadd.f32 %v1480, %v1539
        %v1552 = vadd.f32 %v1481, %v1539
        %v1553 = vadd.f32 %v1482, %v1539
        %v1554 = vadd.f32 %v1483, %v1539
        %v1555 = vadd.f32 %v1484, %v1539
        %v1556 = vadd.f32 %v1485, %v1539
        %v1557 = vadd.f32 %v1486, %v1539
        %v1558 = vadd.f32 %v1487, %v1539
        %v1559 = vadd.f32 %v1488, %v1539
        %v1560 = vadd.f32 %v1489, %v1539
        %v1561 = vadd.f32 %v1490, %v1539
        %v1562 = vadd.f32 %v1491, %v1539
        %v1563 = vadd.f32 %v1492, %v1539
        %v1564 = vadd.f32 %v1493, %v1539
        %v1565 = vadd.f32 %v1494, %v1539
        %v1566 = vadd.f32 %v1495, %v1539
        %v1567 = vadd.f32 %v1496, %v1539
        %v1568 = vadd.f32 %v1497, %v1539
        %v1569 = vadd.f32 %v1498, %v1539
        %v1570 = vadd.f32 %v1499, %v1539
        %v1571 = vadd.f32 %v1500, %v1539
        %v1572 = vadd.f32 %v1501, %v1539
        %v1573 = vadd.f32 %v1502, %v1539
        %v1574 = vadd.f32 %v1503, %v1539
        %v1575 = vadd.f32 %v1504, %v1539
        %v1576 = vadd.f32 %v1505, %v1539
        %v1577 = vadd.f32 %v1506, %v1539
        %v1578 = vadd.f32 %v1507, %v1539
        %v1579 = vadd.f32 %v1508, %v1539
        %v1580 = vadd.f32 %v1509, %v1539
        %v1581 = vadd.f32 %v1510, %v1539
        %v1582 = vadd.f32 %v1511, %v1539
        %v1583 = vadd.f32 %v1512, %v1539
        %v1584 = vadd.f32 %v1513, %v1539
        %v1585 = vadd.f32 %v1514, %v1539
        %v1586 = vadd.f32 %v1515, %v1539
        %v1587 = vadd.f32 %v1516, %v1539
        %v1588 = vadd.f32 %v1517, %v1539
        %v1589 = vadd.f32 %v1518, %v1539
        %v1590 = vadd.f32 %v1519, %v1539
        %v1591 = vadd.f32 %v1520, %v1539
        %v1592 = vadd.f32 %v1521, %v1539
        %v1593 = vadd.f32 %v1522, %v1539
        %v1594 = vadd.f32 %v1523, %v1539
        %v1595 = vadd.f32 %v1524, %v1539
        %v1596 = vadd.f32 %v1525, %v1539
        %v1597 = vadd.f32 %v1526, %v1539
        %v1598 = vadd.f32 %v1527, %v1539
        %v1599 = vadd.f32 %v1528, %v1539
        %v1600 = vadd.f32 %v1529, %v1539
        %v1601 = vadd.f32 %v1530, %v1539
        %v1602 = vadd.f32 %v1531, %v1539
        %v1603 = vadd.f32 %v1532, %v1539
        %v1604 = vadd.f32 %v1533, %v1539
        %v1605 = vtanh.pop %v1541
        %v1606 = vtanh.pop %v1542
        %v1607 = vtanh.pop %v1543
        %v1608 = vtanh.pop %v1544
        %v1609 = vtanh.pop %v1545
        %v1610 = vtanh.pop %v1546
        %v1611 = vtanh.pop %v1547
        %v1612 = vtanh.pop %v1548
        %v1613 = vtanh.pop %v1549
        %v1614 = vtanh.pop %v1550
        %v1615 = vtanh.pop %v1551
        %v1616 = vtanh.pop %v1552
        %v1617 = vtanh.pop %v1553
        %v1618 = vtanh.pop %v1554
        %v1619 = vtanh.pop %v1555
        %v1620 = vtanh.pop %v1556
        %v1621 = vtanh.pop %v1557
        %v1622 = vtanh.pop %v1558
        %v1623 = vtanh.pop %v1559
        %v1624 = vtanh.pop %v1560
        %v1625 = vtanh.pop %v1561
        %v1626 = vtanh.pop %v1562
        %v1627 = vtanh.pop %v1563
        %v1628 = vtanh.pop %v1564
        %v1629 = vtanh.pop %v1565
        %v1630 = vtanh.pop %v1566
        %v1631 = vtanh.pop %v1567
        %v1632 = vtanh.pop %v1568
        %v1633 = vtanh.pop %v1569
        %v1634 = vtanh.pop %v1570
        %v1635 = vtanh.pop %v1571
        %v1636 = vtanh.pop %v1572
        %v1637 = vtanh.pop %v1573
        %v1638 = vtanh.pop %v1574
        %v1639 = vtanh.pop %v1575
        %v1640 = vtanh.pop %v1576
        %v1641 = vtanh.pop %v1577
        %v1642 = vtanh.pop %v1578
        %v1643 = vtanh.pop %v1579
        %v1644 = vtanh.pop %v1580
        %v1645 = vtanh.pop %v1581
        %v1646 = vtanh.pop %v1582
        %v1647 = vtanh.pop %v1583
        %v1648 = vtanh.pop %v1584
        %v1649 = vtanh.pop %v1585
        %v1650 = vtanh.pop %v1586
        %v1651 = vtanh.pop %v1587
        %v1652 = vtanh.pop %v1588
        %v1653 = vtanh.pop %v1589
        %v1654 = vtanh.pop %v1590
        %v1655 = vtanh.pop %v1591
        %v1656 = vtanh.pop %v1592
        %v1657 = vtanh.pop %v1593
        %v1658 = vtanh.pop %v1594
        %v1659 = vtanh.pop %v1595
        %v1660 = vtanh.pop %v1596
        %v1661 = vtanh.pop %v1597
        %v1662 = vtanh.pop %v1598
        %v1663 = vtanh.pop %v1599
        %v1664 = vtanh.pop %v1600
        %v1665 = vtanh.pop %v1601
        %v1666 = vtanh.pop %v1602
        %v1667 = vtanh.pop %v1603
        %v1668 = vtanh.pop %v1604
        %v1669 = vpack.c.bf16 %v1606, %v1605
        %v1670 = vpack.c.bf16 %v1608, %v1607
        %v1671 = vpack.c.bf16 %v1610, %v1609
        %v1672 = vpack.c.bf16 %v1612, %v1611
        %v1673 = vpack.c.bf16 %v1614, %v1613
        %v1674 = vpack.c.bf16 %v1616, %v1615
        %v1675 = vpack.c.bf16 %v1618, %v1617
        %v1676 = vpack.c.bf16 %v1620, %v1619
        %v1677 = vpack.c.bf16 %v1622, %v1621
        %v1678 = vpack.c.bf16 %v1624, %v1623
        %v1679 = vpack.c.bf16 %v1626, %v1625
        %v1680 = vpack.c.bf16 %v1628, %v1627
        %v1681 = vpack.c.bf16 %v1630, %v1629
        %v1682 = vpack.c.bf16 %v1632, %v1631
        %v1683 = vpack.c.bf16 %v1634, %v1633
        %v1684 = vpack.c.bf16 %v1636, %v1635
        %v1685 = vpack.c.bf16 %v1638, %v1637
        %v1686 = vpack.c.bf16 %v1640, %v1639
        %v1687 = vpack.c.bf16 %v1642, %v1641
        %v1688 = vpack.c.bf16 %v1644, %v1643
        %v1689 = vpack.c.bf16 %v1646, %v1645
        %v1690 = vpack.c.bf16 %v1648, %v1647
        %v1691 = vpack.c.bf16 %v1650, %v1649
        %v1692 = vpack.c.bf16 %v1652, %v1651
        %v1693 = vpack.c.bf16 %v1654, %v1653
        %v1694 = vpack.c.bf16 %v1656, %v1655
        %v1695 = vpack.c.bf16 %v1658, %v1657
        %v1696 = vpack.c.bf16 %v1660, %v1659
        %v1697 = vpack.c.bf16 %v1662, %v1661
        %v1698 = vpack.c.bf16 %v1664, %v1663
        %v1699 = vpack.c.bf16 %v1666, %v1665
        %v1700 = vpack.c.bf16 %v1668, %v1667
        %v1701 = vld [vmem:[#allocation7] sm:$0xff]
        %v1702 = vld [vmem:[#allocation7 + $0x8] sm:$0xff]
        %v1703 = vld [vmem:[#allocation7 + $0x10] sm:$0xff]
        %v1704 = vld [vmem:[#allocation7 + $0x18] sm:$0xff]
        %v1705 = vld [vmem:[#allocation7 + $0x20] sm:$0xff]
        %v1706 = vld [vmem:[#allocation7 + $0x28] sm:$0xff]
        %v1707 = vld [vmem:[#allocation7 + $0x30] sm:$0xff]
        %v1708 = vld [vmem:[#allocation7 + $0x38] sm:$0xff]
        %v1709 = vld [vmem:[#allocation7 + $0x40] sm:$0xff]
        %v1710 = vld [vmem:[#allocation7 + $0x48] sm:$0xff]
        %v1711 = vld [vmem:[#allocation7 + $0x50] sm:$0xff]
        %v1712 = vld [vmem:[#allocation7 + $0x58] sm:$0xff]
        %v1713 = vld [vmem:[#allocation7 + $0x60] sm:$0xff]
        %v1714 = vld [vmem:[#allocation7 + $0x68] sm:$0xff]
        %v1715 = vld [vmem:[#allocation7 + $0x70] sm:$0xff]
        %v1716 = vld [vmem:[#allocation7 + $0x78] sm:$0xff]
        %v1733 = vunpack.c.l.b16 %v1701
        %v1734 = vunpack.c.h.b16 %v1701
        %v1735 = vunpack.c.l.b16 %v1702
        %v1736 = vunpack.c.h.b16 %v1702
        %v1737 = vunpack.c.l.b16 %v1703
        %v1738 = vunpack.c.h.b16 %v1703
        %v1739 = vunpack.c.l.b16 %v1704
        %v1740 = vunpack.c.h.b16 %v1704
        %v1741 = vunpack.c.l.b16 %v1705
        %v1742 = vunpack.c.h.b16 %v1705
        %v1743 = vunpack.c.l.b16 %v1706
        %v1744 = vunpack.c.h.b16 %v1706
        %v1745 = vunpack.c.l.b16 %v1707
        %v1746 = vunpack.c.h.b16 %v1707
        %v1747 = vunpack.c.l.b16 %v1708
        %v1748 = vunpack.c.h.b16 %v1708
        %v1749 = vunpack.c.l.b16 %v1709
        %v1750 = vunpack.c.h.b16 %v1709
        %v1751 = vunpack.c.l.b16 %v1710
        %v1752 = vunpack.c.h.b16 %v1710
        %v1753 = vunpack.c.l.b16 %v1711
        %v1754 = vunpack.c.h.b16 %v1711
        %v1755 = vunpack.c.l.b16 %v1712
        %v1756 = vunpack.c.h.b16 %v1712
        %v1757 = vunpack.c.l.b16 %v1713
        %v1758 = vunpack.c.h.b16 %v1713
        %v1759 = vunpack.c.l.b16 %v1714
        %v1760 = vunpack.c.h.b16 %v1714
        %v1761 = vunpack.c.l.b16 %v1715
        %v1762 = vunpack.c.h.b16 %v1715
        %v1763 = vunpack.c.l.b16 %v1716
        %v1764 = vunpack.c.h.b16 %v1716
        %v1765 = vpack.c.b16 %v1735, %v1733
        %v1766 = vpack.c.b16 %v1736, %v1734
        %v1767 = vpack.c.b16 %v1739, %v1737
        %v1768 = vpack.c.b16 %v1740, %v1738
        %v1769 = vpack.c.b16 %v1743, %v1741
        %v1770 = vpack.c.b16 %v1744, %v1742
        %v1771 = vpack.c.b16 %v1747, %v1745
        %v1772 = vpack.c.b16 %v1748, %v1746
        %v1773 = vpack.c.b16 %v1751, %v1749
        %v1774 = vpack.c.b16 %v1752, %v1750
        %v1775 = vpack.c.b16 %v1755, %v1753
        %v1776 = vpack.c.b16 %v1756, %v1754
        %v1777 = vpack.c.b16 %v1759, %v1757
        %v1778 = vpack.c.b16 %v1760, %v1758
        %v1779 = vpack.c.b16 %v1763, %v1761
        %v1780 = vpack.c.b16 %v1764, %v1762
        %1797 = vmatprep.subr.bf16.mxu0 %v1766
        %1798 = vmatpush1.bf16.msra.mxu0 %v1765
        %1799 = vmatprep.subr.bf16.mxu0 %v1768
        %1800 = vmatpush1.bf16.msra.mxu0 %v1767
        %1801 = vmatprep.subr.bf16.mxu0 %v1770
        %1802 = vmatpush1.bf16.msra.mxu0 %v1769
        %1803 = vmatprep.subr.bf16.mxu0 %v1772
        %1804 = vmatpush1.bf16.msra.mxu0 %v1771
        %1805 = vmatprep.subr.bf16.mxu0 %v1774
        %1806 = vmatpush1.bf16.msra.mxu0 %v1773
        %1807 = vmatprep.subr.bf16.mxu0 %v1776
        %1808 = vmatpush1.bf16.msra.mxu0 %v1775
        %1809 = vmatprep.subr.bf16.mxu0 %v1778
        %1810 = vmatpush1.bf16.msra.mxu0 %v1777
        %1811 = vmatprep.subr.bf16.mxu0 %v1780
        %1812 = vmatpush1.bf16.msra.mxu0 %v1779
        %1813 = vmatprep.subr.bf16.mxu0 0
        %1814 = vmatpush1.bf16.msra.mxu0 0
        %1815 = vmatprep.subr.bf16.mxu0 0
        %1816 = vmatpush1.bf16.msra.mxu0 0
        %1817 = vmatprep.subr.bf16.mxu0 0
        %1818 = vmatpush1.bf16.msra.mxu0 0
        %1819 = vmatprep.subr.bf16.mxu0 0
        %1820 = vmatpush1.bf16.msra.mxu0 0
        %1821 = vmatprep.subr.bf16.mxu0 0
        %1822 = vmatpush1.bf16.msra.mxu0 0
        %1823 = vmatprep.subr.bf16.mxu0 0
        %1824 = vmatpush1.bf16.msra.mxu0 0
        %1825 = vmatprep.subr.bf16.mxu0 0
        %1826 = vmatpush1.bf16.msra.mxu0 0
        %1827 = vmatprep.subr.bf16.mxu0 0
        %1828 = vmatpush1.bf16.msra.mxu0 0
        %1829 = vmatprep.mubr.bf16.mxu0 0
        %1830 = vmatmul.mubr.bf16.gmra.mrb[0].mxu0 %v1669
        %v1831 = vpop.f32.mrb[0].mxu0
        %v1832 = vadd.f32 0.0, %v1831
        %v1833 = vpop.f32.mrb[0].mxu0
        %v1834 = vadd.f32 0.0, %v1833
        %v1835 = vpop.f32.mrb[0].mxu0
        %v1836 = vadd.f32 0.0, %v1835
        %v1837 = vpop.f32.mrb[0].mxu0
        %v1838 = vadd.f32 0.0, %v1837
        %1839 = vmatprep.mubr.bf16.mxu0 0
        %1840 = vmatmul.mubr.bf16.gmra.mrb[0].mxu0 %v1670
        %v1841 = vpop.f32.mrb[0].mxu0
        %v1842 = vadd.f32 0.0, %v1841
        %v1843 = vpop.f32.mrb[0].mxu0
        %v1844 = vadd.f32 0.0, %v1843
        %v1845 = vpop.f32.mrb[0].mxu0
        %v1846 = vadd.f32 0.0, %v1845
        %v1847 = vpop.f32.mrb[0].mxu0
        %v1848 = vadd.f32 0.0, %v1847
        %1849 = vmatprep.mubr.bf16.mxu0 0
        %1850 = vmatmul.mubr.bf16.gmra.mrb[0].mxu0 %v1671
        %v1851 = vpop.f32.mrb[0].mxu0
        %v1852 = vadd.f32 0.0, %v1851
        %v1853 = vpop.f32.mrb[0].mxu0
        %v1854 = vadd.f32 0.0, %v1853
        %v1855 = vpop.f32.mrb[0].mxu0
        %v1856 = vadd.f32 0.0, %v1855
        %v1857 = vpop.f32.mrb[0].mxu0
        %v1858 = vadd.f32 0.0, %v1857
        %1859 = vmatprep.mubr.bf16.mxu0 0
        %1860 = vmatmul.mubr.bf16.gmra.mrb[0].mxu0 %v1672
        %v1861 = vpop.f32.mrb[0].mxu0
        %v1862 = vadd.f32 0.0, %v1861
        %v1863 = vpop.f32.mrb[0].mxu0
        %v1864 = vadd.f32 0.0, %v1863
        %v1865 = vpop.f32.mrb[0].mxu0
        %v1866 = vadd.f32 0.0, %v1865
        %v1867 = vpop.f32.mrb[0].mxu0
        %v1868 = vadd.f32 0.0, %v1867
        %1869 = vmatprep.mubr.bf16.mxu0 0
        %1870 = vmatmul.mubr.bf16.gmra.mrb[0].mxu0 %v1673
        %v1871 = vpop.f32.mrb[0].mxu0
        %v1872 = vadd.f32 0.0, %v1871
        %v1873 = vpop.f32.mrb[0].mxu0
        %v1874 = vadd.f32 0.0, %v1873
        %v1875 = vpop.f32.mrb[0].mxu0
        %v1876 = vadd.f32 0.0, %v1875
        %v1877 = vpop.f32.mrb[0].mxu0
        %v1878 = vadd.f32 0.0, %v1877
        %1879 = vmatprep.mubr.bf16.mxu0 0
        %1880 = vmatmul.mubr.bf16.gmra.mrb[0].mxu0 %v1674
        %v1881 = vpop.f32.mrb[0].mxu0
        %v1882 = vadd.f32 0.0, %v1881
        %v1883 = vpop.f32.mrb[0].mxu0
        %v1884 = vadd.f32 0.0, %v1883
        %v1885 = vpop.f32.mrb[0].mxu0
        %v1886 = vadd.f32 0.0, %v1885
        %v1887 = vpop.f32.mrb[0].mxu0
        %v1888 = vadd.f32 0.0, %v1887
        %1889 = vmatprep.mubr.bf16.mxu0 0
        %1890 = vmatmul.mubr.bf16.gmra.mrb[0].mxu0 %v1675
        %v1891 = vpop.f32.mrb[0].mxu0
        %v1892 = vadd.f32 0.0, %v1891
        %v1893 = vpop.f32.mrb[0].mxu0
        %v1894 = vadd.f32 0.0, %v1893
        %v1895 = vpop.f32.mrb[0].mxu0
        %v1896 = vadd.f32 0.0, %v1895
        %v1897 = vpop.f32.mrb[0].mxu0
        %v1898 = vadd.f32 0.0, %v1897
        %1899 = vmatprep.mubr.bf16.mxu0 0
        %1900 = vmatmul.mubr.bf16.gmra.mrb[0].mxu0 %v1676
        %v1901 = vpop.f32.mrb[0].mxu0
        %v1902 = vadd.f32 0.0, %v1901
        %v1903 = vpop.f32.mrb[0].mxu0
        %v1904 = vadd.f32 0.0, %v1903
        %v1905 = vpop.f32.mrb[0].mxu0
        %v1906 = vadd.f32 0.0, %v1905
        %v1907 = vpop.f32.mrb[0].mxu0
        %v1908 = vadd.f32 0.0, %v1907
        %1909 = vmatprep.mubr.bf16.mxu0 0
        %1910 = vmatmul.mubr.bf16.gmra.mrb[0].mxu0 %v1677
        %v1911 = vpop.f32.mrb[0].mxu0
        %v1912 = vadd.f32 0.0, %v1911
        %v1913 = vpop.f32.mrb[0].mxu0
        %v1914 = vadd.f32 0.0, %v1913
        %v1915 = vpop.f32.mrb[0].mxu0
        %v1916 = vadd.f32 0.0, %v1915
        %v1917 = vpop.f32.mrb[0].mxu0
        %v1918 = vadd.f32 0.0, %v1917
        %1919 = vmatprep.mubr.bf16.mxu0 0
        %1920 = vmatmul.mubr.bf16.gmra.mrb[0].mxu0 %v1678
        %v1921 = vpop.f32.mrb[0].mxu0
        %v1922 = vadd.f32 0.0, %v1921
        %v1923 = vpop.f32.mrb[0].mxu0
        %v1924 = vadd.f32 0.0, %v1923
        %v1925 = vpop.f32.mrb[0].mxu0
        %v1926 = vadd.f32 0.0, %v1925
        %v1927 = vpop.f32.mrb[0].mxu0
        %v1928 = vadd.f32 0.0, %v1927
        %1929 = vmatprep.mubr.bf16.mxu0 0
        %1930 = vmatmul.mubr.bf16.gmra.mrb[0].mxu0 %v1679
        %v1931 = vpop.f32.mrb[0].mxu0
        %v1932 = vadd.f32 0.0, %v1931
        %v1933 = vpop.f32.mrb[0].mxu0
        %v1934 = vadd.f32 0.0, %v1933
        %v1935 = vpop.f32.mrb[0].mxu0
        %v1936 = vadd.f32 0.0, %v1935
        %v1937 = vpop.f32.mrb[0].mxu0
        %v1938 = vadd.f32 0.0, %v1937
        %1939 = vmatprep.mubr.bf16.mxu0 0
        %1940 = vmatmul.mubr.bf16.gmra.mrb[0].mxu0 %v1680
        %v1941 = vpop.f32.mrb[0].mxu0
        %v1942 = vadd.f32 0.0, %v1941
        %v1943 = vpop.f32.mrb[0].mxu0
        %v1944 = vadd.f32 0.0, %v1943
        %v1945 = vpop.f32.mrb[0].mxu0
        %v1946 = vadd.f32 0.0, %v1945
        %v1947 = vpop.f32.mrb[0].mxu0
        %v1948 = vadd.f32 0.0, %v1947
        %1949 = vmatprep.mubr.bf16.mxu0 0
        %1950 = vmatmul.mubr.bf16.gmra.mrb[0].mxu0 %v1681
        %v1951 = vpop.f32.mrb[0].mxu0
        %v1952 = vadd.f32 0.0, %v1951
        %v1953 = vpop.f32.mrb[0].mxu0
        %v1954 = vadd.f32 0.0, %v1953
        %v1955 = vpop.f32.mrb[0].mxu0
        %v1956 = vadd.f32 0.0, %v1955
        %v1957 = vpop.f32.mrb[0].mxu0
        %v1958 = vadd.f32 0.0, %v1957
        %1959 = vmatprep.mubr.bf16.mxu0 0
        %1960 = vmatmul.mubr.bf16.gmra.mrb[0].mxu0 %v1682
        %v1961 = vpop.f32.mrb[0].mxu0
        %v1962 = vadd.f32 0.0, %v1961
        %v1963 = vpop.f32.mrb[0].mxu0
        %v1964 = vadd.f32 0.0, %v1963
        %v1965 = vpop.f32.mrb[0].mxu0
        %v1966 = vadd.f32 0.0, %v1965
        %v1967 = vpop.f32.mrb[0].mxu0
        %v1968 = vadd.f32 0.0, %v1967
        %1969 = vmatprep.mubr.bf16.mxu0 0
        %1970 = vmatmul.mubr.bf16.gmra.mrb[0].mxu0 %v1683
        %v1971 = vpop.f32.mrb[0].mxu0
        %v1972 = vadd.f32 0.0, %v1971
        %v1973 = vpop.f32.mrb[0].mxu0
        %v1974 = vadd.f32 0.0, %v1973
        %v1975 = vpop.f32.mrb[0].mxu0
        %v1976 = vadd.f32 0.0, %v1975
        %v1977 = vpop.f32.mrb[0].mxu0
        %v1978 = vadd.f32 0.0, %v1977
        %1979 = vmatprep.mubr.bf16.mxu0 0
        %1980 = vmatmul.mubr.bf16.gmra.mrb[0].mxu0 %v1684
        %v1981 = vpop.f32.mrb[0].mxu0
        %v1982 = vadd.f32 0.0, %v1981
        %v1983 = vpop.f32.mrb[0].mxu0
        %v1984 = vadd.f32 0.0, %v1983
        %v1985 = vpop.f32.mrb[0].mxu0
        %v1986 = vadd.f32 0.0, %v1985
        %v1987 = vpop.f32.mrb[0].mxu0
        %v1988 = vadd.f32 0.0, %v1987
        %1989 = vmatprep.mubr.bf16.mxu0 0
        %1990 = vmatmul.mubr.bf16.gmra.mrb[0].mxu0 %v1685
        %v1991 = vpop.f32.mrb[0].mxu0
        %v1992 = vadd.f32 0.0, %v1991
        %v1993 = vpop.f32.mrb[0].mxu0
        %v1994 = vadd.f32 0.0, %v1993
        %v1995 = vpop.f32.mrb[0].mxu0
        %v1996 = vadd.f32 0.0, %v1995
        %v1997 = vpop.f32.mrb[0].mxu0
        %v1998 = vadd.f32 0.0, %v1997
        %1999 = vmatprep.mubr.bf16.mxu0 0
        %2000 = vmatmul.mubr.bf16.gmra.mrb[0].mxu0 %v1686
        %v2001 = vpop.f32.mrb[0].mxu0
        %v2002 = vadd.f32 0.0, %v2001
        %v2003 = vpop.f32.mrb[0].mxu0
        %v2004 = vadd.f32 0.0, %v2003
        %v2005 = vpop.f32.mrb[0].mxu0
        %v2006 = vadd.f32 0.0, %v2005
        %v2007 = vpop.f32.mrb[0].mxu0
        %v2008 = vadd.f32 0.0, %v2007
        %2009 = vmatprep.mubr.bf16.mxu0 0
        %2010 = vmatmul.mubr.bf16.gmra.mrb[0].mxu0 %v1687
        %v2011 = vpop.f32.mrb[0].mxu0
        %v2012 = vadd.f32 0.0, %v2011
        %v2013 = vpop.f32.mrb[0].mxu0
        %v2014 = vadd.f32 0.0, %v2013
        %v2015 = vpop.f32.mrb[0].mxu0
        %v2016 = vadd.f32 0.0, %v2015
        %v2017 = vpop.f32.mrb[0].mxu0
        %v2018 = vadd.f32 0.0, %v2017
        %2019 = vmatprep.mubr.bf16.mxu0 0
        %2020 = vmatmul.mubr.bf16.gmra.mrb[0].mxu0 %v1688
        %v2021 = vpop.f32.mrb[0].mxu0
        %v2022 = vadd.f32 0.0, %v2021
        %v2023 = vpop.f32.mrb[0].mxu0
        %v2024 = vadd.f32 0.0, %v2023
        %v2025 = vpop.f32.mrb[0].mxu0
        %v2026 = vadd.f32 0.0, %v2025
        %v2027 = vpop.f32.mrb[0].mxu0
        %v2028 = vadd.f32 0.0, %v2027
        %2029 = vmatprep.mubr.bf16.mxu0 0
        %2030 = vmatmul.mubr.bf16.gmra.mrb[0].mxu0 %v1689
        %v2031 = vpop.f32.mrb[0].mxu0
        %v2032 = vadd.f32 0.0, %v2031
        %v2033 = vpop.f32.mrb[0].mxu0
        %v2034 = vadd.f32 0.0, %v2033
        %v2035 = vpop.f32.mrb[0].mxu0
        %v2036 = vadd.f32 0.0, %v2035
        %v2037 = vpop.f32.mrb[0].mxu0
        %v2038 = vadd.f32 0.0, %v2037
        %2039 = vmatprep.mubr.bf16.mxu0 0
        %2040 = vmatmul.mubr.bf16.gmra.mrb[0].mxu0 %v1690
        %v2041 = vpop.f32.mrb[0].mxu0
        %v2042 = vadd.f32 0.0, %v2041
        %v2043 = vpop.f32.mrb[0].mxu0
        %v2044 = vadd.f32 0.0, %v2043
        %v2045 = vpop.f32.mrb[0].mxu0
        %v2046 = vadd.f32 0.0, %v2045
        %v2047 = vpop.f32.mrb[0].mxu0
        %v2048 = vadd.f32 0.0, %v2047
        %2049 = vmatprep.mubr.bf16.mxu0 0
        %2050 = vmatmul.mubr.bf16.gmra.mrb[0].mxu0 %v1691
        %v2051 = vpop.f32.mrb[0].mxu0
        %v2052 = vadd.f32 0.0, %v2051
        %v2053 = vpop.f32.mrb[0].mxu0
        %v2054 = vadd.f32 0.0, %v2053
        %v2055 = vpop.f32.mrb[0].mxu0
        %v2056 = vadd.f32 0.0, %v2055
        %v2057 = vpop.f32.mrb[0].mxu0
        %v2058 = vadd.f32 0.0, %v2057
        %2059 = vmatprep.mubr.bf16.mxu0 0
        %2060 = vmatmul.mubr.bf16.gmra.mrb[0].mxu0 %v1692
        %v2061 = vpop.f32.mrb[0].mxu0
        %v2062 = vadd.f32 0.0, %v2061
        %v2063 = vpop.f32.mrb[0].mxu0
        %v2064 = vadd.f32 0.0, %v2063
        %v2065 = vpop.f32.mrb[0].mxu0
        %v2066 = vadd.f32 0.0, %v2065
        %v2067 = vpop.f32.mrb[0].mxu0
        %v2068 = vadd.f32 0.0, %v2067
        %2069 = vmatprep.mubr.bf16.mxu0 0
        %2070 = vmatmul.mubr.bf16.gmra.mrb[0].mxu0 %v1693
        %v2071 = vpop.f32.mrb[0].mxu0
        %v2072 = vadd.f32 0.0, %v2071
        %v2073 = vpop.f32.mrb[0].mxu0
        %v2074 = vadd.f32 0.0, %v2073
        %v2075 = vpop.f32.mrb[0].mxu0
        %v2076 = vadd.f32 0.0, %v2075
        %v2077 = vpop.f32.mrb[0].mxu0
        %v2078 = vadd.f32 0.0, %v2077
        %2079 = vmatprep.mubr.bf16.mxu0 0
        %2080 = vmatmul.mubr.bf16.gmra.mrb[0].mxu0 %v1694
        %v2081 = vpop.f32.mrb[0].mxu0
        %v2082 = vadd.f32 0.0, %v2081
        %v2083 = vpop.f32.mrb[0].mxu0
        %v2084 = vadd.f32 0.0, %v2083
        %v2085 = vpop.f32.mrb[0].mxu0
        %v2086 = vadd.f32 0.0, %v2085
        %v2087 = vpop.f32.mrb[0].mxu0
        %v2088 = vadd.f32 0.0, %v2087
        %2089 = vmatprep.mubr.bf16.mxu0 0
        %2090 = vmatmul.mubr.bf16.gmra.mrb[0].mxu0 %v1695
        %v2091 = vpop.f32.mrb[0].mxu0
        %v2092 = vadd.f32 0.0, %v2091
        %v2093 = vpop.f32.mrb[0].mxu0
        %v2094 = vadd.f32 0.0, %v2093
        %v2095 = vpop.f32.mrb[0].mxu0
        %v2096 = vadd.f32 0.0, %v2095
        %v2097 = vpop.f32.mrb[0].mxu0
        %v2098 = vadd.f32 0.0, %v2097
        %2099 = vmatprep.mubr.bf16.mxu0 0
        %2100 = vmatmul.mubr.bf16.gmra.mrb[0].mxu0 %v1696
        %v2101 = vpop.f32.mrb[0].mxu0
        %v2102 = vadd.f32 0.0, %v2101
        %v2103 = vpop.f32.mrb[0].mxu0
        %v2104 = vadd.f32 0.0, %v2103
        %v2105 = vpop.f32.mrb[0].mxu0
        %v2106 = vadd.f32 0.0, %v2105
        %v2107 = vpop.f32.mrb[0].mxu0
        %v2108 = vadd.f32 0.0, %v2107
        %2109 = vmatprep.mubr.bf16.mxu0 0
        %2110 = vmatmul.mubr.bf16.gmra.mrb[0].mxu0 %v1697
        %v2111 = vpop.f32.mrb[0].mxu0
        %v2112 = vadd.f32 0.0, %v2111
        %v2113 = vpop.f32.mrb[0].mxu0
        %v2114 = vadd.f32 0.0, %v2113
        %v2115 = vpop.f32.mrb[0].mxu0
        %v2116 = vadd.f32 0.0, %v2115
        %v2117 = vpop.f32.mrb[0].mxu0
        %v2118 = vadd.f32 0.0, %v2117
        %2119 = vmatprep.mubr.bf16.mxu0 0
        %2120 = vmatmul.mubr.bf16.gmra.mrb[0].mxu0 %v1698
        %v2121 = vpop.f32.mrb[0].mxu0
        %v2122 = vadd.f32 0.0, %v2121
        %v2123 = vpop.f32.mrb[0].mxu0
        %v2124 = vadd.f32 0.0, %v2123
        %v2125 = vpop.f32.mrb[0].mxu0
        %v2126 = vadd.f32 0.0, %v2125
        %v2127 = vpop.f32.mrb[0].mxu0
        %v2128 = vadd.f32 0.0, %v2127
        %2129 = vmatprep.mubr.bf16.mxu0 0
        %2130 = vmatmul.mubr.bf16.gmra.mrb[0].mxu0 %v1699
        %v2131 = vpop.f32.mrb[0].mxu0
        %v2132 = vadd.f32 0.0, %v2131
        %v2133 = vpop.f32.mrb[0].mxu0
        %v2134 = vadd.f32 0.0, %v2133
        %v2135 = vpop.f32.mrb[0].mxu0
        %v2136 = vadd.f32 0.0, %v2135
        %v2137 = vpop.f32.mrb[0].mxu0
        %v2138 = vadd.f32 0.0, %v2137
        %2139 = vmatprep.mubr.bf16.mxu0 0
        %2140 = vmatmul.mubr.bf16.gmra.mrb[0].mxu0 %v1700
        %v2141 = vpop.f32.mrb[0].mxu0
        %v2142 = vadd.f32 0.0, %v2141
        %v2143 = vpop.f32.mrb[0].mxu0
        %v2144 = vadd.f32 0.0, %v2143
        %v2145 = vpop.f32.mrb[0].mxu0
        %v2146 = vadd.f32 0.0, %v2145
        %v2147 = vpop.f32.mrb[0].mxu0
        %v2148 = vadd.f32 0.0, %v2147
        %2149 = vdwg.mxu0
        %v2150 = vld [vmem:[%s4] sm:$0x1]
        %v2152 = vlaneseq
        %v2153 = vshrl.u32 %v2152, 7
        %v2154 = vsub.s32 0, %v2153
        %v2155 = vrot.slane %v2150, %v2154
        %v2157 = vadd.f32 %v1832, %v2155
        %v2158 = vadd.f32 %v1836, %v2155
        %v2159 = vadd.f32 %v1842, %v2155
        %v2160 = vadd.f32 %v1846, %v2155
        %v2161 = vadd.f32 %v1852, %v2155
        %v2162 = vadd.f32 %v1856, %v2155
        %v2163 = vadd.f32 %v1862, %v2155
        %v2164 = vadd.f32 %v1866, %v2155
        %v2165 = vadd.f32 %v1872, %v2155
        %v2166 = vadd.f32 %v1876, %v2155
        %v2167 = vadd.f32 %v1882, %v2155
        %v2168 = vadd.f32 %v1886, %v2155
        %v2169 = vadd.f32 %v1892, %v2155
        %v2170 = vadd.f32 %v1896, %v2155
        %v2171 = vadd.f32 %v1902, %v2155
        %v2172 = vadd.f32 %v1906, %v2155
        %v2173 = vadd.f32 %v1912, %v2155
        %v2174 = vadd.f32 %v1916, %v2155
        %v2175 = vadd.f32 %v1922, %v2155
        %v2176 = vadd.f32 %v1926, %v2155
        %v2177 = vadd.f32 %v1932, %v2155
        %v2178 = vadd.f32 %v1936, %v2155
        %v2179 = vadd.f32 %v1942, %v2155
        %v2180 = vadd.f32 %v1946, %v2155
        %v2181 = vadd.f32 %v1952, %v2155
        %v2182 = vadd.f32 %v1956, %v2155
        %v2183 = vadd.f32 %v1962, %v2155
        %v2184 = vadd.f32 %v1966, %v2155
        %v2185 = vadd.f32 %v1972, %v2155
        %v2186 = vadd.f32 %v1976, %v2155
        %v2187 = vadd.f32 %v1982, %v2155
        %v2188 = vadd.f32 %v1986, %v2155
        %v2189 = vadd.f32 %v1992, %v2155
        %v2190 = vadd.f32 %v1996, %v2155
        %v2191 = vadd.f32 %v2002, %v2155
        %v2192 = vadd.f32 %v2006, %v2155
        %v2193 = vadd.f32 %v2012, %v2155
        %v2194 = vadd.f32 %v2016, %v2155
        %v2195 = vadd.f32 %v2022, %v2155
        %v2196 = vadd.f32 %v2026, %v2155
        %v2197 = vadd.f32 %v2032, %v2155
        %v2198 = vadd.f32 %v2036, %v2155
        %v2199 = vadd.f32 %v2042, %v2155
        %v2200 = vadd.f32 %v2046, %v2155
        %v2201 = vadd.f32 %v2052, %v2155
        %v2202 = vadd.f32 %v2056, %v2155
        %v2203 = vadd.f32 %v2062, %v2155
        %v2204 = vadd.f32 %v2066, %v2155
        %v2205 = vadd.f32 %v2072, %v2155
        %v2206 = vadd.f32 %v2076, %v2155
        %v2207 = vadd.f32 %v2082, %v2155
        %v2208 = vadd.f32 %v2086, %v2155
        %v2209 = vadd.f32 %v2092, %v2155
        %v2210 = vadd.f32 %v2096, %v2155
        %v2211 = vadd.f32 %v2102, %v2155
        %v2212 = vadd.f32 %v2106, %v2155
        %v2213 = vadd.f32 %v2112, %v2155
        %v2214 = vadd.f32 %v2116, %v2155
        %v2215 = vadd.f32 %v2122, %v2155
        %v2216 = vadd.f32 %v2126, %v2155
        %v2217 = vadd.f32 %v2132, %v2155
        %v2218 = vadd.f32 %v2136, %v2155
        %v2219 = vadd.f32 %v2142, %v2155
        %v2220 = vadd.f32 %v2146, %v2155
        %2221 = vst [vmem:[%s410] sm:$0xff] %v2157
        %2222 = vst [vmem:[%s410 + $0x8] sm:$0xff] %v2158
        %2223 = vst [vmem:[%s410 + $0x10] sm:$0xff] %v2159
        %2224 = vst [vmem:[%s410 + $0x18] sm:$0xff] %v2160
        %2225 = vst [vmem:[%s410 + $0x20] sm:$0xff] %v2161
        %2226 = vst [vmem:[%s410 + $0x28] sm:$0xff] %v2162
        %2227 = vst [vmem:[%s410 + $0x30] sm:$0xff] %v2163
        %2228 = vst [vmem:[%s410 + $0x38] sm:$0xff] %v2164
        %2229 = vst [vmem:[%s410 + $0x40] sm:$0xff] %v2165
        %2230 = vst [vmem:[%s410 + $0x48] sm:$0xff] %v2166
        %2231 = vst [vmem:[%s410 + $0x50] sm:$0xff] %v2167
        %2232 = vst [vmem:[%s410 + $0x58] sm:$0xff] %v2168
        %2233 = vst [vmem:[%s410 + $0x60] sm:$0xff] %v2169
        %2234 = vst [vmem:[%s410 + $0x68] sm:$0xff] %v2170
        %2235 = vst [vmem:[%s410 + $0x70] sm:$0xff] %v2171
        %2236 = vst [vmem:[%s410 + $0x78] sm:$0xff] %v2172
        %2237 = vst [vmem:[%s410 + $0x80] sm:$0xff] %v2173
        %2238 = vst [vmem:[%s410 + $0x88] sm:$0xff] %v2174
        %2239 = vst [vmem:[%s410 + $0x90] sm:$0xff] %v2175
        %2240 = vst [vmem:[%s410 + $0x98] sm:$0xff] %v2176
        %2241 = vst [vmem:[%s410 + $0xa0] sm:$0xff] %v2177
        %2242 = vst [vmem:[%s410 + $0xa8] sm:$0xff] %v2178
        %2243 = vst [vmem:[%s410 + $0xb0] sm:$0xff] %v2179
        %2244 = vst [vmem:[%s410 + $0xb8] sm:$0xff] %v2180
        %2245 = vst [vmem:[%s410 + $0xc0] sm:$0xff] %v2181
        %2246 = vst [vmem:[%s410 + $0xc8] sm:$0xff] %v2182
        %2247 = vst [vmem:[%s410 + $0xd0] sm:$0xff] %v2183
        %2248 = vst [vmem:[%s410 + $0xd8] sm:$0xff] %v2184
        %2249 = vst [vmem:[%s410 + $0xe0] sm:$0xff] %v2185
        %2250 = vst [vmem:[%s410 + $0xe8] sm:$0xff] %v2186
        %2251 = vst [vmem:[%s410 + $0xf0] sm:$0xff] %v2187
        %2252 = vst [vmem:[%s410 + $0xf8] sm:$0xff] %v2188
        %2253 = vst [vmem:[%s410 + $0x100] sm:$0xff] %v2189
        %2254 = vst [vmem:[%s410 + $0x108] sm:$0xff] %v2190
        %2255 = vst [vmem:[%s410 + $0x110] sm:$0xff] %v2191
        %2256 = vst [vmem:[%s410 + $0x118] sm:$0xff] %v2192
        %2257 = vst [vmem:[%s410 + $0x120] sm:$0xff] %v2193
        %2258 = vst [vmem:[%s410 + $0x128] sm:$0xff] %v2194
        %2259 = vst [vmem:[%s410 + $0x130] sm:$0xff] %v2195
        %2260 = vst [vmem:[%s410 + $0x138] sm:$0xff] %v2196
        %2261 = vst [vmem:[%s410 + $0x140] sm:$0xff] %v2197
        %2262 = vst [vmem:[%s410 + $0x148] sm:$0xff] %v2198
        %2263 = vst [vmem:[%s410 + $0x150] sm:$0xff] %v2199
        %2264 = vst [vmem:[%s410 + $0x158] sm:$0xff] %v2200
        %2265 = vst [vmem:[%s410 + $0x160] sm:$0xff] %v2201
        %2266 = vst [vmem:[%s410 + $0x168] sm:$0xff] %v2202
        %2267 = vst [vmem:[%s410 + $0x170] sm:$0xff] %v2203
        %2268 = vst [vmem:[%s410 + $0x178] sm:$0xff] %v2204
        %2269 = vst [vmem:[%s410 + $0x180] sm:$0xff] %v2205
        %2270 = vst [vmem:[%s410 + $0x188] sm:$0xff] %v2206
        %2271 = vst [vmem:[%s410 + $0x190] sm:$0xff] %v2207
        %2272 = vst [vmem:[%s410 + $0x198] sm:$0xff] %v2208
        %2273 = vst [vmem:[%s410 + $0x1a0] sm:$0xff] %v2209
        %2274 = vst [vmem:[%s410 + $0x1a8] sm:$0xff] %v2210
        %2275 = vst [vmem:[%s410 + $0x1b0] sm:$0xff] %v2211
        %2276 = vst [vmem:[%s410 + $0x1b8] sm:$0xff] %v2212
        %2277 = vst [vmem:[%s410 + $0x1c0] sm:$0xff] %v2213
        %2278 = vst [vmem:[%s410 + $0x1c8] sm:$0xff] %v2214
        %2279 = vst [vmem:[%s410 + $0x1d0] sm:$0xff] %v2215
        %2280 = vst [vmem:[%s410 + $0x1d8] sm:$0xff] %v2216
        %2281 = vst [vmem:[%s410 + $0x1e0] sm:$0xff] %v2217
        %2282 = vst [vmem:[%s410 + $0x1e8] sm:$0xff] %v2218
        %2283 = vst [vmem:[%s410 + $0x1f0] sm:$0xff] %v2219
        %2284 = vst [vmem:[%s410 + $0x1f8] sm:$0xff] %v2220
        %v2285 = vld [vmem:[%s5] sm:$0x1]
        %v2287 = vlaneseq
        %v2288 = vshrl.u32 %v2287, 7
        %v2289 = vsub.s32 0, %v2288
        %v2290 = vrot.slane %v2285, %v2289
        %v2292 = vadd.f32 %v1834, %v2290
        %v2293 = vadd.f32 %v1838, %v2290
        %v2294 = vadd.f32 %v1844, %v2290
        %v2295 = vadd.f32 %v1848, %v2290
        %v2296 = vadd.f32 %v1854, %v2290
        %v2297 = vadd.f32 %v1858, %v2290
        %v2298 = vadd.f32 %v1864, %v2290
        %v2299 = vadd.f32 %v1868, %v2290
        %v2300 = vadd.f32 %v1874, %v2290
        %v2301 = vadd.f32 %v1878, %v2290
        %v2302 = vadd.f32 %v1884, %v2290
        %v2303 = vadd.f32 %v1888, %v2290
        %v2304 = vadd.f32 %v1894, %v2290
        %v2305 = vadd.f32 %v1898, %v2290
        %v2306 = vadd.f32 %v1904, %v2290
        %v2307 = vadd.f32 %v1908, %v2290
        %v2308 = vadd.f32 %v1914, %v2290
        %v2309 = vadd.f32 %v1918, %v2290
        %v2310 = vadd.f32 %v1924, %v2290
        %v2311 = vadd.f32 %v1928, %v2290
        %v2312 = vadd.f32 %v1934, %v2290
        %v2313 = vadd.f32 %v1938, %v2290
        %v2314 = vadd.f32 %v1944, %v2290
        %v2315 = vadd.f32 %v1948, %v2290
        %v2316 = vadd.f32 %v1954, %v2290
        %v2317 = vadd.f32 %v1958, %v2290
        %v2318 = vadd.f32 %v1964, %v2290
        %v2319 = vadd.f32 %v1968, %v2290
        %v2320 = vadd.f32 %v1974, %v2290
        %v2321 = vadd.f32 %v1978, %v2290
        %v2322 = vadd.f32 %v1984, %v2290
        %v2323 = vadd.f32 %v1988, %v2290
        %v2324 = vadd.f32 %v1994, %v2290
        %v2325 = vadd.f32 %v1998, %v2290
        %v2326 = vadd.f32 %v2004, %v2290
        %v2327 = vadd.f32 %v2008, %v2290
        %v2328 = vadd.f32 %v2014, %v2290
        %v2329 = vadd.f32 %v2018, %v2290
        %v2330 = vadd.f32 %v2024, %v2290
        %v2331 = vadd.f32 %v2028, %v2290
        %v2332 = vadd.f32 %v2034, %v2290
        %v2333 = vadd.f32 %v2038, %v2290
        %v2334 = vadd.f32 %v2044, %v2290
        %v2335 = vadd.f32 %v2048, %v2290
        %v2336 = vadd.f32 %v2054, %v2290
        %v2337 = vadd.f32 %v2058, %v2290
        %v2338 = vadd.f32 %v2064, %v2290
        %v2339 = vadd.f32 %v2068, %v2290
        %v2340 = vadd.f32 %v2074, %v2290
        %v2341 = vadd.f32 %v2078, %v2290
        %v2342 = vadd.f32 %v2084, %v2290
        %v2343 = vadd.f32 %v2088, %v2290
        %v2344 = vadd.f32 %v2094, %v2290
        %v2345 = vadd.f32 %v2098, %v2290
        %v2346 = vadd.f32 %v2104, %v2290
        %v2347 = vadd.f32 %v2108, %v2290
        %v2348 = vadd.f32 %v2114, %v2290
        %v2349 = vadd.f32 %v2118, %v2290
        %v2350 = vadd.f32 %v2124, %v2290
        %v2351 = vadd.f32 %v2128, %v2290
        %v2352 = vadd.f32 %v2134, %v2290
        %v2353 = vadd.f32 %v2138, %v2290
        %v2354 = vadd.f32 %v2144, %v2290
        %v2355 = vadd.f32 %v2148, %v2290
        %v2356 = vtanh.pop %v2292
        %v2357 = vtanh.pop %v2293
        %v2358 = vtanh.pop %v2294
        %v2359 = vtanh.pop %v2295
        %v2360 = vtanh.pop %v2296
        %v2361 = vtanh.pop %v2297
        %v2362 = vtanh.pop %v2298
        %v2363 = vtanh.pop %v2299
        %v2364 = vtanh.pop %v2300
        %v2365 = vtanh.pop %v2301
        %v2366 = vtanh.pop %v2302
        %v2367 = vtanh.pop %v2303
        %v2368 = vtanh.pop %v2304
        %v2369 = vtanh.pop %v2305
        %v2370 = vtanh.pop %v2306
        %v2371 = vtanh.pop %v2307
        %v2372 = vtanh.pop %v2308
        %v2373 = vtanh.pop %v2309
        %v2374 = vtanh.pop %v2310
        %v2375 = vtanh.pop %v2311
        %v2376 = vtanh.pop %v2312
        %v2377 = vtanh.pop %v2313
        %v2378 = vtanh.pop %v2314
        %v2379 = vtanh.pop %v2315
        %v2380 = vtanh.pop %v2316
        %v2381 = vtanh.pop %v2317
        %v2382 = vtanh.pop %v2318
        %v2383 = vtanh.pop %v2319
        %v2384 = vtanh.pop %v2320
        %v2385 = vtanh.pop %v2321
        %v2386 = vtanh.pop %v2322
        %v2387 = vtanh.pop %v2323
        %v2388 = vtanh.pop %v2324
        %v2389 = vtanh.pop %v2325
        %v2390 = vtanh.pop %v2326
        %v2391 = vtanh.pop %v2327
        %v2392 = vtanh.pop %v2328
        %v2393 = vtanh.pop %v2329
        %v2394 = vtanh.pop %v2330
        %v2395 = vtanh.pop %v2331
        %v2396 = vtanh.pop %v2332
        %v2397 = vtanh.pop %v2333
        %v2398 = vtanh.pop %v2334
        %v2399 = vtanh.pop %v2335
        %v2400 = vtanh.pop %v2336
        %v2401 = vtanh.pop %v2337
        %v2402 = vtanh.pop %v2338
        %v2403 = vtanh.pop %v2339
        %v2404 = vtanh.pop %v2340
        %v2405 = vtanh.pop %v2341
        %v2406 = vtanh.pop %v2342
        %v2407 = vtanh.pop %v2343
        %v2408 = vtanh.pop %v2344
        %v2409 = vtanh.pop %v2345
        %v2410 = vtanh.pop %v2346
        %v2411 = vtanh.pop %v2347
        %v2412 = vtanh.pop %v2348
        %v2413 = vtanh.pop %v2349
        %v2414 = vtanh.pop %v2350
        %v2415 = vtanh.pop %v2351
        %v2416 = vtanh.pop %v2352
        %v2417 = vtanh.pop %v2353
        %v2418 = vtanh.pop %v2354
        %v2419 = vtanh.pop %v2355
        %v2420 = vpack.c.bf16 %v2357, %v2356
        %v2421 = vpack.c.bf16 %v2359, %v2358
        %v2422 = vpack.c.bf16 %v2361, %v2360
        %v2423 = vpack.c.bf16 %v2363, %v2362
        %v2424 = vpack.c.bf16 %v2365, %v2364
        %v2425 = vpack.c.bf16 %v2367, %v2366
        %v2426 = vpack.c.bf16 %v2369, %v2368
        %v2427 = vpack.c.bf16 %v2371, %v2370
        %v2428 = vpack.c.bf16 %v2373, %v2372
        %v2429 = vpack.c.bf16 %v2375, %v2374
        %v2430 = vpack.c.bf16 %v2377, %v2376
        %v2431 = vpack.c.bf16 %v2379, %v2378
        %v2432 = vpack.c.bf16 %v2381, %v2380
        %v2433 = vpack.c.bf16 %v2383, %v2382
        %v2434 = vpack.c.bf16 %v2385, %v2384
        %v2435 = vpack.c.bf16 %v2387, %v2386
        %v2436 = vpack.c.bf16 %v2389, %v2388
        %v2437 = vpack.c.bf16 %v2391, %v2390
        %v2438 = vpack.c.bf16 %v2393, %v2392
        %v2439 = vpack.c.bf16 %v2395, %v2394
        %v2440 = vpack.c.bf16 %v2397, %v2396
        %v2441 = vpack.c.bf16 %v2399, %v2398
        %v2442 = vpack.c.bf16 %v2401, %v2400
        %v2443 = vpack.c.bf16 %v2403, %v2402
        %v2444 = vpack.c.bf16 %v2405, %v2404
        %v2445 = vpack.c.bf16 %v2407, %v2406
        %v2446 = vpack.c.bf16 %v2409, %v2408
        %v2447 = vpack.c.bf16 %v2411, %v2410
        %v2448 = vpack.c.bf16 %v2413, %v2412
        %v2449 = vpack.c.bf16 %v2415, %v2414
        %v2450 = vpack.c.bf16 %v2417, %v2416
        %v2451 = vpack.c.bf16 %v2419, %v2418
        %v2452 = vld [vmem:[#allocation8] sm:$0xff]
        %v2453 = vld [vmem:[#allocation8 + $0x8] sm:$0xff]
        %v2454 = vld [vmem:[#allocation8 + $0x10] sm:$0xff]
        %v2455 = vld [vmem:[#allocation8 + $0x18] sm:$0xff]
        %v2456 = vld [vmem:[#allocation8 + $0x20] sm:$0xff]
        %v2457 = vld [vmem:[#allocation8 + $0x28] sm:$0xff]
        %v2458 = vld [vmem:[#allocation8 + $0x30] sm:$0xff]
        %v2459 = vld [vmem:[#allocation8 + $0x38] sm:$0xff]
        %v2460 = vld [vmem:[#allocation8 + $0x40] sm:$0xff]
        %v2461 = vld [vmem:[#allocation8 + $0x48] sm:$0xff]
        %v2462 = vld [vmem:[#allocation8 + $0x50] sm:$0xff]
        %v2463 = vld [vmem:[#allocation8 + $0x58] sm:$0xff]
        %v2464 = vld [vmem:[#allocation8 + $0x60] sm:$0xff]
        %v2465 = vld [vmem:[#allocation8 + $0x68] sm:$0xff]
        %v2466 = vld [vmem:[#allocation8 + $0x70] sm:$0xff]
        %v2467 = vld [vmem:[#allocation8 + $0x78] sm:$0xff]
        %v2468 = vld [vmem:[%s7] sm:$0x3]
        %v2470 = vlaneseq
        %v2471 = vshrl.u32 %v2470, 7
        %v2472 = vsub.s32 0, %v2471
        %v2473 = vrot.slane %v2468, %v2472
        %v2474 = vlaneseq
        %v2475 = vshrl.u32 %v2474, 7
        %v2476 = vsub.s32 1, %v2475
        %v2477 = vrot.slane %v2468, %v2476
        %v2496 = vunpack.c.l.b16 %v2452
        %v2497 = vunpack.c.h.b16 %v2452
        %v2498 = vunpack.c.l.b16 %v2453
        %v2499 = vunpack.c.h.b16 %v2453
        %v2500 = vunpack.c.l.b16 %v2454
        %v2501 = vunpack.c.h.b16 %v2454
        %v2502 = vunpack.c.l.b16 %v2455
        %v2503 = vunpack.c.h.b16 %v2455
        %v2504 = vunpack.c.l.b16 %v2456
        %v2505 = vunpack.c.h.b16 %v2456
        %v2506 = vunpack.c.l.b16 %v2457
        %v2507 = vunpack.c.h.b16 %v2457
        %v2508 = vunpack.c.l.b16 %v2458
        %v2509 = vunpack.c.h.b16 %v2458
        %v2510 = vunpack.c.l.b16 %v2459
        %v2511 = vunpack.c.h.b16 %v2459
        %v2512 = vunpack.c.l.b16 %v2460
        %v2513 = vunpack.c.h.b16 %v2460
        %v2514 = vunpack.c.l.b16 %v2461
        %v2515 = vunpack.c.h.b16 %v2461
        %v2516 = vunpack.c.l.b16 %v2462
        %v2517 = vunpack.c.h.b16 %v2462
        %v2518 = vunpack.c.l.b16 %v2463
        %v2519 = vunpack.c.h.b16 %v2463
        %v2520 = vunpack.c.l.b16 %v2464
        %v2521 = vunpack.c.h.b16 %v2464
        %v2522 = vunpack.c.l.b16 %v2465
        %v2523 = vunpack.c.h.b16 %v2465
        %v2524 = vunpack.c.l.b16 %v2466
        %v2525 = vunpack.c.h.b16 %v2466
        %v2526 = vunpack.c.l.b16 %v2467
        %v2527 = vunpack.c.h.b16 %v2467
        %v2528 = vpack.c.b16 %v2498, %v2496
        %v2529 = vpack.c.b16 %v2499, %v2497
        %v2530 = vpack.c.b16 %v2502, %v2500
        %v2531 = vpack.c.b16 %v2503, %v2501
        %v2532 = vpack.c.b16 %v2506, %v2504
        %v2533 = vpack.c.b16 %v2507, %v2505
        %v2534 = vpack.c.b16 %v2510, %v2508
        %v2535 = vpack.c.b16 %v2511, %v2509
        %v2536 = vpack.c.b16 %v2514, %v2512
        %v2537 = vpack.c.b16 %v2515, %v2513
        %v2538 = vpack.c.b16 %v2518, %v2516
        %v2539 = vpack.c.b16 %v2519, %v2517
        %v2540 = vpack.c.b16 %v2522, %v2520
        %v2541 = vpack.c.b16 %v2523, %v2521
        %v2542 = vpack.c.b16 %v2526, %v2524
        %v2543 = vpack.c.b16 %v2527, %v2525
        %2560 = vmatprep.subr.bf16.mxu0 %v2529
        %2561 = vmatpush1.bf16.msra.mxu0 %v2528
        %2562 = vmatprep.subr.bf16.mxu0 %v2531
        %2563 = vmatpush1.bf16.msra.mxu0 %v2530
        %2564 = vmatprep.subr.bf16.mxu0 %v2533
        %2565 = vmatpush1.bf16.msra.mxu0 %v2532
        %2566 = vmatprep.subr.bf16.mxu0 %v2535
        %2567 = vmatpush1.bf16.msra.mxu0 %v2534
        %2568 = vmatprep.subr.bf16.mxu0 %v2537
        %2569 = vmatpush1.bf16.msra.mxu0 %v2536
        %2570 = vmatprep.subr.bf16.mxu0 %v2539
        %2571 = vmatpush1.bf16.msra.mxu0 %v2538
        %2572 = vmatprep.subr.bf16.mxu0 %v2541
        %2573 = vmatpush1.bf16.msra.mxu0 %v2540
        %2574 = vmatprep.subr.bf16.mxu0 %v2543
        %2575 = vmatpush1.bf16.msra.mxu0 %v2542
        %2576 = vmatprep.subr.bf16.mxu0 0
        %2577 = vmatpush1.bf16.msra.mxu0 0
        %2578 = vmatprep.subr.bf16.mxu0 0
        %2579 = vmatpush1.bf16.msra.mxu0 0
        %2580 = vmatprep.subr.bf16.mxu0 0
        %2581 = vmatpush1.bf16.msra.mxu0 0
        %2582 = vmatprep.subr.bf16.mxu0 0
        %2583 = vmatpush1.bf16.msra.mxu0 0
        %2584 = vmatprep.subr.bf16.mxu0 0
        %2585 = vmatpush1.bf16.msra.mxu0 0
        %2586 = vmatprep.subr.bf16.mxu0 0
        %2587 = vmatpush1.bf16.msra.mxu0 0
        %2588 = vmatprep.subr.bf16.mxu0 0
        %2589 = vmatpush1.bf16.msra.mxu0 0
        %2590 = vmatprep.subr.bf16.mxu0 0
        %2591 = vmatpush1.bf16.msra.mxu0 0
        %2592 = vmatprep.mubr.bf16.mxu0 0
        %2593 = vmatmul.mubr.bf16.gmra.mrb[0].mxu0 %v2420
        %v2594 = vpop.f32.mrb[0].mxu0
        %v2595 = vadd.f32 %v2473, %v2594
        %v2596 = vpop.f32.mrb[0].mxu0
        %v2597 = vadd.f32 %v2477, %v2596
        %v2598 = vpop.f32.mrb[0].mxu0
        %v2599 = vadd.f32 %v2473, %v2598
        %v2600 = vpop.f32.mrb[0].mxu0
        %v2601 = vadd.f32 %v2477, %v2600
        %2602 = vmatprep.mubr.bf16.mxu0 0
        %2603 = vmatmul.mubr.bf16.gmra.mrb[0].mxu0 %v2421
        %v2604 = vpop.f32.mrb[0].mxu0
        %v2605 = vadd.f32 %v2473, %v2604
        %v2606 = vpop.f32.mrb[0].mxu0
        %v2607 = vadd.f32 %v2477, %v2606
        %v2608 = vpop.f32.mrb[0].mxu0
        %v2609 = vadd.f32 %v2473, %v2608
        %v2610 = vpop.f32.mrb[0].mxu0
        %v2611 = vadd.f32 %v2477, %v2610
        %2612 = vmatprep.mubr.bf16.mxu0 0
        %2613 = vmatmul.mubr.bf16.gmra.mrb[0].mxu0 %v2422
        %v2614 = vpop.f32.mrb[0].mxu0
        %v2615 = vadd.f32 %v2473, %v2614
        %v2616 = vpop.f32.mrb[0].mxu0
        %v2617 = vadd.f32 %v2477, %v2616
        %v2618 = vpop.f32.mrb[0].mxu0
        %v2619 = vadd.f32 %v2473, %v2618
        %v2620 = vpop.f32.mrb[0].mxu0
        %v2621 = vadd.f32 %v2477, %v2620
        %2622 = vmatprep.mubr.bf16.mxu0 0
        %2623 = vmatmul.mubr.bf16.gmra.mrb[0].mxu0 %v2423
        %v2624 = vpop.f32.mrb[0].mxu0
        %v2625 = vadd.f32 %v2473, %v2624
        %v2626 = vpop.f32.mrb[0].mxu0
        %v2627 = vadd.f32 %v2477, %v2626
        %v2628 = vpop.f32.mrb[0].mxu0
        %v2629 = vadd.f32 %v2473, %v2628
        %v2630 = vpop.f32.mrb[0].mxu0
        %v2631 = vadd.f32 %v2477, %v2630
        %2632 = vmatprep.mubr.bf16.mxu0 0
        %2633 = vmatmul.mubr.bf16.gmra.mrb[0].mxu0 %v2424
        %v2634 = vpop.f32.mrb[0].mxu0
        %v2635 = vadd.f32 %v2473, %v2634
        %v2636 = vpop.f32.mrb[0].mxu0
        %v2637 = vadd.f32 %v2477, %v2636
        %v2638 = vpop.f32.mrb[0].mxu0
        %v2639 = vadd.f32 %v2473, %v2638
        %v2640 = vpop.f32.mrb[0].mxu0
        %v2641 = vadd.f32 %v2477, %v2640
        %2642 = vmatprep.mubr.bf16.mxu0 0
        %2643 = vmatmul.mubr.bf16.gmra.mrb[0].mxu0 %v2425
        %v2644 = vpop.f32.mrb[0].mxu0
        %v2645 = vadd.f32 %v2473, %v2644
        %v2646 = vpop.f32.mrb[0].mxu0
        %v2647 = vadd.f32 %v2477, %v2646
        %v2648 = vpop.f32.mrb[0].mxu0
        %v2649 = vadd.f32 %v2473, %v2648
        %v2650 = vpop.f32.mrb[0].mxu0
        %v2651 = vadd.f32 %v2477, %v2650
        %2652 = vmatprep.mubr.bf16.mxu0 0
        %2653 = vmatmul.mubr.bf16.gmra.mrb[0].mxu0 %v2426
        %v2654 = vpop.f32.mrb[0].mxu0
        %v2655 = vadd.f32 %v2473, %v2654
        %v2656 = vpop.f32.mrb[0].mxu0
        %v2657 = vadd.f32 %v2477, %v2656
        %v2658 = vpop.f32.mrb[0].mxu0
        %v2659 = vadd.f32 %v2473, %v2658
        %v2660 = vpop.f32.mrb[0].mxu0
        %v2661 = vadd.f32 %v2477, %v2660
        %2662 = vmatprep.mubr.bf16.mxu0 0
        %2663 = vmatmul.mubr.bf16.gmra.mrb[0].mxu0 %v2427
        %v2664 = vpop.f32.mrb[0].mxu0
        %v2665 = vadd.f32 %v2473, %v2664
        %v2666 = vpop.f32.mrb[0].mxu0
        %v2667 = vadd.f32 %v2477, %v2666
        %v2668 = vpop.f32.mrb[0].mxu0
        %v2669 = vadd.f32 %v2473, %v2668
        %v2670 = vpop.f32.mrb[0].mxu0
        %v2671 = vadd.f32 %v2477, %v2670
        %2672 = vmatprep.mubr.bf16.mxu0 0
        %2673 = vmatmul.mubr.bf16.gmra.mrb[0].mxu0 %v2428
        %v2674 = vpop.f32.mrb[0].mxu0
        %v2675 = vadd.f32 %v2473, %v2674
        %v2676 = vpop.f32.mrb[0].mxu0
        %v2677 = vadd.f32 %v2477, %v2676
        %v2678 = vpop.f32.mrb[0].mxu0
        %v2679 = vadd.f32 %v2473, %v2678
        %v2680 = vpop.f32.mrb[0].mxu0
        %v2681 = vadd.f32 %v2477, %v2680
        %2682 = vmatprep.mubr.bf16.mxu0 0
        %2683 = vmatmul.mubr.bf16.gmra.mrb[0].mxu0 %v2429
        %v2684 = vpop.f32.mrb[0].mxu0
        %v2685 = vadd.f32 %v2473, %v2684
        %v2686 = vpop.f32.mrb[0].mxu0
        %v2687 = vadd.f32 %v2477, %v2686
        %v2688 = vpop.f32.mrb[0].mxu0
        %v2689 = vadd.f32 %v2473, %v2688
        %v2690 = vpop.f32.mrb[0].mxu0
        %v2691 = vadd.f32 %v2477, %v2690
        %2692 = vmatprep.mubr.bf16.mxu0 0
        %2693 = vmatmul.mubr.bf16.gmra.mrb[0].mxu0 %v2430
        %v2694 = vpop.f32.mrb[0].mxu0
        %v2695 = vadd.f32 %v2473, %v2694
        %v2696 = vpop.f32.mrb[0].mxu0
        %v2697 = vadd.f32 %v2477, %v2696
        %v2698 = vpop.f32.mrb[0].mxu0
        %v2699 = vadd.f32 %v2473, %v2698
        %v2700 = vpop.f32.mrb[0].mxu0
        %v2701 = vadd.f32 %v2477, %v2700
        %2702 = vmatprep.mubr.bf16.mxu0 0
        %2703 = vmatmul.mubr.bf16.gmra.mrb[0].mxu0 %v2431
        %v2704 = vpop.f32.mrb[0].mxu0
        %v2705 = vadd.f32 %v2473, %v2704
        %v2706 = vpop.f32.mrb[0].mxu0
        %v2707 = vadd.f32 %v2477, %v2706
        %v2708 = vpop.f32.mrb[0].mxu0
        %v2709 = vadd.f32 %v2473, %v2708
        %v2710 = vpop.f32.mrb[0].mxu0
        %v2711 = vadd.f32 %v2477, %v2710
        %2712 = vmatprep.mubr.bf16.mxu0 0
        %2713 = vmatmul.mubr.bf16.gmra.mrb[0].mxu0 %v2432
        %v2714 = vpop.f32.mrb[0].mxu0
        %v2715 = vadd.f32 %v2473, %v2714
        %v2716 = vpop.f32.mrb[0].mxu0
        %v2717 = vadd.f32 %v2477, %v2716
        %v2718 = vpop.f32.mrb[0].mxu0
        %v2719 = vadd.f32 %v2473, %v2718
        %v2720 = vpop.f32.mrb[0].mxu0
        %v2721 = vadd.f32 %v2477, %v2720
        %2722 = vmatprep.mubr.bf16.mxu0 0
        %2723 = vmatmul.mubr.bf16.gmra.mrb[0].mxu0 %v2433
        %v2724 = vpop.f32.mrb[0].mxu0
        %v2725 = vadd.f32 %v2473, %v2724
        %v2726 = vpop.f32.mrb[0].mxu0
        %v2727 = vadd.f32 %v2477, %v2726
        %v2728 = vpop.f32.mrb[0].mxu0
        %v2729 = vadd.f32 %v2473, %v2728
        %v2730 = vpop.f32.mrb[0].mxu0
        %v2731 = vadd.f32 %v2477, %v2730
        %2732 = vmatprep.mubr.bf16.mxu0 0
        %2733 = vmatmul.mubr.bf16.gmra.mrb[0].mxu0 %v2434
        %v2734 = vpop.f32.mrb[0].mxu0
        %v2735 = vadd.f32 %v2473, %v2734
        %v2736 = vpop.f32.mrb[0].mxu0
        %v2737 = vadd.f32 %v2477, %v2736
        %v2738 = vpop.f32.mrb[0].mxu0
        %v2739 = vadd.f32 %v2473, %v2738
        %v2740 = vpop.f32.mrb[0].mxu0
        %v2741 = vadd.f32 %v2477, %v2740
        %2742 = vmatprep.mubr.bf16.mxu0 0
        %2743 = vmatmul.mubr.bf16.gmra.mrb[0].mxu0 %v2435
        %v2744 = vpop.f32.mrb[0].mxu0
        %v2745 = vadd.f32 %v2473, %v2744
        %v2746 = vpop.f32.mrb[0].mxu0
        %v2747 = vadd.f32 %v2477, %v2746
        %v2748 = vpop.f32.mrb[0].mxu0
        %v2749 = vadd.f32 %v2473, %v2748
        %v2750 = vpop.f32.mrb[0].mxu0
        %v2751 = vadd.f32 %v2477, %v2750
        %2752 = vmatprep.mubr.bf16.mxu0 0
        %2753 = vmatmul.mubr.bf16.gmra.mrb[0].mxu0 %v2436
        %v2754 = vpop.f32.mrb[0].mxu0
        %v2755 = vadd.f32 %v2473, %v2754
        %v2756 = vpop.f32.mrb[0].mxu0
        %v2757 = vadd.f32 %v2477, %v2756
        %v2758 = vpop.f32.mrb[0].mxu0
        %v2759 = vadd.f32 %v2473, %v2758
        %v2760 = vpop.f32.mrb[0].mxu0
        %v2761 = vadd.f32 %v2477, %v2760
        %2762 = vmatprep.mubr.bf16.mxu0 0
        %2763 = vmatmul.mubr.bf16.gmra.mrb[0].mxu0 %v2437
        %v2764 = vpop.f32.mrb[0].mxu0
        %v2765 = vadd.f32 %v2473, %v2764
        %v2766 = vpop.f32.mrb[0].mxu0
        %v2767 = vadd.f32 %v2477, %v2766
        %v2768 = vpop.f32.mrb[0].mxu0
        %v2769 = vadd.f32 %v2473, %v2768
        %v2770 = vpop.f32.mrb[0].mxu0
        %v2771 = vadd.f32 %v2477, %v2770
        %2772 = vmatprep.mubr.bf16.mxu0 0
        %2773 = vmatmul.mubr.bf16.gmra.mrb[0].mxu0 %v2438
        %v2774 = vpop.f32.mrb[0].mxu0
        %v2775 = vadd.f32 %v2473, %v2774
        %v2776 = vpop.f32.mrb[0].mxu0
        %v2777 = vadd.f32 %v2477, %v2776
        %v2778 = vpop.f32.mrb[0].mxu0
        %v2779 = vadd.f32 %v2473, %v2778
        %v2780 = vpop.f32.mrb[0].mxu0
        %v2781 = vadd.f32 %v2477, %v2780
        %2782 = vmatprep.mubr.bf16.mxu0 0
        %2783 = vmatmul.mubr.bf16.gmra.mrb[0].mxu0 %v2439
        %v2784 = vpop.f32.mrb[0].mxu0
        %v2785 = vadd.f32 %v2473, %v2784
        %v2786 = vpop.f32.mrb[0].mxu0
        %v2787 = vadd.f32 %v2477, %v2786
        %v2788 = vpop.f32.mrb[0].mxu0
        %v2789 = vadd.f32 %v2473, %v2788
        %v2790 = vpop.f32.mrb[0].mxu0
        %v2791 = vadd.f32 %v2477, %v2790
        %2792 = vmatprep.mubr.bf16.mxu0 0
        %2793 = vmatmul.mubr.bf16.gmra.mrb[0].mxu0 %v2440
        %v2794 = vpop.f32.mrb[0].mxu0
        %v2795 = vadd.f32 %v2473, %v2794
        %v2796 = vpop.f32.mrb[0].mxu0
        %v2797 = vadd.f32 %v2477, %v2796
        %v2798 = vpop.f32.mrb[0].mxu0
        %v2799 = vadd.f32 %v2473, %v2798
        %v2800 = vpop.f32.mrb[0].mxu0
        %v2801 = vadd.f32 %v2477, %v2800
        %2802 = vmatprep.mubr.bf16.mxu0 0
        %2803 = vmatmul.mubr.bf16.gmra.mrb[0].mxu0 %v2441
        %v2804 = vpop.f32.mrb[0].mxu0
        %v2805 = vadd.f32 %v2473, %v2804
        %v2806 = vpop.f32.mrb[0].mxu0
        %v2807 = vadd.f32 %v2477, %v2806
        %v2808 = vpop.f32.mrb[0].mxu0
        %v2809 = vadd.f32 %v2473, %v2808
        %v2810 = vpop.f32.mrb[0].mxu0
        %v2811 = vadd.f32 %v2477, %v2810
        %2812 = vmatprep.mubr.bf16.mxu0 0
        %2813 = vmatmul.mubr.bf16.gmra.mrb[0].mxu0 %v2442
        %v2814 = vpop.f32.mrb[0].mxu0
        %v2815 = vadd.f32 %v2473, %v2814
        %v2816 = vpop.f32.mrb[0].mxu0
        %v2817 = vadd.f32 %v2477, %v2816
        %v2818 = vpop.f32.mrb[0].mxu0
        %v2819 = vadd.f32 %v2473, %v2818
        %v2820 = vpop.f32.mrb[0].mxu0
        %v2821 = vadd.f32 %v2477, %v2820
        %2822 = vmatprep.mubr.bf16.mxu0 0
        %2823 = vmatmul.mubr.bf16.gmra.mrb[0].mxu0 %v2443
        %v2824 = vpop.f32.mrb[0].mxu0
        %v2825 = vadd.f32 %v2473, %v2824
        %v2826 = vpop.f32.mrb[0].mxu0
        %v2827 = vadd.f32 %v2477, %v2826
        %v2828 = vpop.f32.mrb[0].mxu0
        %v2829 = vadd.f32 %v2473, %v2828
        %v2830 = vpop.f32.mrb[0].mxu0
        %v2831 = vadd.f32 %v2477, %v2830
        %2832 = vmatprep.mubr.bf16.mxu0 0
        %2833 = vmatmul.mubr.bf16.gmra.mrb[0].mxu0 %v2444
        %v2834 = vpop.f32.mrb[0].mxu0
        %v2835 = vadd.f32 %v2473, %v2834
        %v2836 = vpop.f32.mrb[0].mxu0
        %v2837 = vadd.f32 %v2477, %v2836
        %v2838 = vpop.f32.mrb[0].mxu0
        %v2839 = vadd.f32 %v2473, %v2838
        %v2840 = vpop.f32.mrb[0].mxu0
        %v2841 = vadd.f32 %v2477, %v2840
        %2842 = vmatprep.mubr.bf16.mxu0 0
        %2843 = vmatmul.mubr.bf16.gmra.mrb[0].mxu0 %v2445
        %v2844 = vpop.f32.mrb[0].mxu0
        %v2845 = vadd.f32 %v2473, %v2844
        %v2846 = vpop.f32.mrb[0].mxu0
        %v2847 = vadd.f32 %v2477, %v2846
        %v2848 = vpop.f32.mrb[0].mxu0
        %v2849 = vadd.f32 %v2473, %v2848
        %v2850 = vpop.f32.mrb[0].mxu0
        %v2851 = vadd.f32 %v2477, %v2850
        %2852 = vmatprep.mubr.bf16.mxu0 0
        %2853 = vmatmul.mubr.bf16.gmra.mrb[0].mxu0 %v2446
        %v2854 = vpop.f32.mrb[0].mxu0
        %v2855 = vadd.f32 %v2473, %v2854
        %v2856 = vpop.f32.mrb[0].mxu0
        %v2857 = vadd.f32 %v2477, %v2856
        %v2858 = vpop.f32.mrb[0].mxu0
        %v2859 = vadd.f32 %v2473, %v2858
        %v2860 = vpop.f32.mrb[0].mxu0
        %v2861 = vadd.f32 %v2477, %v2860
        %2862 = vmatprep.mubr.bf16.mxu0 0
        %2863 = vmatmul.mubr.bf16.gmra.mrb[0].mxu0 %v2447
        %v2864 = vpop.f32.mrb[0].mxu0
        %v2865 = vadd.f32 %v2473, %v2864
        %v2866 = vpop.f32.mrb[0].mxu0
        %v2867 = vadd.f32 %v2477, %v2866
        %v2868 = vpop.f32.mrb[0].mxu0
        %v2869 = vadd.f32 %v2473, %v2868
        %v2870 = vpop.f32.mrb[0].mxu0
        %v2871 = vadd.f32 %v2477, %v2870
        %2872 = vmatprep.mubr.bf16.mxu0 0
        %2873 = vmatmul.mubr.bf16.gmra.mrb[0].mxu0 %v2448
        %v2874 = vpop.f32.mrb[0].mxu0
        %v2875 = vadd.f32 %v2473, %v2874
        %v2876 = vpop.f32.mrb[0].mxu0
        %v2877 = vadd.f32 %v2477, %v2876
        %v2878 = vpop.f32.mrb[0].mxu0
        %v2879 = vadd.f32 %v2473, %v2878
        %v2880 = vpop.f32.mrb[0].mxu0
        %v2881 = vadd.f32 %v2477, %v2880
        %2882 = vmatprep.mubr.bf16.mxu0 0
        %2883 = vmatmul.mubr.bf16.gmra.mrb[0].mxu0 %v2449
        %v2884 = vpop.f32.mrb[0].mxu0
        %v2885 = vadd.f32 %v2473, %v2884
        %v2886 = vpop.f32.mrb[0].mxu0
        %v2887 = vadd.f32 %v2477, %v2886
        %v2888 = vpop.f32.mrb[0].mxu0
        %v2889 = vadd.f32 %v2473, %v2888
        %v2890 = vpop.f32.mrb[0].mxu0
        %v2891 = vadd.f32 %v2477, %v2890
        %2892 = vmatprep.mubr.bf16.mxu0 0
        %2893 = vmatmul.mubr.bf16.gmra.mrb[0].mxu0 %v2450
        %v2894 = vpop.f32.mrb[0].mxu0
        %v2895 = vadd.f32 %v2473, %v2894
        %v2896 = vpop.f32.mrb[0].mxu0
        %v2897 = vadd.f32 %v2477, %v2896
        %v2898 = vpop.f32.mrb[0].mxu0
        %v2899 = vadd.f32 %v2473, %v2898
        %v2900 = vpop.f32.mrb[0].mxu0
        %v2901 = vadd.f32 %v2477, %v2900
        %2902 = vmatprep.mubr.bf16.mxu0 0
        %2903 = vmatmul.mubr.bf16.gmra.mrb[0].mxu0 %v2451
        %v2904 = vpop.f32.mrb[0].mxu0
        %v2905 = vadd.f32 %v2473, %v2904
        %v2906 = vpop.f32.mrb[0].mxu0
        %v2907 = vadd.f32 %v2477, %v2906
        %v2908 = vpop.f32.mrb[0].mxu0
        %v2909 = vadd.f32 %v2473, %v2908
        %v2910 = vpop.f32.mrb[0].mxu0
        %v2911 = vadd.f32 %v2477, %v2910
        %2912 = vdwg.mxu0
        %2913 = vst [vmem:[%s396] sm:$0xff] %v2595
        %2914 = vst [vmem:[%s396 + $0x8] sm:$0xff] %v2597
        %2915 = vst [vmem:[%s396 + $0x10] sm:$0xff] %v2599
        %2916 = vst [vmem:[%s396 + $0x18] sm:$0xff] %v2601
        %2917 = vst [vmem:[%s396 + $0x20] sm:$0xff] %v2605
        %2918 = vst [vmem:[%s396 + $0x28] sm:$0xff] %v2607
        %2919 = vst [vmem:[%s396 + $0x30] sm:$0xff] %v2609
        %2920 = vst [vmem:[%s396 + $0x38] sm:$0xff] %v2611
        %2921 = vst [vmem:[%s396 + $0x40] sm:$0xff] %v2615
        %2922 = vst [vmem:[%s396 + $0x48] sm:$0xff] %v2617
        %2923 = vst [vmem:[%s396 + $0x50] sm:$0xff] %v2619
        %2924 = vst [vmem:[%s396 + $0x58] sm:$0xff] %v2621
        %2925 = vst [vmem:[%s396 + $0x60] sm:$0xff] %v2625
        %2926 = vst [vmem:[%s396 + $0x68] sm:$0xff] %v2627
        %2927 = vst [vmem:[%s396 + $0x70] sm:$0xff] %v2629
        %2928 = vst [vmem:[%s396 + $0x78] sm:$0xff] %v2631
        %2929 = vst [vmem:[%s396 + $0x80] sm:$0xff] %v2635
        %2930 = vst [vmem:[%s396 + $0x88] sm:$0xff] %v2637
        %2931 = vst [vmem:[%s396 + $0x90] sm:$0xff] %v2639
        %2932 = vst [vmem:[%s396 + $0x98] sm:$0xff] %v2641
        %2933 = vst [vmem:[%s396 + $0xa0] sm:$0xff] %v2645
        %2934 = vst [vmem:[%s396 + $0xa8] sm:$0xff] %v2647
        %2935 = vst [vmem:[%s396 + $0xb0] sm:$0xff] %v2649
        %2936 = vst [vmem:[%s396 + $0xb8] sm:$0xff] %v2651
        %2937 = vst [vmem:[%s396 + $0xc0] sm:$0xff] %v2655
        %2938 = vst [vmem:[%s396 + $0xc8] sm:$0xff] %v2657
        %2939 = vst [vmem:[%s396 + $0xd0] sm:$0xff] %v2659
        %2940 = vst [vmem:[%s396 + $0xd8] sm:$0xff] %v2661
        %2941 = vst [vmem:[%s396 + $0xe0] sm:$0xff] %v2665
        %2942 = vst [vmem:[%s396 + $0xe8] sm:$0xff] %v2667
        %2943 = vst [vmem:[%s396 + $0xf0] sm:$0xff] %v2669
        %2944 = vst [vmem:[%s396 + $0xf8] sm:$0xff] %v2671
        %2945 = vst [vmem:[%s396 + $0x100] sm:$0xff] %v2675
        %2946 = vst [vmem:[%s396 + $0x108] sm:$0xff] %v2677
        %2947 = vst [vmem:[%s396 + $0x110] sm:$0xff] %v2679
        %2948 = vst [vmem:[%s396 + $0x118] sm:$0xff] %v2681
        %2949 = vst [vmem:[%s396 + $0x120] sm:$0xff] %v2685
        %2950 = vst [vmem:[%s396 + $0x128] sm:$0xff] %v2687
        %2951 = vst [vmem:[%s396 + $0x130] sm:$0xff] %v2689
        %2952 = vst [vmem:[%s396 + $0x138] sm:$0xff] %v2691
        %2953 = vst [vmem:[%s396 + $0x140] sm:$0xff] %v2695
        %2954 = vst [vmem:[%s396 + $0x148] sm:$0xff] %v2697
        %2955 = vst [vmem:[%s396 + $0x150] sm:$0xff] %v2699
        %2956 = vst [vmem:[%s396 + $0x158] sm:$0xff] %v2701
        %2957 = vst [vmem:[%s396 + $0x160] sm:$0xff] %v2705
        %2958 = vst [vmem:[%s396 + $0x168] sm:$0xff] %v2707
        %2959 = vst [vmem:[%s396 + $0x170] sm:$0xff] %v2709
        %2960 = vst [vmem:[%s396 + $0x178] sm:$0xff] %v2711
        %2961 = vst [vmem:[%s396 + $0x180] sm:$0xff] %v2715
        %2962 = vst [vmem:[%s396 + $0x188] sm:$0xff] %v2717
        %2963 = vst [vmem:[%s396 + $0x190] sm:$0xff] %v2719
        %2964 = vst [vmem:[%s396 + $0x198] sm:$0xff] %v2721
        %2965 = vst [vmem:[%s396 + $0x1a0] sm:$0xff] %v2725
        %2966 = vst [vmem:[%s396 + $0x1a8] sm:$0xff] %v2727
        %2967 = vst [vmem:[%s396 + $0x1b0] sm:$0xff] %v2729
        %2968 = vst [vmem:[%s396 + $0x1b8] sm:$0xff] %v2731
        %2969 = vst [vmem:[%s396 + $0x1c0] sm:$0xff] %v2735
        %2970 = vst [vmem:[%s396 + $0x1c8] sm:$0xff] %v2737
        %2971 = vst [vmem:[%s396 + $0x1d0] sm:$0xff] %v2739
        %2972 = vst [vmem:[%s396 + $0x1d8] sm:$0xff] %v2741
        %2973 = vst [vmem:[%s396 + $0x1e0] sm:$0xff] %v2745
        %2974 = vst [vmem:[%s396 + $0x1e8] sm:$0xff] %v2747
        %2975 = vst [vmem:[%s396 + $0x1f0] sm:$0xff] %v2749
        %2976 = vst [vmem:[%s396 + $0x1f8] sm:$0xff] %v2751
        %2977 = vst [vmem:[%s396 + $0x200] sm:$0xff] %v2755
        %2978 = vst [vmem:[%s396 + $0x208] sm:$0xff] %v2757
        %2979 = vst [vmem:[%s396 + $0x210] sm:$0xff] %v2759
        %2980 = vst [vmem:[%s396 + $0x218] sm:$0xff] %v2761
        %2981 = vst [vmem:[%s396 + $0x220] sm:$0xff] %v2765
        %2982 = vst [vmem:[%s396 + $0x228] sm:$0xff] %v2767
        %2983 = vst [vmem:[%s396 + $0x230] sm:$0xff] %v2769
        %2984 = vst [vmem:[%s396 + $0x238] sm:$0xff] %v2771
        %2985 = vst [vmem:[%s396 + $0x240] sm:$0xff] %v2775
        %2986 = vst [vmem:[%s396 + $0x248] sm:$0xff] %v2777
        %2987 = vst [vmem:[%s396 + $0x250] sm:$0xff] %v2779
        %2988 = vst [vmem:[%s396 + $0x258] sm:$0xff] %v2781
        %2989 = vst [vmem:[%s396 + $0x260] sm:$0xff] %v2785
        %2990 = vst [vmem:[%s396 + $0x268] sm:$0xff] %v2787
        %2991 = vst [vmem:[%s396 + $0x270] sm:$0xff] %v2789
        %2992 = vst [vmem:[%s396 + $0x278] sm:$0xff] %v2791
        %2993 = vst [vmem:[%s396 + $0x280] sm:$0xff] %v2795
        %2994 = vst [vmem:[%s396 + $0x288] sm:$0xff] %v2797
        %2995 = vst [vmem:[%s396 + $0x290] sm:$0xff] %v2799
        %2996 = vst [vmem:[%s396 + $0x298] sm:$0xff] %v2801
        %2997 = vst [vmem:[%s396 + $0x2a0] sm:$0xff] %v2805
        %2998 = vst [vmem:[%s396 + $0x2a8] sm:$0xff] %v2807
        %2999 = vst [vmem:[%s396 + $0x2b0] sm:$0xff] %v2809
        %3000 = vst [vmem:[%s396 + $0x2b8] sm:$0xff] %v2811
        %3001 = vst [vmem:[%s396 + $0x2c0] sm:$0xff] %v2815
        %3002 = vst [vmem:[%s396 + $0x2c8] sm:$0xff] %v2817
        %3003 = vst [vmem:[%s396 + $0x2d0] sm:$0xff] %v2819
        %3004 = vst [vmem:[%s396 + $0x2d8] sm:$0xff] %v2821
        %3005 = vst [vmem:[%s396 + $0x2e0] sm:$0xff] %v2825
        %3006 = vst [vmem:[%s396 + $0x2e8] sm:$0xff] %v2827
        %3007 = vst [vmem:[%s396 + $0x2f0] sm:$0xff] %v2829
        %3008 = vst [vmem:[%s396 + $0x2f8] sm:$0xff] %v2831
        %3009 = vst [vmem:[%s396 + $0x300] sm:$0xff] %v2835
        %3010 = vst [vmem:[%s396 + $0x308] sm:$0xff] %v2837
        %3011 = vst [vmem:[%s396 + $0x310] sm:$0xff] %v2839
        %3012 = vst [vmem:[%s396 + $0x318] sm:$0xff] %v2841
        %3013 = vst [vmem:[%s396 + $0x320] sm:$0xff] %v2845
        %3014 = vst [vmem:[%s396 + $0x328] sm:$0xff] %v2847
        %3015 = vst [vmem:[%s396 + $0x330] sm:$0xff] %v2849
        %3016 = vst [vmem:[%s396 + $0x338] sm:$0xff] %v2851
        %3017 = vst [vmem:[%s396 + $0x340] sm:$0xff] %v2855
        %3018 = vst [vmem:[%s396 + $0x348] sm:$0xff] %v2857
        %3019 = vst [vmem:[%s396 + $0x350] sm:$0xff] %v2859
        %3020 = vst [vmem:[%s396 + $0x358] sm:$0xff] %v2861
        %3021 = vst [vmem:[%s396 + $0x360] sm:$0xff] %v2865
        %3022 = vst [vmem:[%s396 + $0x368] sm:$0xff] %v2867
        %3023 = vst [vmem:[%s396 + $0x370] sm:$0xff] %v2869
        %3024 = vst [vmem:[%s396 + $0x378] sm:$0xff] %v2871
        %3025 = vst [vmem:[%s396 + $0x380] sm:$0xff] %v2875
        %3026 = vst [vmem:[%s396 + $0x388] sm:$0xff] %v2877
        %3027 = vst [vmem:[%s396 + $0x390] sm:$0xff] %v2879
        %3028 = vst [vmem:[%s396 + $0x398] sm:$0xff] %v2881
        %3029 = vst [vmem:[%s396 + $0x3a0] sm:$0xff] %v2885
        %3030 = vst [vmem:[%s396 + $0x3a8] sm:$0xff] %v2887
        %3031 = vst [vmem:[%s396 + $0x3b0] sm:$0xff] %v2889
        %3032 = vst [vmem:[%s396 + $0x3b8] sm:$0xff] %v2891
        %3033 = vst [vmem:[%s396 + $0x3c0] sm:$0xff] %v2895
        %3034 = vst [vmem:[%s396 + $0x3c8] sm:$0xff] %v2897
        %3035 = vst [vmem:[%s396 + $0x3d0] sm:$0xff] %v2899
        %3036 = vst [vmem:[%s396 + $0x3d8] sm:$0xff] %v2901
        %3037 = vst [vmem:[%s396 + $0x3e0] sm:$0xff] %v2905
        %3038 = vst [vmem:[%s396 + $0x3e8] sm:$0xff] %v2907
        %3039 = vst [vmem:[%s396 + $0x3f0] sm:$0xff] %v2909
        %3040 = vst [vmem:[%s396 + $0x3f8] sm:$0xff] %v2911
        %s3041 = sand.u32 %s210, 1
        %s3042 = scalar_lea.sflag [#allocation4], %s3041
        %s3043 = sand.u32 %s210, 1
        %s3044 = smul.addr %s3043, 1024
        %s3045 = scalar_lea.vmem [#allocation10], %s3044
        %s3046 = smul.u32 64, %s29
        %p3047 = scmp.lt.s32.totalorder %s3046, 127
        %s3048 = scalar_select %p3047, %s3046, 127
        %s3049 = smul.addr %s3048, 8
        %s3050 = scalar_lea.vmem %s9, %s3049
        // Predicated region
        $region69: #{multivae_forward.1} parent=51 // pred_check
          %p3051 = pneg %p220
        $region70: #{multivae_forward.1} parent=51 // pred_check_branch
          %3053 = sbr.rel (%p3051) target = $region72
        $region71: #{multivae_forward.1} parent=51 // pred_region
          %s3054 = smul.u32 64, %s29
          %s3056 = ssub.s32 16384, 16384
          %3057 = vsyncadd %s3042, %s3056
          %s3058 = smul.addr %s3054, 2
          %s3059 = smul.addr %s3058, 128
          %s3060 = scalar_lea.hbm %s8, %s3059
          %s3061 = sshll.u32 %s3045, 4
          %s3062 = int_to_ptr.vmem [resolvable:$true] %s3061
          %3067 = dma.vmem_to_hbm [thread:$0]  %s3062, 16384, %s3060, %s3042, 256, 256, 16
        $region72: #{multivae_forward.1} parent=51 // pred_fallthru
          _
        // Predicated region
        $region73: #{multivae_forward.1} parent=51 // pred_check
          %p3068 = pneg %p246
        $region74: #{multivae_forward.1} parent=51 // pred_check_branch
          %3070 = sbr.rel (%p3068) target = $region76
        $region75: #{multivae_forward.1} parent=51 // pred_region
          %s3071 = smul.u32 64, %s29
        $region76: #{multivae_forward.1} parent=51 // pred_fallthru
          _
      $region52: #{multivae_forward.1} parent=5 // pred_fallthru
        _
      %p3072 = scmp.le.s32.totalorder 2, %s24
      // Predicated region
      $region77: #{multivae_forward.1} parent=5 // pred_check
        %p3073 = pneg %p3072
      $region78: #{multivae_forward.1} parent=5 // pred_check_branch
        %3075 = sbr.rel (%p3073) target = $region80
      $region79: #{multivae_forward.1} parent=5 // pred_region
        %s3076 = ssub.s32 %s24, 2
        // Predicated region
        $region81: #{multivae_forward.1} parent=79 // pred_check
          %p3077 = pneg %p226
        $region82: #{multivae_forward.1} parent=79 // pred_check_branch
          %3079 = sbr.rel (%p3077) target = $region84
        $region83: #{multivae_forward.1} parent=79 // pred_region
          %s3080 = sand.u32 %s211, 1
          %s3081 = scalar_lea.sflag [#allocation4], %s3080
          %s3082 = sand.u32 %s211, 1
          %s3083 = smul.addr %s3082, 1024
          %s3084 = scalar_lea.vmem [#allocation10], %s3083
          %3085 = dma.done %s3081, 16384
        $region84: #{multivae_forward.1} parent=79 // pred_fallthru
          _
        // Predicated region
        $region85: #{multivae_forward.1} parent=79 // pred_check
          %p3086 = pneg %p252
        $region86: #{multivae_forward.1} parent=79 // pred_check_branch
          %3088 = sbr.rel (%p3086) target = $region88
        $region87: #{multivae_forward.1} parent=79 // pred_region
          %s3089 = smul.u32 64, %s30
          %p3090 = scmp.lt.s32.totalorder %s3089, 127
          %s3091 = scalar_select %p3090, %s3089, 127
          %s3092 = smul.addr %s3091, 8
          %s3093 = scalar_lea.vmem %s9, %s3092
        $region88: #{multivae_forward.1} parent=79 // pred_fallthru
          _
      $region80: #{multivae_forward.1} parent=5 // pred_fallthru
        _
    $region6: #{multivae_forward.1} parent=1 // loop_footer
      %s28 = sadd.s32 1, %s24
    $region7: #{multivae_forward.1} parent=1 // loop_footer_branch
      %23 = sbr.rel target = $region3
    $region8: #{multivae_forward.1} parent=1 // loop_exit
      _
    %3094 = vsyncpa [#allocation3], 1
    %s3095 = scalar_lea.sflag [#allocation3], 1
    %3096 = vsyncpa %s3095, 1
    %3097 = vsyncpa [#allocation6], 1
    %3098 = vsyncpa [#allocation9], 1
    %3099 = vsyncpa [#allocation4], 1
    %s3100 = scalar_lea.sflag [#allocation4], 1
    %3101 = vsyncpa %s3100, 1

</llo_original>
